<compile_context>
chip_gen: v7x
topology: tpu7x:2x2x1
jax: 0.10.0
libtpu: 0.0.40
codegen_flags: <defaults>
</compile_context>

<pallas_src>
import numpy as np
import jax
import jax.numpy as jnp
from jax.experimental import pallas as pl
from jax.experimental.pallas import tpu as pltpu


FEATURES_IN = 108
C1, H1, W1 = 8, 12, 5            # fc output, viewed as (C, H, W)


# ------------------------------ fused kernel ----------------------------------

def _fused_kernel(x_ref, wfc_ref, bfc_ref,
                  ct1_ref, g1_ref, b1_ref,
                  ct2_ref, g2_ref, b2_ref,
                  ct3_ref, g3_ref, b3_ref,
                  out_ref, x1_ref):
    f32 = jnp.float32

    # ---- fc + relu (MXU matvec).  wfc rows are pre-permuted on the host so the
    # ---- (480, 1) result is the (96, 5) stacked activation, in 5 contiguous 96-row chunks.
    r = jnp.dot(wfc_ref[...], x_ref[...], preferred_element_type=f32) + bfc_ref[...]
    r = jnp.maximum(r, 0.0)                                        # (480, 1)
    n_rows, n_cols = x1_ref.shape                                  # (96, 5)
    for iw in range(n_cols):
        x1_ref[:, iw:iw + 1] = r[iw * n_rows:(iw + 1) * n_rows, :]

    # ---- one ConvTranspose2d(kernel=3, stride=2) layer == 6 small MXU matmuls.
    #      x_stack: (C_in*H, W);  returns (C_out*H_out, W_out)  (already row-scattered,
    #      column-scattered, channel-mixed and bias-added).
    def deconv(x_stack, ct_ref, g_ref, b_ref):
        y = b_ref[...]                                             # (C_out*H_out, 1) -> lane broadcast
        for kw in range(3):
            xc = jnp.dot(x_stack, ct_ref[kw], preferred_element_type=f32)   # column scatter iw -> 2*iw+kw
            y = y + jnp.dot(g_ref[kw], xc, preferred_element_type=f32)      # taps + channel mix + row scatter
        return y

    a = jnp.maximum(deconv(x1_ref[...], ct1_ref, g1_ref, b1_ref), 0.0)   # (100, 11) == (4*25, 11)
    a = jnp.maximum(deconv(a, ct2_ref, g2_ref, b2_ref), 0.0)             # (102, 23) == (2*51, 23)
    out_ref[...] = deconv(a, ct3_ref, g3_ref, b3_ref)                    # (100, 40): final crop folded in


# --------------------------- host-side preparation -----------------------------

def prepare_params(params):
    """Fold torch-layout parameters into the constant operands of the fused kernel (runs once)."""
    fc_w = np.asarray(params["fc_w"], np.float32)                  # (480, 108)
    fc_b = np.asarray(params["fc_b"], np.float32)                  # (480,)
    n_rows, n_cols = C1 * H1, W1                                   # (96, 5)

    # new row iw*96 + p  <-  old row p*5 + iw   (p = ci*H1 + ih)
    wfc = fc_w.reshape(n_rows, n_cols, FEATURES_IN).transpose(1, 0, 2).reshape(n_rows * n_cols, FEATURES_IN)
    bfc = fc_b.reshape(n_rows, n_cols).T.reshape(-1, 1)

    prepared = [jnp.asarray(wfc), jnp.asarray(bfc)]

    h, w = H1, W1
    layer_names = ("d1", "d2", "d3")
    for li, name in enumerate(layer_names):
        wt = np.asarray(params[name + "_w"], np.float32)           # (C_in, C_out, 3, 3) torch layout
        bs = np.asarray(params[name + "_b"], np.float32)           # (C_out,)
        c_in, c_out = wt.shape[0], wt.shape[1]
        h_out, w_out = 2 * h + 1, 2 * w + 1

        # Column-scatter matrices: CT_kw[iw, ow] = 1 iff ow == 2*iw + kw.
        ct = np.zeros((3, w, w_out), np.float32)
        for kw in range(3):
            ct[kw, np.arange(w), 2 * np.arange(w) + kw] = 1.0

        # G_kw = sum_kh kron(I_Cout, R_kh) @ kron(W[:, :, kh, kw]^T, I_H)
        g = np.zeros((3, c_out * h_out, c_in * h), np.float32)
        eye_h = np.eye(h, dtype=np.float32)
        eye_co = np.eye(c_out, dtype=np.float32)
        for kw in range(3):
            for kh in range(3):
                r_mat = np.zeros((h_out, h), np.float32)
                r_mat[2 * np.arange(h) + kh, np.arange(h)] = 1.0   # row scatter ih -> 2*ih+kh
                g[kw] += np.kron(eye_co, r_mat) @ np.kron(wt[:, :, kh, kw].T, eye_h)

        b_col = np.repeat(bs, h_out).reshape(c_out * h_out, 1).astype(np.float32)

        if li == len(layer_names) - 1:
            # Fold the final x[2:2+100, 3:3+40] crop into the last layer (C_out == 1).
            g = g[:, 2:2 + 100, :]
            b_col = b_col[2:2 + 100, :]
            ct = ct[:, :, 3:3 + 40]

        prepared += [jnp.asarray(ct), jnp.asarray(g), jnp.asarray(b_col)]
        h, w = h_out, w_out

    return tuple(prepared)


# --------------------------------- forward -------------------------------------

@jax.jit
def fc_deconv_small_forward(x, prepared):
    """x: (108,) float32; prepared: output of prepare_params. Returns (100, 40)."""
    x_col = jnp.asarray(x, jnp.float32).reshape(-1, 1)             # (108, 1)
    return pl.pallas_call(
        _fused_kernel,
        out_shape=jax.ShapeDtypeStruct((100, 40), jnp.float32),
        in_specs=[pl.BlockSpec(memory_space=pltpu.MemorySpace.VMEM)] * (1 + len(prepared)),
        out_specs=pl.BlockSpec(memory_space=pltpu.MemorySpace.VMEM),
        scratch_shapes=[pltpu.VMEM((C1 * H1, W1), jnp.float32)],   # stacked fc activation (96, 5)
        compiler_params=pltpu.CompilerParams(vmem_limit_bytes=8 * 1024 * 1024),
    )(x_col, *prepared)


# --------------------------- numpy reference (checker) -------------------------

def _ref_forward(x, params):
    x = np.asarray(x, np.float64)
    w_fc = np.asarray(params["fc_w"], np.float64)
    b_fc = np.asarray(params["fc_b"], np.float64)
    h = np.maximum(w_fc @ x + b_fc, 0.0).reshape(C1, H1, W1)

    def deconv(inp, w, b, relu):
        w = np.asarray(w, np.float64)
        b = np.asarray(b, np.float64)
        c_in, hh, ww = inp.shape
        c_out = w.shape[1]
        out = np.tile(b[:, None, None], (1, 2 * hh + 1, 2 * ww + 1))
        for ci in range(c_in):
            for co in range(c_out):
                for ih in range(hh):
                    for iw in range(ww):
                        out[co, 2 * ih:2 * ih + 3, 2 * iw:2 * iw + 3] += inp[ci, ih, iw] * w[ci, co]
        return np.maximum(out, 0.0) if relu else out

    h = deconv(h, params["d1_w"], params["d1_b"], True)
    h = deconv(h, params["d2_w"], params["d2_b"], True)
    h = deconv(h, params["d3_w"], params["d3_b"], False)
    return h[0, 2:2 + 100, 3:3 + 40]


# ----------------------------------- main ---------------------------------------

if __name__ == "__main__":
    key = jax.random.PRNGKey(0)
    ks = jax.random.split(key, 9)

    params = {
        "fc_w": 0.2 * jax.random.normal(ks[0], (C1 * H1 * W1, FEATURES_IN), jnp.float32),
        "fc_b": 0.1 * jax.random.normal(ks[1], (C1 * H1 * W1,), jnp.float32),
        "d1_w": 0.3 * jax.random.normal(ks[2], (8, 4, 3, 3), jnp.float32),
        "d1_b": 0.1 * jax.random.normal(ks[3], (4,), jnp.float32),
        "d2_w": 0.3 * jax.random.normal(ks[4], (4, 2, 3, 3), jnp.float32),
        "d2_b": 0.1 * jax.random.normal(ks[5], (2,), jnp.float32),
        "d3_w": 0.3 * jax.random.normal(ks[6], (2, 1, 3, 3), jnp.float32),
        "d3_b": 0.1 * jax.random.normal(ks[7], (1,), jnp.float32),
    }
    x = jax.random.normal(ks[8], (FEATURES_IN,), jnp.float32)

    prepared = prepare_params(params)                 # one-time host-side weight folding

    out = fc_deconv_small_forward(x, prepared)
    out = jax.block_until_ready(out)
    assert out.shape == (100, 40), out.shape

    ref = _ref_forward(np.asarray(x), {k: np.asarray(v) for k, v in params.items()})
    np.testing.assert_allclose(np.asarray(out), ref, rtol=5e-3, atol=5e-3)

    print("KERNEL_OK")
</pallas_src>

<mosaic_0001>
module attributes {stable_mosaic.version = 11 : i64} {
  func.func @_fused_kernel(%arg0: memref<108x1xf32, #tpu.memory_space<vmem>>, %arg1: memref<480x108xf32, #tpu.memory_space<vmem>>, %arg2: memref<480x1xf32, #tpu.memory_space<vmem>>, %arg3: memref<3x5x11xf32, #tpu.memory_space<vmem>>, %arg4: memref<3x100x96xf32, #tpu.memory_space<vmem>>, %arg5: memref<100x1xf32, #tpu.memory_space<vmem>>, %arg6: memref<3x11x23xf32, #tpu.memory_space<vmem>>, %arg7: memref<3x102x100xf32, #tpu.memory_space<vmem>>, %arg8: memref<102x1xf32, #tpu.memory_space<vmem>>, %arg9: memref<3x23x40xf32, #tpu.memory_space<vmem>>, %arg10: memref<3x100x102xf32, #tpu.memory_space<vmem>>, %arg11: memref<100x1xf32, #tpu.memory_space<vmem>>, %arg12: memref<100x40xf32, #tpu.memory_space<vmem>>, %arg13: memref<96x5xf32, #tpu.memory_space<vmem>>) attributes {dimension_semantics = [], scalar_prefetch = 0 : i64, scratch_operands = 1 : i64, tpu.core_type = #tpu.core_type<tc>} {
    %c0 = arith.constant 0 : index
    %c0_0 = arith.constant 0 : index
    %0 = vector.load %arg1[%c0, %c0_0] : memref<480x108xf32, #tpu.memory_space<vmem>>, vector<480x108xf32>
    %c0_1 = arith.constant 0 : index
    %c0_2 = arith.constant 0 : index
    %1 = vector.load %arg0[%c0_1, %c0_2] : memref<108x1xf32, #tpu.memory_space<vmem>>, vector<108x1xf32>
    %cst = arith.constant dense<0.000000e+00> : vector<480x1xf32>
    %2 = tpu.matmul %0, %1, %cst {dimension_numbers = #tpu.dot_dimension_numbers<[1], [0], [0], [1], [0, 0, 1, 1], [], []>} : vector<480x108xf32>, vector<108x1xf32>, vector<480x1xf32> -> vector<480x1xf32>
    %c0_3 = arith.constant 0 : index
    %c0_4 = arith.constant 0 : index
    %3 = vector.load %arg2[%c0_3, %c0_4] : memref<480x1xf32, #tpu.memory_space<vmem>>, vector<480x1xf32>
    %4 = arith.addf %2, %3 : vector<480x1xf32>
    %cst_5 = arith.constant 0.000000e+00 : f32
    %5 = vector.broadcast %cst_5 : f32 to vector<480x1xf32>
    %6 = arith.maximumf %4, %5 : vector<480x1xf32>
    %7 = vector.extract_strided_slice %6 {offsets = [0, 0], sizes = [96, 1], strides = [1, 1]} : vector<480x1xf32> to vector<96x1xf32>
    %c0_6 = arith.constant 0 : index
    %c0_7 = arith.constant 0 : index
    %8 = vector.load %arg13[%c0_6, %c0_7] : memref<96x5xf32, #tpu.memory_space<vmem>>, vector<96x1xf32>
    tpu.vector_store %arg13[%c0_6, %c0_7], %7 {strides = array<i32>} : memref<96x5xf32, #tpu.memory_space<vmem>>, vector<96x1xf32>,
    %9 = vector.extract_strided_slice %6 {offsets = [96, 0], sizes = [96, 1], strides = [1, 1]} : vector<480x1xf32> to vector<96x1xf32>
    %c0_8 = arith.constant 0 : index
    %c1 = arith.constant 1 : index
    %10 = vector.load %arg13[%c0_8, %c1] : memref<96x5xf32, #tpu.memory_space<vmem>>, vector<96x1xf32>
    tpu.vector_store %arg13[%c0_8, %c1], %9 {strides = array<i32>} : memref<96x5xf32, #tpu.memory_space<vmem>>, vector<96x1xf32>,
    %11 = vector.extract_strided_slice %6 {offsets = [192, 0], sizes = [96, 1], strides = [1, 1]} : vector<480x1xf32> to vector<96x1xf32>
    %c0_9 = arith.constant 0 : index
    %c2 = arith.constant 2 : index
    %12 = vector.load %arg13[%c0_9, %c2] : memref<96x5xf32, #tpu.memory_space<vmem>>, vector<96x1xf32>
    tpu.vector_store %arg13[%c0_9, %c2], %11 {strides = array<i32>} : memref<96x5xf32, #tpu.memory_space<vmem>>, vector<96x1xf32>,
    %13 = vector.extract_strided_slice %6 {offsets = [288, 0], sizes = [96, 1], strides = [1, 1]} : vector<480x1xf32> to vector<96x1xf32>
    %c0_10 = arith.constant 0 : index
    %c3 = arith.constant 3 : index
    %14 = vector.load %arg13[%c0_10, %c3] : memref<96x5xf32, #tpu.memory_space<vmem>>, vector<96x1xf32>
    tpu.vector_store %arg13[%c0_10, %c3], %13 {strides = array<i32>} : memref<96x5xf32, #tpu.memory_space<vmem>>, vector<96x1xf32>,
    %15 = vector.extract_strided_slice %6 {offsets = [384, 0], sizes = [96, 1], strides = [1, 1]} : vector<480x1xf32> to vector<96x1xf32>
    %c0_11 = arith.constant 0 : index
    %c4 = arith.constant 4 : index
    %16 = vector.load %arg13[%c0_11, %c4] : memref<96x5xf32, #tpu.memory_space<vmem>>, vector<96x1xf32>
    tpu.vector_store %arg13[%c0_11, %c4], %15 {strides = array<i32>} : memref<96x5xf32, #tpu.memory_space<vmem>>, vector<96x1xf32>,
    %c0_12 = arith.constant 0 : index
    %c0_13 = arith.constant 0 : index
    %17 = vector.load %arg13[%c0_12, %c0_13] : memref<96x5xf32, #tpu.memory_space<vmem>>, vector<96x5xf32>
    %c0_14 = arith.constant 0 : index
    %c0_15 = arith.constant 0 : index
    %18 = vector.load %arg5[%c0_14, %c0_15] : memref<100x1xf32, #tpu.memory_space<vmem>>, vector<100x1xf32>
    %c0_16 = arith.constant 0 : index
    %c0_17 = arith.constant 0 : index
    %c0_18 = arith.constant 0 : index
    %19 = vector.load %arg3[%c0_16, %c0_17, %c0_18] : memref<3x5x11xf32, #tpu.memory_space<vmem>>, vector<1x5x11xf32>
    %20 = vector.shape_cast %19 : vector<1x5x11xf32> to vector<5x11xf32>
    %cst_19 = arith.constant dense<0.000000e+00> : vector<96x11xf32>
    %21 = tpu.matmul %17, %20, %cst_19 {dimension_numbers = #tpu.dot_dimension_numbers<[1], [0], [0], [1], [0, 0, 1, 1], [], []>} : vector<96x5xf32>, vector<5x11xf32>, vector<96x11xf32> -> vector<96x11xf32>
    %c0_20 = arith.constant 0 : index
    %c0_21 = arith.constant 0 : index
    %c0_22 = arith.constant 0 : index
    %22 = vector.load %arg4[%c0_20, %c0_21, %c0_22] : memref<3x100x96xf32, #tpu.memory_space<vmem>>, vector<1x100x96xf32>
    %23 = vector.shape_cast %22 : vector<1x100x96xf32> to vector<100x96xf32>
    %cst_23 = arith.constant dense<0.000000e+00> : vector<100x11xf32>
    %24 = tpu.matmul %23, %21, %cst_23 {dimension_numbers = #tpu.dot_dimension_numbers<[1], [0], [0], [1], [0, 0, 1, 1], [], []>} : vector<100x96xf32>, vector<96x11xf32>, vector<100x11xf32> -> vector<100x11xf32>
    %25 = vector.broadcast %18 : vector<100x1xf32> to vector<100x11xf32>
    %26 = arith.addf %25, %24 : vector<100x11xf32>
    %c1_24 = arith.constant 1 : index
    %c0_25 = arith.constant 0 : index
    %c0_26 = arith.constant 0 : index
    %27 = vector.load %arg3[%c1_24, %c0_25, %c0_26] : memref<3x5x11xf32, #tpu.memory_space<vmem>>, vector<1x5x11xf32>
    %28 = vector.shape_cast %27 : vector<1x5x11xf32> to vector<5x11xf32>
    %cst_27 = arith.constant dense<0.000000e+00> : vector<96x11xf32>
    %29 = tpu.matmul %17, %28, %cst_27 {dimension_numbers = #tpu.dot_dimension_numbers<[1], [0], [0], [1], [0, 0, 1, 1], [], []>} : vector<96x5xf32>, vector<5x11xf32>, vector<96x11xf32> -> vector<96x11xf32>
    %c1_28 = arith.constant 1 : index
    %c0_29 = arith.constant 0 : index
    %c0_30 = arith.constant 0 : index
    %30 = vector.load %arg4[%c1_28, %c0_29, %c0_30] : memref<3x100x96xf32, #tpu.memory_space<vmem>>, vector<1x100x96xf32>
    %31 = vector.shape_cast %30 : vector<1x100x96xf32> to vector<100x96xf32>
    %cst_31 = arith.constant dense<0.000000e+00> : vector<100x11xf32>
    %32 = tpu.matmul %31, %29, %cst_31 {dimension_numbers = #tpu.dot_dimension_numbers<[1], [0], [0], [1], [0, 0, 1, 1], [], []>} : vector<100x96xf32>, vector<96x11xf32>, vector<100x11xf32> -> vector<100x11xf32>
    %33 = arith.addf %26, %32 : vector<100x11xf32>
    %c2_32 = arith.constant 2 : index
    %c0_33 = arith.constant 0 : index
    %c0_34 = arith.constant 0 : index
    %34 = vector.load %arg3[%c2_32, %c0_33, %c0_34] : memref<3x5x11xf32, #tpu.memory_space<vmem>>, vector<1x5x11xf32>
    %35 = vector.shape_cast %34 : vector<1x5x11xf32> to vector<5x11xf32>
    %cst_35 = arith.constant dense<0.000000e+00> : vector<96x11xf32>
    %36 = tpu.matmul %17, %35, %cst_35 {dimension_numbers = #tpu.dot_dimension_numbers<[1], [0], [0], [1], [0, 0, 1, 1], [], []>} : vector<96x5xf32>, vector<5x11xf32>, vector<96x11xf32> -> vector<96x11xf32>
    %c2_36 = arith.constant 2 : index
    %c0_37 = arith.constant 0 : index
    %c0_38 = arith.constant 0 : index
    %37 = vector.load %arg4[%c2_36, %c0_37, %c0_38] : memref<3x100x96xf32, #tpu.memory_space<vmem>>, vector<1x100x96xf32>
    %38 = vector.shape_cast %37 : vector<1x100x96xf32> to vector<100x96xf32>
    %cst_39 = arith.constant dense<0.000000e+00> : vector<100x11xf32>
    %39 = tpu.matmul %38, %36, %cst_39 {dimension_numbers = #tpu.dot_dimension_numbers<[1], [0], [0], [1], [0, 0, 1, 1], [], []>} : vector<100x96xf32>, vector<96x11xf32>, vector<100x11xf32> -> vector<100x11xf32>
    %40 = arith.addf %33, %39 : vector<100x11xf32>
    %cst_40 = arith.constant 0.000000e+00 : f32
    %41 = vector.broadcast %cst_40 : f32 to vector<100x11xf32>
    %42 = arith.maximumf %40, %41 : vector<100x11xf32>
    %c0_41 = arith.constant 0 : index
    %c0_42 = arith.constant 0 : index
    %43 = vector.load %arg8[%c0_41, %c0_42] : memref<102x1xf32, #tpu.memory_space<vmem>>, vector<102x1xf32>
    %c0_43 = arith.constant 0 : index
    %c0_44 = arith.constant 0 : index
    %c0_45 = arith.constant 0 : index
    %44 = vector.load %arg6[%c0_43, %c0_44, %c0_45] : memref<3x11x23xf32, #tpu.memory_space<vmem>>, vector<1x11x23xf32>
    %45 = vector.shape_cast %44 : vector<1x11x23xf32> to vector<11x23xf32>
    %cst_46 = arith.constant dense<0.000000e+00> : vector<100x23xf32>
    %46 = tpu.matmul %42, %45, %cst_46 {dimension_numbers = #tpu.dot_dimension_numbers<[1], [0], [0], [1], [0, 0, 1, 1], [], []>} : vector<100x11xf32>, vector<11x23xf32>, vector<100x23xf32> -> vector<100x23xf32>
    %c0_47 = arith.constant 0 : index
    %c0_48 = arith.constant 0 : index
    %c0_49 = arith.constant 0 : index
    %47 = vector.load %arg7[%c0_47, %c0_48, %c0_49] : memref<3x102x100xf32, #tpu.memory_space<vmem>>, vector<1x102x100xf32>
    %48 = vector.shape_cast %47 : vector<1x102x100xf32> to vector<102x100xf32>
    %cst_50 = arith.constant dense<0.000000e+00> : vector<102x23xf32>
    %49 = tpu.matmul %48, %46, %cst_50 {dimension_numbers = #tpu.dot_dimension_numbers<[1], [0], [0], [1], [0, 0, 1, 1], [], []>} : vector<102x100xf32>, vector<100x23xf32>, vector<102x23xf32> -> vector<102x23xf32>
    %50 = vector.broadcast %43 : vector<102x1xf32> to vector<102x23xf32>
    %51 = arith.addf %50, %49 : vector<102x23xf32>
    %c1_51 = arith.constant 1 : index
    %c0_52 = arith.constant 0 : index
    %c0_53 = arith.constant 0 : index
    %52 = vector.load %arg6[%c1_51, %c0_52, %c0_53] : memref<3x11x23xf32, #tpu.memory_space<vmem>>, vector<1x11x23xf32>
    %53 = vector.shape_cast %52 : vector<1x11x23xf32> to vector<11x23xf32>
    %cst_54 = arith.constant dense<0.000000e+00> : vector<100x23xf32>
    %54 = tpu.matmul %42, %53, %cst_54 {dimension_numbers = #tpu.dot_dimension_numbers<[1], [0], [0], [1], [0, 0, 1, 1], [], []>} : vector<100x11xf32>, vector<11x23xf32>, vector<100x23xf32> -> vector<100x23xf32>
    %c1_55 = arith.constant 1 : index
    %c0_56 = arith.constant 0 : index
    %c0_57 = arith.constant 0 : index
    %55 = vector.load %arg7[%c1_55, %c0_56, %c0_57] : memref<3x102x100xf32, #tpu.memory_space<vmem>>, vector<1x102x100xf32>
    %56 = vector.shape_cast %55 : vector<1x102x100xf32> to vector<102x100xf32>
    %cst_58 = arith.constant dense<0.000000e+00> : vector<102x23xf32>
    %57 = tpu.matmul %56, %54, %cst_58 {dimension_numbers = #tpu.dot_dimension_numbers<[1], [0], [0], [1], [0, 0, 1, 1], [], []>} : vector<102x100xf32>, vector<100x23xf32>, vector<102x23xf32> -> vector<102x23xf32>
    %58 = arith.addf %51, %57 : vector<102x23xf32>
    %c2_59 = arith.constant 2 : index
    %c0_60 = arith.constant 0 : index
    %c0_61 = arith.constant 0 : index
    %59 = vector.load %arg6[%c2_59, %c0_60, %c0_61] : memref<3x11x23xf32, #tpu.memory_space<vmem>>, vector<1x11x23xf32>
    %60 = vector.shape_cast %59 : vector<1x11x23xf32> to vector<11x23xf32>
    %cst_62 = arith.constant dense<0.000000e+00> : vector<100x23xf32>
    %61 = tpu.matmul %42, %60, %cst_62 {dimension_numbers = #tpu.dot_dimension_numbers<[1], [0], [0], [1], [0, 0, 1, 1], [], []>} : vector<100x11xf32>, vector<11x23xf32>, vector<100x23xf32> -> vector<100x23xf32>
    %c2_63 = arith.constant 2 : index
    %c0_64 = arith.constant 0 : index
    %c0_65 = arith.constant 0 : index
    %62 = vector.load %arg7[%c2_63, %c0_64, %c0_65] : memref<3x102x100xf32, #tpu.memory_space<vmem>>, vector<1x102x100xf32>
    %63 = vector.shape_cast %62 : vector<1x102x100xf32> to vector<102x100xf32>
    %cst_66 = arith.constant dense<0.000000e+00> : vector<102x23xf32>
    %64 = tpu.matmul %63, %61, %cst_66 {dimension_numbers = #tpu.dot_dimension_numbers<[1], [0], [0], [1], [0, 0, 1, 1], [], []>} : vector<102x100xf32>, vector<100x23xf32>, vector<102x23xf32> -> vector<102x23xf32>
    %65 = arith.addf %58, %64 : vector<102x23xf32>
    %cst_67 = arith.constant 0.000000e+00 : f32
    %66 = vector.broadcast %cst_67 : f32 to vector<102x23xf32>
    %67 = arith.maximumf %65, %66 : vector<102x23xf32>
    %c0_68 = arith.constant 0 : index
    %c0_69 = arith.constant 0 : index
    %68 = vector.load %arg11[%c0_68, %c0_69] : memref<100x1xf32, #tpu.memory_space<vmem>>, vector<100x1xf32>
    %c0_70 = arith.constant 0 : index
    %c0_71 = arith.constant 0 : index
    %c0_72 = arith.constant 0 : index
    %69 = vector.load %arg9[%c0_70, %c0_71, %c0_72] : memref<3x23x40xf32, #tpu.memory_space<vmem>>, vector<1x23x40xf32>
    %70 = vector.shape_cast %69 : vector<1x23x40xf32> to vector<23x40xf32>
    %cst_73 = arith.constant dense<0.000000e+00> : vector<102x40xf32>
    %71 = tpu.matmul %67, %70, %cst_73 {dimension_numbers = #tpu.dot_dimension_numbers<[1], [0], [0], [1], [0, 0, 1, 1], [], []>} : vector<102x23xf32>, vector<23x40xf32>, vector<102x40xf32> -> vector<102x40xf32>
    %c0_74 = arith.constant 0 : index
    %c0_75 = arith.constant 0 : index
    %c0_76 = arith.constant 0 : index
    %72 = vector.load %arg10[%c0_74, %c0_75, %c0_76] : memref<3x100x102xf32, #tpu.memory_space<vmem>>, vector<1x100x102xf32>
    %73 = vector.shape_cast %72 : vector<1x100x102xf32> to vector<100x102xf32>
    %cst_77 = arith.constant dense<0.000000e+00> : vector<100x40xf32>
    %74 = tpu.matmul %73, %71, %cst_77 {dimension_numbers = #tpu.dot_dimension_numbers<[1], [0], [0], [1], [0, 0, 1, 1], [], []>} : vector<100x102xf32>, vector<102x40xf32>, vector<100x40xf32> -> vector<100x40xf32>
    %75 = vector.broadcast %68 : vector<100x1xf32> to vector<100x40xf32>
    %76 = arith.addf %75, %74 : vector<100x40xf32>
    %c1_78 = arith.constant 1 : index
    %c0_79 = arith.constant 0 : index
    %c0_80 = arith.constant 0 : index
    %77 = vector.load %arg9[%c1_78, %c0_79, %c0_80] : memref<3x23x40xf32, #tpu.memory_space<vmem>>, vector<1x23x40xf32>
    %78 = vector.shape_cast %77 : vector<1x23x40xf32> to vector<23x40xf32>
    %cst_81 = arith.constant dense<0.000000e+00> : vector<102x40xf32>
    %79 = tpu.matmul %67, %78, %cst_81 {dimension_numbers = #tpu.dot_dimension_numbers<[1], [0], [0], [1], [0, 0, 1, 1], [], []>} : vector<102x23xf32>, vector<23x40xf32>, vector<102x40xf32> -> vector<102x40xf32>
    %c1_82 = arith.constant 1 : index
    %c0_83 = arith.constant 0 : index
    %c0_84 = arith.constant 0 : index
    %80 = vector.load %arg10[%c1_82, %c0_83, %c0_84] : memref<3x100x102xf32, #tpu.memory_space<vmem>>, vector<1x100x102xf32>
    %81 = vector.shape_cast %80 : vector<1x100x102xf32> to vector<100x102xf32>
    %cst_85 = arith.constant dense<0.000000e+00> : vector<100x40xf32>
    %82 = tpu.matmul %81, %79, %cst_85 {dimension_numbers = #tpu.dot_dimension_numbers<[1], [0], [0], [1], [0, 0, 1, 1], [], []>} : vector<100x102xf32>, vector<102x40xf32>, vector<100x40xf32> -> vector<100x40xf32>
    %83 = arith.addf %76, %82 : vector<100x40xf32>
    %c2_86 = arith.constant 2 : index
    %c0_87 = arith.constant 0 : index
    %c0_88 = arith.constant 0 : index
    %84 = vector.load %arg9[%c2_86, %c0_87, %c0_88] : memref<3x23x40xf32, #tpu.memory_space<vmem>>, vector<1x23x40xf32>
    %85 = vector.shape_cast %84 : vector<1x23x40xf32> to vector<23x40xf32>
    %cst_89 = arith.constant dense<0.000000e+00> : vector<102x40xf32>
    %86 = tpu.matmul %67, %85, %cst_89 {dimension_numbers = #tpu.dot_dimension_numbers<[1], [0], [0], [1], [0, 0, 1, 1], [], []>} : vector<102x23xf32>, vector<23x40xf32>, vector<102x40xf32> -> vector<102x40xf32>
    %c2_90 = arith.constant 2 : index
    %c0_91 = arith.constant 0 : index
    %c0_92 = arith.constant 0 : index
    %87 = vector.load %arg10[%c2_90, %c0_91, %c0_92] : memref<3x100x102xf32, #tpu.memory_space<vmem>>, vector<1x100x102xf32>
    %88 = vector.shape_cast %87 : vector<1x100x102xf32> to vector<100x102xf32>
    %cst_93 = arith.constant dense<0.000000e+00> : vector<100x40xf32>
    %89 = tpu.matmul %88, %86, %cst_93 {dimension_numbers = #tpu.dot_dimension_numbers<[1], [0], [0], [1], [0, 0, 1, 1], [], []>} : vector<100x102xf32>, vector<102x40xf32>, vector<100x40xf32> -> vector<100x40xf32>
    %90 = arith.addf %83, %89 : vector<100x40xf32>
    %c0_94 = arith.constant 0 : index
    %c0_95 = arith.constant 0 : index
    %91 = vector.load %arg12[%c0_94, %c0_95] : memref<100x40xf32, #tpu.memory_space<vmem>>, vector<100x40xf32>
    tpu.vector_store %arg12[%c0_94, %c0_95], %90 {strides = array<i32>} : memref<100x40xf32, #tpu.memory_space<vmem>>, vector<100x40xf32>,
    return
  }
}

</mosaic_0001>

<llo_original>
// kernel: fc_deconv_small_forward.1
$region0: #{fc_deconv_small_forward.1}
  #allocation0 [shape = 'u32[]', space=smem, size = 0x4, offset = 0x4, fixed_abs, tag = 'smem constant byte address 0x4 - core index']
  #allocation1 [shape = 'u32[144,128]{1,0:T(1,128)}', space=vmem, size = 0x12000, scoped, tag = 'internal scratch']
  #allocation2 [shape = 'f32[96,5]{1,0:T(8,128)}', space=vmem, size = 0xc000, scoped, tag = 'scratch operand']
  %s0 = inlined_call_operand.vmem [shape: f32[108,1], index: 0, kind: input, shape index: {}]
  %s1 = inlined_call_operand.vmem [shape: f32[480,108], index: 1, kind: input, shape index: {}]
  %s2 = inlined_call_operand.vmem [shape: f32[480,1], index: 2, kind: input, shape index: {}]
  %s3 = inlined_call_operand.vmem [shape: f32[3,5,11], index: 3, kind: input, shape index: {}]
  %s4 = inlined_call_operand.vmem [shape: f32[3,100,96], index: 4, kind: input, shape index: {}]
  %s5 = inlined_call_operand.vmem [shape: f32[100,1], index: 5, kind: input, shape index: {}]
  %s6 = inlined_call_operand.vmem [shape: f32[3,11,23], index: 6, kind: input, shape index: {}]
  %s7 = inlined_call_operand.vmem [shape: f32[3,102,100], index: 7, kind: input, shape index: {}]
  %s8 = inlined_call_operand.vmem [shape: f32[102,1], index: 8, kind: input, shape index: {}]
  %s9 = inlined_call_operand.vmem [shape: f32[3,23,40], index: 9, kind: input, shape index: {}]
  %s10 = inlined_call_operand.vmem [shape: f32[3,100,102], index: 10, kind: input, shape index: {}]
  %s11 = inlined_call_operand.vmem [shape: f32[100,1], index: 11, kind: input, shape index: {}]
  %s12 = inlined_call_operand.vmem [shape: f32[100,40], index: 12, kind: output, shape index: {}]
  %s13 = sld [smem:[#allocation0]]
  $region58: #{fc_deconv_small_forward.1} parent=0
    _
  %s15 = ssub.s32 1, %s13
  %s16 = scalar_select 0, %s15, %s13
  // Predicated region
  $region2: #{fc_deconv_small_forward.1} parent=0 // pred_check
    _
  $region3: #{fc_deconv_small_forward.1} parent=0 // pred_check_branch
    %18 = sbr.rel (0) target = $region5
  $region4: #{fc_deconv_small_forward.1} parent=0 // pred_region
    _
  $region5: #{fc_deconv_small_forward.1} parent=0 // pred_fallthru
    _
  // Predicated region
  $region6: #{fc_deconv_small_forward.1} parent=0 // pred_check
    _
  $region7: #{fc_deconv_small_forward.1} parent=0 // pred_check_branch
    %20 = sbr.rel (0) target = $region9
  $region8: #{fc_deconv_small_forward.1} parent=0 // pred_region
    _
  $region9: #{fc_deconv_small_forward.1} parent=0 // pred_fallthru
    _
  // Predicated region
  $region10: #{fc_deconv_small_forward.1} parent=0 // pred_check
    _
  $region11: #{fc_deconv_small_forward.1} parent=0 // pred_check_branch
    %22 = sbr.rel (0) target = $region13
  $region12: #{fc_deconv_small_forward.1} parent=0 // pred_region
    _
  $region13: #{fc_deconv_small_forward.1} parent=0 // pred_fallthru
    _
  // Predicated region
  $region14: #{fc_deconv_small_forward.1} parent=0 // pred_check
    _
  $region15: #{fc_deconv_small_forward.1} parent=0 // pred_check_branch
    %24 = sbr.rel (0) target = $region17
  $region16: #{fc_deconv_small_forward.1} parent=0 // pred_region
    _
  $region17: #{fc_deconv_small_forward.1} parent=0 // pred_fallthru
    _
  // Predicated region
  $region18: #{fc_deconv_small_forward.1} parent=0 // pred_check
    _
  $region19: #{fc_deconv_small_forward.1} parent=0 // pred_check_branch
    %26 = sbr.rel (0) target = $region21
  $region20: #{fc_deconv_small_forward.1} parent=0 // pred_region
    _
  $region21: #{fc_deconv_small_forward.1} parent=0 // pred_fallthru
    _
  // Predicated region
  $region22: #{fc_deconv_small_forward.1} parent=0 // pred_check
    _
  $region23: #{fc_deconv_small_forward.1} parent=0 // pred_check_branch
    %28 = sbr.rel (0) target = $region25
  $region24: #{fc_deconv_small_forward.1} parent=0 // pred_region
    _
  $region25: #{fc_deconv_small_forward.1} parent=0 // pred_fallthru
    _
  // Predicated region
  $region26: #{fc_deconv_small_forward.1} parent=0 // pred_check
    _
  $region27: #{fc_deconv_small_forward.1} parent=0 // pred_check_branch
    %30 = sbr.rel (0) target = $region29
  $region28: #{fc_deconv_small_forward.1} parent=0 // pred_region
    _
  $region29: #{fc_deconv_small_forward.1} parent=0 // pred_fallthru
    _
  // Predicated region
  $region30: #{fc_deconv_small_forward.1} parent=0 // pred_check
    _
  $region31: #{fc_deconv_small_forward.1} parent=0 // pred_check_branch
    %32 = sbr.rel (0) target = $region33
  $region32: #{fc_deconv_small_forward.1} parent=0 // pred_region
    _
  $region33: #{fc_deconv_small_forward.1} parent=0 // pred_fallthru
    _
  // Predicated region
  $region34: #{fc_deconv_small_forward.1} parent=0 // pred_check
    _
  $region35: #{fc_deconv_small_forward.1} parent=0 // pred_check_branch
    %34 = sbr.rel (0) target = $region37
  $region36: #{fc_deconv_small_forward.1} parent=0 // pred_region
    _
  $region37: #{fc_deconv_small_forward.1} parent=0 // pred_fallthru
    _
  // Predicated region
  $region38: #{fc_deconv_small_forward.1} parent=0 // pred_check
    _
  $region39: #{fc_deconv_small_forward.1} parent=0 // pred_check_branch
    %36 = sbr.rel (0) target = $region41
  $region40: #{fc_deconv_small_forward.1} parent=0 // pred_region
    _
  $region41: #{fc_deconv_small_forward.1} parent=0 // pred_fallthru
    _
  // Predicated region
  $region42: #{fc_deconv_small_forward.1} parent=0 // pred_check
    _
  $region43: #{fc_deconv_small_forward.1} parent=0 // pred_check_branch
    %38 = sbr.rel (0) target = $region45
  $region44: #{fc_deconv_small_forward.1} parent=0 // pred_region
    _
  $region45: #{fc_deconv_small_forward.1} parent=0 // pred_fallthru
    _
  // Predicated region
  $region46: #{fc_deconv_small_forward.1} parent=0 // pred_check
    _
  $region47: #{fc_deconv_small_forward.1} parent=0 // pred_check_branch
    %40 = sbr.rel (0) target = $region49
  $region48: #{fc_deconv_small_forward.1} parent=0 // pred_region
    _
  $region49: #{fc_deconv_small_forward.1} parent=0 // pred_fallthru
    _
  %v41 = vld [vmem:[%s1] sm:$0xff]
  %v42 = vld [vmem:[%s1 + $0x8] sm:$0xff]
  %v43 = vld [vmem:[%s1 + $0x10] sm:$0xff]
  %v44 = vld [vmem:[%s1 + $0x18] sm:$0xff]
  %v45 = vld [vmem:[%s1 + $0x20] sm:$0xff]
  %v46 = vld [vmem:[%s1 + $0x28] sm:$0xff]
  %v47 = vld [vmem:[%s1 + $0x30] sm:$0xff]
  %v48 = vld [vmem:[%s1 + $0x38] sm:$0xff]
  %v49 = vld [vmem:[%s1 + $0x40] sm:$0xff]
  %v50 = vld [vmem:[%s1 + $0x48] sm:$0xff]
  %v51 = vld [vmem:[%s1 + $0x50] sm:$0xff]
  %v52 = vld [vmem:[%s1 + $0x58] sm:$0xff]
  %v53 = vld [vmem:[%s1 + $0x60] sm:$0xff]
  %v54 = vld [vmem:[%s1 + $0x68] sm:$0xff]
  %v55 = vld [vmem:[%s1 + $0x70] sm:$0xff]
  %v56 = vld [vmem:[%s1 + $0x78] sm:$0xff]
  %v57 = vld [vmem:[%s1 + $0x80] sm:$0xff]
  %v58 = vld [vmem:[%s1 + $0x88] sm:$0xff]
  %v59 = vld [vmem:[%s1 + $0x90] sm:$0xff]
  %v60 = vld [vmem:[%s1 + $0x98] sm:$0xff]
  %v61 = vld [vmem:[%s1 + $0xa0] sm:$0xff]
  %v62 = vld [vmem:[%s1 + $0xa8] sm:$0xff]
  %v63 = vld [vmem:[%s1 + $0xb0] sm:$0xff]
  %v64 = vld [vmem:[%s1 + $0xb8] sm:$0xff]
  %v65 = vld [vmem:[%s1 + $0xc0] sm:$0xff]
  %v66 = vld [vmem:[%s1 + $0xc8] sm:$0xff]
  %v67 = vld [vmem:[%s1 + $0xd0] sm:$0xff]
  %v68 = vld [vmem:[%s1 + $0xd8] sm:$0xff]
  %v69 = vld [vmem:[%s1 + $0xe0] sm:$0xff]
  %v70 = vld [vmem:[%s1 + $0xe8] sm:$0xff]
  %v71 = vld [vmem:[%s1 + $0xf0] sm:$0xff]
  %v72 = vld [vmem:[%s1 + $0xf8] sm:$0xff]
  %v73 = vld [vmem:[%s1 + $0x100] sm:$0xff]
  %v74 = vld [vmem:[%s1 + $0x108] sm:$0xff]
  %v75 = vld [vmem:[%s1 + $0x110] sm:$0xff]
  %v76 = vld [vmem:[%s1 + $0x118] sm:$0xff]
  %v77 = vld [vmem:[%s1 + $0x120] sm:$0xff]
  %v78 = vld [vmem:[%s1 + $0x128] sm:$0xff]
  %v79 = vld [vmem:[%s1 + $0x130] sm:$0xff]
  %v80 = vld [vmem:[%s1 + $0x138] sm:$0xff]
  %v81 = vld [vmem:[%s1 + $0x140] sm:$0xff]
  %v82 = vld [vmem:[%s1 + $0x148] sm:$0xff]
  %v83 = vld [vmem:[%s1 + $0x150] sm:$0xff]
  %v84 = vld [vmem:[%s1 + $0x158] sm:$0xff]
  %v85 = vld [vmem:[%s1 + $0x160] sm:$0xff]
  %v86 = vld [vmem:[%s1 + $0x168] sm:$0xff]
  %v87 = vld [vmem:[%s1 + $0x170] sm:$0xff]
  %v88 = vld [vmem:[%s1 + $0x178] sm:$0xff]
  %v89 = vld [vmem:[%s1 + $0x180] sm:$0xff]
  %v90 = vld [vmem:[%s1 + $0x188] sm:$0xff]
  %v91 = vld [vmem:[%s1 + $0x190] sm:$0xff]
  %v92 = vld [vmem:[%s1 + $0x198] sm:$0xff]
  %v93 = vld [vmem:[%s1 + $0x1a0] sm:$0xff]
  %v94 = vld [vmem:[%s1 + $0x1a8] sm:$0xff]
  %v95 = vld [vmem:[%s1 + $0x1b0] sm:$0xff]
  %v96 = vld [vmem:[%s1 + $0x1b8] sm:$0xff]
  %v97 = vld [vmem:[%s1 + $0x1c0] sm:$0xff]
  %v98 = vld [vmem:[%s1 + $0x1c8] sm:$0xff]
  %v99 = vld [vmem:[%s1 + $0x1d0] sm:$0xff]
  %v100 = vld [vmem:[%s1 + $0x1d8] sm:$0xff]
  %v101 = vld [vmem:[%s0] sm:$0xff]
  %v102 = vld [vmem:[%s0 + $0x8] sm:$0xff]
  %v103 = vld [vmem:[%s0 + $0x10] sm:$0xff]
  %v104 = vld [vmem:[%s0 + $0x18] sm:$0xff]
  %v105 = vld [vmem:[%s0 + $0x20] sm:$0xff]
  %v106 = vld [vmem:[%s0 + $0x28] sm:$0xff]
  %v107 = vld [vmem:[%s0 + $0x30] sm:$0xff]
  %v108 = vld [vmem:[%s0 + $0x38] sm:$0xff]
  %v109 = vld [vmem:[%s0 + $0x40] sm:$0xff]
  %v110 = vld [vmem:[%s0 + $0x48] sm:$0xff]
  %v111 = vld [vmem:[%s0 + $0x50] sm:$0xff]
  %v112 = vld [vmem:[%s0 + $0x58] sm:$0xff]
  %v113 = vld [vmem:[%s0 + $0x60] sm:$0xff]
  %v114 = vld [vmem:[%s0 + $0x68] sm:$0xf]
  %v115 = vld [vmem:[%s2] sm:$0xff]
  %v116 = vld [vmem:[%s2 + $0x8] sm:$0xff]
  %v117 = vld [vmem:[%s2 + $0x10] sm:$0xff]
  %v118 = vld [vmem:[%s2 + $0x18] sm:$0xff]
  %v119 = vld [vmem:[%s2 + $0x20] sm:$0xff]
  %v120 = vld [vmem:[%s2 + $0x28] sm:$0xff]
  %v121 = vld [vmem:[%s2 + $0x30] sm:$0xff]
  %v122 = vld [vmem:[%s2 + $0x38] sm:$0xff]
  %v123 = vld [vmem:[%s2 + $0x40] sm:$0xff]
  %v124 = vld [vmem:[%s2 + $0x48] sm:$0xff]
  %v125 = vld [vmem:[%s2 + $0x50] sm:$0xff]
  %v126 = vld [vmem:[%s2 + $0x58] sm:$0xff]
  %v127 = vld [vmem:[%s2 + $0x60] sm:$0xff]
  %v128 = vld [vmem:[%s2 + $0x68] sm:$0xff]
  %v129 = vld [vmem:[%s2 + $0x70] sm:$0xff]
  %v130 = vld [vmem:[%s2 + $0x78] sm:$0xff]
  %v131 = vld [vmem:[%s2 + $0x80] sm:$0xff]
  %v132 = vld [vmem:[%s2 + $0x88] sm:$0xff]
  %v133 = vld [vmem:[%s2 + $0x90] sm:$0xff]
  %v134 = vld [vmem:[%s2 + $0x98] sm:$0xff]
  %v135 = vld [vmem:[%s2 + $0xa0] sm:$0xff]
  %v136 = vld [vmem:[%s2 + $0xa8] sm:$0xff]
  %v137 = vld [vmem:[%s2 + $0xb0] sm:$0xff]
  %v138 = vld [vmem:[%s2 + $0xb8] sm:$0xff]
  %v139 = vld [vmem:[%s2 + $0xc0] sm:$0xff]
  %v140 = vld [vmem:[%s2 + $0xc8] sm:$0xff]
  %v141 = vld [vmem:[%s2 + $0xd0] sm:$0xff]
  %v142 = vld [vmem:[%s2 + $0xd8] sm:$0xff]
  %v143 = vld [vmem:[%s2 + $0xe0] sm:$0xff]
  %v144 = vld [vmem:[%s2 + $0xe8] sm:$0xff]
  %v145 = vld [vmem:[%s2 + $0xf0] sm:$0xff]
  %v146 = vld [vmem:[%s2 + $0xf8] sm:$0xff]
  %v147 = vld [vmem:[%s2 + $0x100] sm:$0xff]
  %v148 = vld [vmem:[%s2 + $0x108] sm:$0xff]
  %v149 = vld [vmem:[%s2 + $0x110] sm:$0xff]
  %v150 = vld [vmem:[%s2 + $0x118] sm:$0xff]
  %v151 = vld [vmem:[%s2 + $0x120] sm:$0xff]
  %v152 = vld [vmem:[%s2 + $0x128] sm:$0xff]
  %v153 = vld [vmem:[%s2 + $0x130] sm:$0xff]
  %v154 = vld [vmem:[%s2 + $0x138] sm:$0xff]
  %v155 = vld [vmem:[%s2 + $0x140] sm:$0xff]
  %v156 = vld [vmem:[%s2 + $0x148] sm:$0xff]
  %v157 = vld [vmem:[%s2 + $0x150] sm:$0xff]
  %v158 = vld [vmem:[%s2 + $0x158] sm:$0xff]
  %v159 = vld [vmem:[%s2 + $0x160] sm:$0xff]
  %v160 = vld [vmem:[%s2 + $0x168] sm:$0xff]
  %v161 = vld [vmem:[%s2 + $0x170] sm:$0xff]
  %v162 = vld [vmem:[%s2 + $0x178] sm:$0xff]
  %v163 = vld [vmem:[%s2 + $0x180] sm:$0xff]
  %v164 = vld [vmem:[%s2 + $0x188] sm:$0xff]
  %v165 = vld [vmem:[%s2 + $0x190] sm:$0xff]
  %v166 = vld [vmem:[%s2 + $0x198] sm:$0xff]
  %v167 = vld [vmem:[%s2 + $0x1a0] sm:$0xff]
  %v168 = vld [vmem:[%s2 + $0x1a8] sm:$0xff]
  %v169 = vld [vmem:[%s2 + $0x1b0] sm:$0xff]
  %v170 = vld [vmem:[%s2 + $0x1b8] sm:$0xff]
  %v171 = vld [vmem:[%s2 + $0x1c0] sm:$0xff]
  %v172 = vld [vmem:[%s2 + $0x1c8] sm:$0xff]
  %v173 = vld [vmem:[%s2 + $0x1d0] sm:$0xff]
  %v174 = vld [vmem:[%s2 + $0x1d8] sm:$0xff]
  %vm175 = vcmask 883712
  %v177 = vsel %vm175, %v41, 0
  %v180 = vsel %vm175, %v42, 0
  %v183 = vsel %vm175, %v43, 0
  %v186 = vsel %vm175, %v44, 0
  %v189 = vsel %vm175, %v45, 0
  %v192 = vsel %vm175, %v46, 0
  %v195 = vsel %vm175, %v47, 0
  %v198 = vsel %vm175, %v48, 0
  %v201 = vsel %vm175, %v49, 0
  %v204 = vsel %vm175, %v50, 0
  %v207 = vsel %vm175, %v51, 0
  %v210 = vsel %vm175, %v52, 0
  %v213 = vsel %vm175, %v53, 0
  %v216 = vsel %vm175, %v54, 0
  %v219 = vsel %vm175, %v55, 0
  %v222 = vsel %vm175, %v56, 0
  %v225 = vsel %vm175, %v57, 0
  %v228 = vsel %vm175, %v58, 0
  %v231 = vsel %vm175, %v59, 0
  %v234 = vsel %vm175, %v60, 0
  %v237 = vsel %vm175, %v61, 0
  %v240 = vsel %vm175, %v62, 0
  %v243 = vsel %vm175, %v63, 0
  %v246 = vsel %vm175, %v64, 0
  %v249 = vsel %vm175, %v65, 0
  %v252 = vsel %vm175, %v66, 0
  %v255 = vsel %vm175, %v67, 0
  %v258 = vsel %vm175, %v68, 0
  %v261 = vsel %vm175, %v69, 0
  %v264 = vsel %vm175, %v70, 0
  %v267 = vsel %vm175, %v71, 0
  %v270 = vsel %vm175, %v72, 0
  %v273 = vsel %vm175, %v73, 0
  %v276 = vsel %vm175, %v74, 0
  %v279 = vsel %vm175, %v75, 0
  %v282 = vsel %vm175, %v76, 0
  %v285 = vsel %vm175, %v77, 0
  %v288 = vsel %vm175, %v78, 0
  %v291 = vsel %vm175, %v79, 0
  %v294 = vsel %vm175, %v80, 0
  %v297 = vsel %vm175, %v81, 0
  %v300 = vsel %vm175, %v82, 0
  %v303 = vsel %vm175, %v83, 0
  %v306 = vsel %vm175, %v84, 0
  %v309 = vsel %vm175, %v85, 0
  %v312 = vsel %vm175, %v86, 0
  %v315 = vsel %vm175, %v87, 0
  %v318 = vsel %vm175, %v88, 0
  %v321 = vsel %vm175, %v89, 0
  %v324 = vsel %vm175, %v90, 0
  %v327 = vsel %vm175, %v91, 0
  %v330 = vsel %vm175, %v92, 0
  %v333 = vsel %vm175, %v93, 0
  %v336 = vsel %vm175, %v94, 0
  %v339 = vsel %vm175, %v95, 0
  %v342 = vsel %vm175, %v96, 0
  %v345 = vsel %vm175, %v97, 0
  %v348 = vsel %vm175, %v98, 0
  %v351 = vsel %vm175, %v99, 0
  %v354 = vsel %vm175, %v100, 0
  %vm356 = vcmask 1043456
  %v358 = vsel %vm356, %v114, 0
  %360 = vmatprep.subr.mxu0 0.0
  %361 = vmatpush1.msra.mxu0 %v101
  %362 = vmatprep.subr.mxu0 0.0
  %363 = vmatpush1.msra.mxu0 %v102
  %364 = vmatprep.subr.mxu0 0.0
  %365 = vmatpush1.msra.mxu0 %v103
  %366 = vmatprep.subr.mxu0 0.0
  %367 = vmatpush1.msra.mxu0 %v104
  %368 = vmatprep.subr.mxu0 0.0
  %369 = vmatpush1.msra.mxu0 %v105
  %370 = vmatprep.subr.mxu0 0.0
  %371 = vmatpush1.msra.mxu0 %v106
  %372 = vmatprep.subr.mxu0 0.0
  %373 = vmatpush1.msra.mxu0 %v107
  %374 = vmatprep.subr.mxu0 0.0
  %375 = vmatpush1.msra.mxu0 %v108
  %376 = vmatprep.subr.mxu0 0.0
  %377 = vmatpush1.msra.mxu0 %v109
  %378 = vmatprep.subr.mxu0 0.0
  %379 = vmatpush1.msra.mxu0 %v110
  %380 = vmatprep.subr.mxu0 0.0
  %381 = vmatpush1.msra.mxu0 %v111
  %382 = vmatprep.subr.mxu0 0.0
  %383 = vmatpush1.msra.mxu0 %v112
  %384 = vmatprep.subr.mxu0 0.0
  %385 = vmatpush1.msra.mxu0 %v113
  %386 = vmatprep.subr.mxu0 0.0
  %387 = vmatpush1.msra.mxu0 %v358
  %388 = vmatprep.subr.mxu0 0.0
  %389 = vmatpush1.msra.mxu0 0.0
  %390 = vmatprep.subr.mxu0 0.0
  %391 = vmatpush1.msra.mxu0 0.0
  %392 = vmatprep.subr.mxu0 0.0
  %393 = vmatpush1.msra.mxu0 0.0
  %394 = vmatprep.subr.mxu0 0.0
  %395 = vmatpush1.msra.mxu0 0.0
  %396 = vmatprep.subr.mxu0 0.0
  %397 = vmatpush1.msra.mxu0 0.0
  %398 = vmatprep.subr.mxu0 0.0
  %399 = vmatpush1.msra.mxu0 0.0
  %400 = vmatprep.subr.mxu0 0.0
  %401 = vmatpush1.msra.mxu0 0.0
  %402 = vmatprep.subr.mxu0 0.0
  %403 = vmatpush1.msra.mxu0 0.0
  %404 = vmatprep.subr.mxu0 0.0
  %405 = vmatpush1.msra.mxu0 0.0
  %406 = vmatprep.subr.mxu0 0.0
  %407 = vmatpush1.msra.mxu0 0.0
  %408 = vmatprep.subr.mxu0 0.0
  %409 = vmatpush1.msra.mxu0 0.0
  %410 = vmatprep.subr.mxu0 0.0
  %411 = vmatpush1.msra.mxu0 0.0
  %412 = vmatprep.subr.mxu0 0.0
  %413 = vmatpush1.msra.mxu0 0.0
  %414 = vmatprep.subr.mxu0 0.0
  %415 = vmatpush1.msra.mxu0 0.0
  %416 = vmatprep.subr.mxu0 0.0
  %417 = vmatpush1.msra.mxu0 0.0
  %418 = vmatprep.subr.mxu0 0.0
  %419 = vmatpush1.msra.mxu0 0.0
  %420 = vmatprep.subr.mxu0 0.0
  %421 = vmatpush1.msra.mxu0 0.0
  %422 = vmatprep.subr.mxu0 0.0
  %423 = vmatpush1.msra.mxu0 0.0
  %424 = vmatprep.mubr.f32.mxu0 0.0
  %425 = vmatmul.mubr.f32.gmra.mrb[0].mxu0 %v177
  %v426 = vpop.f32.mrb[0].mxu0
  %v427 = vadd.f32 %v115, %v426
  %v428 = vpop.f32.mrb[0].mxu0
  %429 = vmatprep.mubr.f32.mxu0 0.0
  %430 = vmatmul.mubr.f32.gmra.mrb[0].mxu0 %v180
  %v431 = vpop.f32.mrb[0].mxu0
  %v432 = vadd.f32 %v116, %v431
  %v433 = vpop.f32.mrb[0].mxu0
  %434 = vmatprep.mubr.f32.mxu0 0.0
  %435 = vmatmul.mubr.f32.gmra.mrb[0].mxu0 %v183
  %v436 = vpop.f32.mrb[0].mxu0
  %v437 = vadd.f32 %v117, %v436
  %v438 = vpop.f32.mrb[0].mxu0
  %439 = vmatprep.mubr.f32.mxu0 0.0
  %440 = vmatmul.mubr.f32.gmra.mrb[0].mxu0 %v186
  %v441 = vpop.f32.mrb[0].mxu0
  %v442 = vadd.f32 %v118, %v441
  %v443 = vpop.f32.mrb[0].mxu0
  %444 = vmatprep.mubr.f32.mxu0 0.0
  %445 = vmatmul.mubr.f32.gmra.mrb[0].mxu0 %v189
  %v446 = vpop.f32.mrb[0].mxu0
  %v447 = vadd.f32 %v119, %v446
  %v448 = vpop.f32.mrb[0].mxu0
  %449 = vmatprep.mubr.f32.mxu0 0.0
  %450 = vmatmul.mubr.f32.gmra.mrb[0].mxu0 %v192
  %v451 = vpop.f32.mrb[0].mxu0
  %v452 = vadd.f32 %v120, %v451
  %v453 = vpop.f32.mrb[0].mxu0
  %454 = vmatprep.mubr.f32.mxu0 0.0
  %455 = vmatmul.mubr.f32.gmra.mrb[0].mxu0 %v195
  %v456 = vpop.f32.mrb[0].mxu0
  %v457 = vadd.f32 %v121, %v456
  %v458 = vpop.f32.mrb[0].mxu0
  %459 = vmatprep.mubr.f32.mxu0 0.0
  %460 = vmatmul.mubr.f32.gmra.mrb[0].mxu0 %v198
  %v461 = vpop.f32.mrb[0].mxu0
  %v462 = vadd.f32 %v122, %v461
  %v463 = vpop.f32.mrb[0].mxu0
  %464 = vmatprep.mubr.f32.mxu0 0.0
  %465 = vmatmul.mubr.f32.gmra.mrb[0].mxu0 %v201
  %v466 = vpop.f32.mrb[0].mxu0
  %v467 = vadd.f32 %v123, %v466
  %v468 = vpop.f32.mrb[0].mxu0
  %469 = vmatprep.mubr.f32.mxu0 0.0
  %470 = vmatmul.mubr.f32.gmra.mrb[0].mxu0 %v204
  %v471 = vpop.f32.mrb[0].mxu0
  %v472 = vadd.f32 %v124, %v471
  %v473 = vpop.f32.mrb[0].mxu0
  %474 = vmatprep.mubr.f32.mxu0 0.0
  %475 = vmatmul.mubr.f32.gmra.mrb[0].mxu0 %v207
  %v476 = vpop.f32.mrb[0].mxu0
  %v477 = vadd.f32 %v125, %v476
  %v478 = vpop.f32.mrb[0].mxu0
  %479 = vmatprep.mubr.f32.mxu0 0.0
  %480 = vmatmul.mubr.f32.gmra.mrb[0].mxu0 %v210
  %v481 = vpop.f32.mrb[0].mxu0
  %v482 = vadd.f32 %v126, %v481
  %v483 = vpop.f32.mrb[0].mxu0
  %484 = vmatprep.mubr.f32.mxu0 0.0
  %485 = vmatmul.mubr.f32.gmra.mrb[0].mxu0 %v213
  %v486 = vpop.f32.mrb[0].mxu0
  %v487 = vadd.f32 %v127, %v486
  %v488 = vpop.f32.mrb[0].mxu0
  %489 = vmatprep.mubr.f32.mxu0 0.0
  %490 = vmatmul.mubr.f32.gmra.mrb[0].mxu0 %v216
  %v491 = vpop.f32.mrb[0].mxu0
  %v492 = vadd.f32 %v128, %v491
  %v493 = vpop.f32.mrb[0].mxu0
  %494 = vmatprep.mubr.f32.mxu0 0.0
  %495 = vmatmul.mubr.f32.gmra.mrb[0].mxu0 %v219
  %v496 = vpop.f32.mrb[0].mxu0
  %v497 = vadd.f32 %v129, %v496
  %v498 = vpop.f32.mrb[0].mxu0
  %499 = vmatprep.mubr.f32.mxu0 0.0
  %500 = vmatmul.mubr.f32.gmra.mrb[0].mxu0 %v222
  %v501 = vpop.f32.mrb[0].mxu0
  %v502 = vadd.f32 %v130, %v501
  %v503 = vpop.f32.mrb[0].mxu0
  %504 = vmatprep.mubr.f32.mxu0 0.0
  %505 = vmatmul.mubr.f32.gmra.mrb[0].mxu0 %v225
  %v506 = vpop.f32.mrb[0].mxu0
  %v507 = vadd.f32 %v131, %v506
  %v508 = vpop.f32.mrb[0].mxu0
  %509 = vmatprep.mubr.f32.mxu0 0.0
  %510 = vmatmul.mubr.f32.gmra.mrb[0].mxu0 %v228
  %v511 = vpop.f32.mrb[0].mxu0
  %v512 = vadd.f32 %v132, %v511
  %v513 = vpop.f32.mrb[0].mxu0
  %514 = vmatprep.mubr.f32.mxu0 0.0
  %515 = vmatmul.mubr.f32.gmra.mrb[0].mxu0 %v231
  %v516 = vpop.f32.mrb[0].mxu0
  %v517 = vadd.f32 %v133, %v516
  %v518 = vpop.f32.mrb[0].mxu0
  %519 = vmatprep.mubr.f32.mxu0 0.0
  %520 = vmatmul.mubr.f32.gmra.mrb[0].mxu0 %v234
  %v521 = vpop.f32.mrb[0].mxu0
  %v522 = vadd.f32 %v134, %v521
  %v523 = vpop.f32.mrb[0].mxu0
  %524 = vmatprep.mubr.f32.mxu0 0.0
  %525 = vmatmul.mubr.f32.gmra.mrb[0].mxu0 %v237
  %v526 = vpop.f32.mrb[0].mxu0
  %v527 = vadd.f32 %v135, %v526
  %v528 = vpop.f32.mrb[0].mxu0
  %529 = vmatprep.mubr.f32.mxu0 0.0
  %530 = vmatmul.mubr.f32.gmra.mrb[0].mxu0 %v240
  %v531 = vpop.f32.mrb[0].mxu0
  %v532 = vadd.f32 %v136, %v531
  %v533 = vpop.f32.mrb[0].mxu0
  %534 = vmatprep.mubr.f32.mxu0 0.0
  %535 = vmatmul.mubr.f32.gmra.mrb[0].mxu0 %v243
  %v536 = vpop.f32.mrb[0].mxu0
  %v537 = vadd.f32 %v137, %v536
  %v538 = vpop.f32.mrb[0].mxu0
  %539 = vmatprep.mubr.f32.mxu0 0.0
  %540 = vmatmul.mubr.f32.gmra.mrb[0].mxu0 %v246
  %v541 = vpop.f32.mrb[0].mxu0
  %v542 = vadd.f32 %v138, %v541
  %v543 = vpop.f32.mrb[0].mxu0
  %544 = vmatprep.mubr.f32.mxu0 0.0
  %545 = vmatmul.mubr.f32.gmra.mrb[0].mxu0 %v249
  %v546 = vpop.f32.mrb[0].mxu0
  %v547 = vadd.f32 %v139, %v546
  %v548 = vpop.f32.mrb[0].mxu0
  %549 = vmatprep.mubr.f32.mxu0 0.0
  %550 = vmatmul.mubr.f32.gmra.mrb[0].mxu0 %v252
  %v551 = vpop.f32.mrb[0].mxu0
  %v552 = vadd.f32 %v140, %v551
  %v553 = vpop.f32.mrb[0].mxu0
  %554 = vmatprep.mubr.f32.mxu0 0.0
  %555 = vmatmul.mubr.f32.gmra.mrb[0].mxu0 %v255
  %v556 = vpop.f32.mrb[0].mxu0
  %v557 = vadd.f32 %v141, %v556
  %v558 = vpop.f32.mrb[0].mxu0
  %559 = vmatprep.mubr.f32.mxu0 0.0
  %560 = vmatmul.mubr.f32.gmra.mrb[0].mxu0 %v258
  %v561 = vpop.f32.mrb[0].mxu0
  %v562 = vadd.f32 %v142, %v561
  %v563 = vpop.f32.mrb[0].mxu0
  %564 = vmatprep.mubr.f32.mxu0 0.0
  %565 = vmatmul.mubr.f32.gmra.mrb[0].mxu0 %v261
  %v566 = vpop.f32.mrb[0].mxu0
  %v567 = vadd.f32 %v143, %v566
  %v568 = vpop.f32.mrb[0].mxu0
  %569 = vmatprep.mubr.f32.mxu0 0.0
  %570 = vmatmul.mubr.f32.gmra.mrb[0].mxu0 %v264
  %v571 = vpop.f32.mrb[0].mxu0
  %v572 = vadd.f32 %v144, %v571
  %v573 = vpop.f32.mrb[0].mxu0
  %574 = vmatprep.mubr.f32.mxu0 0.0
  %575 = vmatmul.mubr.f32.gmra.mrb[0].mxu0 %v267
  %v576 = vpop.f32.mrb[0].mxu0
  %v577 = vadd.f32 %v145, %v576
  %v578 = vpop.f32.mrb[0].mxu0
  %579 = vmatprep.mubr.f32.mxu0 0.0
  %580 = vmatmul.mubr.f32.gmra.mrb[0].mxu0 %v270
  %v581 = vpop.f32.mrb[0].mxu0
  %v582 = vadd.f32 %v146, %v581
  %v583 = vpop.f32.mrb[0].mxu0
  %584 = vmatprep.mubr.f32.mxu0 0.0
  %585 = vmatmul.mubr.f32.gmra.mrb[0].mxu0 %v273
  %v586 = vpop.f32.mrb[0].mxu0
  %v587 = vadd.f32 %v147, %v586
  %v588 = vpop.f32.mrb[0].mxu0
  %589 = vmatprep.mubr.f32.mxu0 0.0
  %590 = vmatmul.mubr.f32.gmra.mrb[0].mxu0 %v276
  %v591 = vpop.f32.mrb[0].mxu0
  %v592 = vadd.f32 %v148, %v591
  %v593 = vpop.f32.mrb[0].mxu0
  %594 = vmatprep.mubr.f32.mxu0 0.0
  %595 = vmatmul.mubr.f32.gmra.mrb[0].mxu0 %v279
  %v596 = vpop.f32.mrb[0].mxu0
  %v597 = vadd.f32 %v149, %v596
  %v598 = vpop.f32.mrb[0].mxu0
  %599 = vmatprep.mubr.f32.mxu0 0.0
  %600 = vmatmul.mubr.f32.gmra.mrb[0].mxu0 %v282
  %v601 = vpop.f32.mrb[0].mxu0
  %v602 = vadd.f32 %v150, %v601
  %v603 = vpop.f32.mrb[0].mxu0
  %604 = vmatprep.mubr.f32.mxu0 0.0
  %605 = vmatmul.mubr.f32.gmra.mrb[0].mxu0 %v285
  %v606 = vpop.f32.mrb[0].mxu0
  %v607 = vadd.f32 %v151, %v606
  %v608 = vpop.f32.mrb[0].mxu0
  %609 = vmatprep.mubr.f32.mxu0 0.0
  %610 = vmatmul.mubr.f32.gmra.mrb[0].mxu0 %v288
  %v611 = vpop.f32.mrb[0].mxu0
  %v612 = vadd.f32 %v152, %v611
  %v613 = vpop.f32.mrb[0].mxu0
  %614 = vmatprep.mubr.f32.mxu0 0.0
  %615 = vmatmul.mubr.f32.gmra.mrb[0].mxu0 %v291
  %v616 = vpop.f32.mrb[0].mxu0
  %v617 = vadd.f32 %v153, %v616
  %v618 = vpop.f32.mrb[0].mxu0
  %619 = vmatprep.mubr.f32.mxu0 0.0
  %620 = vmatmul.mubr.f32.gmra.mrb[0].mxu0 %v294
  %v621 = vpop.f32.mrb[0].mxu0
  %v622 = vadd.f32 %v154, %v621
  %v623 = vpop.f32.mrb[0].mxu0
  %624 = vmatprep.mubr.f32.mxu0 0.0
  %625 = vmatmul.mubr.f32.gmra.mrb[0].mxu0 %v297
  %v626 = vpop.f32.mrb[0].mxu0
  %v627 = vadd.f32 %v155, %v626
  %v628 = vpop.f32.mrb[0].mxu0
  %629 = vmatprep.mubr.f32.mxu0 0.0
  %630 = vmatmul.mubr.f32.gmra.mrb[0].mxu0 %v300
  %v631 = vpop.f32.mrb[0].mxu0
  %v632 = vadd.f32 %v156, %v631
  %v633 = vpop.f32.mrb[0].mxu0
  %634 = vmatprep.mubr.f32.mxu0 0.0
  %635 = vmatmul.mubr.f32.gmra.mrb[0].mxu0 %v303
  %v636 = vpop.f32.mrb[0].mxu0
  %v637 = vadd.f32 %v157, %v636
  %v638 = vpop.f32.mrb[0].mxu0
  %639 = vmatprep.mubr.f32.mxu0 0.0
  %640 = vmatmul.mubr.f32.gmra.mrb[0].mxu0 %v306
  %v641 = vpop.f32.mrb[0].mxu0
  %v642 = vadd.f32 %v158, %v641
  %v643 = vpop.f32.mrb[0].mxu0
  %644 = vmatprep.mubr.f32.mxu0 0.0
  %645 = vmatmul.mubr.f32.gmra.mrb[0].mxu0 %v309
  %v646 = vpop.f32.mrb[0].mxu0
  %v647 = vadd.f32 %v159, %v646
  %v648 = vpop.f32.mrb[0].mxu0
  %649 = vmatprep.mubr.f32.mxu0 0.0
  %650 = vmatmul.mubr.f32.gmra.mrb[0].mxu0 %v312
  %v651 = vpop.f32.mrb[0].mxu0
  %v652 = vadd.f32 %v160, %v651
  %v653 = vpop.f32.mrb[0].mxu0
  %654 = vmatprep.mubr.f32.mxu0 0.0
  %655 = vmatmul.mubr.f32.gmra.mrb[0].mxu0 %v315
  %v656 = vpop.f32.mrb[0].mxu0
  %v657 = vadd.f32 %v161, %v656
  %v658 = vpop.f32.mrb[0].mxu0
  %659 = vmatprep.mubr.f32.mxu0 0.0
  %660 = vmatmul.mubr.f32.gmra.mrb[0].mxu0 %v318
  %v661 = vpop.f32.mrb[0].mxu0
  %v662 = vadd.f32 %v162, %v661
  %v663 = vpop.f32.mrb[0].mxu0
  %664 = vmatprep.mubr.f32.mxu0 0.0
  %665 = vmatmul.mubr.f32.gmra.mrb[0].mxu0 %v321
  %v666 = vpop.f32.mrb[0].mxu0
  %v667 = vadd.f32 %v163, %v666
  %v668 = vpop.f32.mrb[0].mxu0
  %669 = vmatprep.mubr.f32.mxu0 0.0
  %670 = vmatmul.mubr.f32.gmra.mrb[0].mxu0 %v324
  %v671 = vpop.f32.mrb[0].mxu0
  %v672 = vadd.f32 %v164, %v671
  %v673 = vpop.f32.mrb[0].mxu0
  %674 = vmatprep.mubr.f32.mxu0 0.0
  %675 = vmatmul.mubr.f32.gmra.mrb[0].mxu0 %v327
  %v676 = vpop.f32.mrb[0].mxu0
  %v677 = vadd.f32 %v165, %v676
  %v678 = vpop.f32.mrb[0].mxu0
  %679 = vmatprep.mubr.f32.mxu0 0.0
  %680 = vmatmul.mubr.f32.gmra.mrb[0].mxu0 %v330
  %v681 = vpop.f32.mrb[0].mxu0
  %v682 = vadd.f32 %v166, %v681
  %v683 = vpop.f32.mrb[0].mxu0
  %684 = vmatprep.mubr.f32.mxu0 0.0
  %685 = vmatmul.mubr.f32.gmra.mrb[0].mxu0 %v333
  %v686 = vpop.f32.mrb[0].mxu0
  %v687 = vadd.f32 %v167, %v686
  %v688 = vpop.f32.mrb[0].mxu0
  %689 = vmatprep.mubr.f32.mxu0 0.0
  %690 = vmatmul.mubr.f32.gmra.mrb[0].mxu0 %v336
  %v691 = vpop.f32.mrb[0].mxu0
  %v692 = vadd.f32 %v168, %v691
  %v693 = vpop.f32.mrb[0].mxu0
  %694 = vmatprep.mubr.f32.mxu0 0.0
  %695 = vmatmul.mubr.f32.gmra.mrb[0].mxu0 %v339
  %v696 = vpop.f32.mrb[0].mxu0
  %v697 = vadd.f32 %v169, %v696
  %v698 = vpop.f32.mrb[0].mxu0
  %699 = vmatprep.mubr.f32.mxu0 0.0
  %700 = vmatmul.mubr.f32.gmra.mrb[0].mxu0 %v342
  %v701 = vpop.f32.mrb[0].mxu0
  %v702 = vadd.f32 %v170, %v701
  %v703 = vpop.f32.mrb[0].mxu0
  %704 = vmatprep.mubr.f32.mxu0 0.0
  %705 = vmatmul.mubr.f32.gmra.mrb[0].mxu0 %v345
  %v706 = vpop.f32.mrb[0].mxu0
  %v707 = vadd.f32 %v171, %v706
  %v708 = vpop.f32.mrb[0].mxu0
  %709 = vmatprep.mubr.f32.mxu0 0.0
  %710 = vmatmul.mubr.f32.gmra.mrb[0].mxu0 %v348
  %v711 = vpop.f32.mrb[0].mxu0
  %v712 = vadd.f32 %v172, %v711
  %v713 = vpop.f32.mrb[0].mxu0
  %714 = vmatprep.mubr.f32.mxu0 0.0
  %715 = vmatmul.mubr.f32.gmra.mrb[0].mxu0 %v351
  %v716 = vpop.f32.mrb[0].mxu0
  %v717 = vadd.f32 %v173, %v716
  %v718 = vpop.f32.mrb[0].mxu0
  %719 = vmatprep.mubr.f32.mxu0 0.0
  %720 = vmatmul.mubr.f32.gmra.mrb[0].mxu0 %v354
  %v721 = vpop.f32.mrb[0].mxu0
  %v722 = vadd.f32 %v174, %v721
  %v723 = vpop.f32.mrb[0].mxu0
  %724 = vdwg.mxu0
  %v725 = vmax.f32 %v427, 0.0
  %v726 = vmax.f32 %v432, 0.0
  %v727 = vmax.f32 %v437, 0.0
  %v728 = vmax.f32 %v442, 0.0
  %v729 = vmax.f32 %v447, 0.0
  %v730 = vmax.f32 %v452, 0.0
  %v731 = vmax.f32 %v457, 0.0
  %v732 = vmax.f32 %v462, 0.0
  %v733 = vmax.f32 %v467, 0.0
  %v734 = vmax.f32 %v472, 0.0
  %v735 = vmax.f32 %v477, 0.0
  %v736 = vmax.f32 %v482, 0.0
  %v737 = vmax.f32 %v487, 0.0
  %v738 = vmax.f32 %v492, 0.0
  %v739 = vmax.f32 %v497, 0.0
  %v740 = vmax.f32 %v502, 0.0
  %v741 = vmax.f32 %v507, 0.0
  %v742 = vmax.f32 %v512, 0.0
  %v743 = vmax.f32 %v517, 0.0
  %v744 = vmax.f32 %v522, 0.0
  %v745 = vmax.f32 %v527, 0.0
  %v746 = vmax.f32 %v532, 0.0
  %v747 = vmax.f32 %v537, 0.0
  %v748 = vmax.f32 %v542, 0.0
  %v749 = vmax.f32 %v547, 0.0
  %v750 = vmax.f32 %v552, 0.0
  %v751 = vmax.f32 %v557, 0.0
  %v752 = vmax.f32 %v562, 0.0
  %v753 = vmax.f32 %v567, 0.0
  %v754 = vmax.f32 %v572, 0.0
  %v755 = vmax.f32 %v577, 0.0
  %v756 = vmax.f32 %v582, 0.0
  %v757 = vmax.f32 %v587, 0.0
  %v758 = vmax.f32 %v592, 0.0
  %v759 = vmax.f32 %v597, 0.0
  %v760 = vmax.f32 %v602, 0.0
  %v761 = vmax.f32 %v607, 0.0
  %v762 = vmax.f32 %v612, 0.0
  %v763 = vmax.f32 %v617, 0.0
  %v764 = vmax.f32 %v622, 0.0
  %v765 = vmax.f32 %v627, 0.0
  %v766 = vmax.f32 %v632, 0.0
  %v767 = vmax.f32 %v637, 0.0
  %v768 = vmax.f32 %v642, 0.0
  %v769 = vmax.f32 %v647, 0.0
  %v770 = vmax.f32 %v652, 0.0
  %v771 = vmax.f32 %v657, 0.0
  %v772 = vmax.f32 %v662, 0.0
  %v773 = vmax.f32 %v667, 0.0
  %v774 = vmax.f32 %v672, 0.0
  %v775 = vmax.f32 %v677, 0.0
  %v776 = vmax.f32 %v682, 0.0
  %v777 = vmax.f32 %v687, 0.0
  %v778 = vmax.f32 %v692, 0.0
  %v779 = vmax.f32 %v697, 0.0
  %v780 = vmax.f32 %v702, 0.0
  %v781 = vmax.f32 %v707, 0.0
  %v782 = vmax.f32 %v712, 0.0
  %v783 = vmax.f32 %v717, 0.0
  %v784 = vmax.f32 %v722, 0.0
  %vm785 = vcmask 7168
  %786 = vst.msk [vmem:[#allocation2] sm:$0xff] %vm785, %v725
  %787 = vst.msk [vmem:[#allocation2 + $0x8] sm:$0xff] %vm785, %v726
  %788 = vst.msk [vmem:[#allocation2 + $0x10] sm:$0xff] %vm785, %v727
  %789 = vst.msk [vmem:[#allocation2 + $0x18] sm:$0xff] %vm785, %v728
  %790 = vst.msk [vmem:[#allocation2 + $0x20] sm:$0xff] %vm785, %v729
  %791 = vst.msk [vmem:[#allocation2 + $0x28] sm:$0xff] %vm785, %v730
  %792 = vst.msk [vmem:[#allocation2 + $0x30] sm:$0xff] %vm785, %v731
  %793 = vst.msk [vmem:[#allocation2 + $0x38] sm:$0xff] %vm785, %v732
  %794 = vst.msk [vmem:[#allocation2 + $0x40] sm:$0xff] %vm785, %v733
  %795 = vst.msk [vmem:[#allocation2 + $0x48] sm:$0xff] %vm785, %v734
  %796 = vst.msk [vmem:[#allocation2 + $0x50] sm:$0xff] %vm785, %v735
  %797 = vst.msk [vmem:[#allocation2 + $0x58] sm:$0xff] %vm785, %v736
  %810 = vrot.lane.b32.xlu0 %v737, 1
  %v811 = vpop.permute.xlu0 %810
  %812 = vrot.lane.b32.xlu0 %v738, 1
  %v813 = vpop.permute.xlu0 %812
  %814 = vrot.lane.b32.xlu0 %v739, 1
  %v815 = vpop.permute.xlu0 %814
  %816 = vrot.lane.b32.xlu0 %v740, 1
  %v817 = vpop.permute.xlu0 %816
  %818 = vrot.lane.b32.xlu0 %v741, 1
  %v819 = vpop.permute.xlu0 %818
  %820 = vrot.lane.b32.xlu0 %v742, 1
  %v821 = vpop.permute.xlu0 %820
  %822 = vrot.lane.b32.xlu0 %v743, 1
  %v823 = vpop.permute.xlu0 %822
  %824 = vrot.lane.b32.xlu0 %v744, 1
  %v825 = vpop.permute.xlu0 %824
  %826 = vrot.lane.b32.xlu0 %v745, 1
  %v827 = vpop.permute.xlu0 %826
  %828 = vrot.lane.b32.xlu0 %v746, 1
  %v829 = vpop.permute.xlu0 %828
  %830 = vrot.lane.b32.xlu0 %v747, 1
  %v831 = vpop.permute.xlu0 %830
  %832 = vrot.lane.b32.xlu0 %v748, 1
  %v833 = vpop.permute.xlu0 %832
  %vm846 = vcmask 15368
  %847 = vst.msk [vmem:[#allocation2] sm:$0xff] %vm846, %v811
  %848 = vst.msk [vmem:[#allocation2 + $0x8] sm:$0xff] %vm846, %v813
  %849 = vst.msk [vmem:[#allocation2 + $0x10] sm:$0xff] %vm846, %v815
  %850 = vst.msk [vmem:[#allocation2 + $0x18] sm:$0xff] %vm846, %v817
  %851 = vst.msk [vmem:[#allocation2 + $0x20] sm:$0xff] %vm846, %v819
  %852 = vst.msk [vmem:[#allocation2 + $0x28] sm:$0xff] %vm846, %v821
  %853 = vst.msk [vmem:[#allocation2 + $0x30] sm:$0xff] %vm846, %v823
  %854 = vst.msk [vmem:[#allocation2 + $0x38] sm:$0xff] %vm846, %v825
  %855 = vst.msk [vmem:[#allocation2 + $0x40] sm:$0xff] %vm846, %v827
  %856 = vst.msk [vmem:[#allocation2 + $0x48] sm:$0xff] %vm846, %v829
  %857 = vst.msk [vmem:[#allocation2 + $0x50] sm:$0xff] %vm846, %v831
  %858 = vst.msk [vmem:[#allocation2 + $0x58] sm:$0xff] %vm846, %v833
  %871 = vrot.lane.b32.xlu0 %v749, 2
  %v872 = vpop.permute.xlu0 %871
  %873 = vrot.lane.b32.xlu0 %v750, 2
  %v874 = vpop.permute.xlu0 %873
  %875 = vrot.lane.b32.xlu0 %v751, 2
  %v876 = vpop.permute.xlu0 %875
  %877 = vrot.lane.b32.xlu0 %v752, 2
  %v878 = vpop.permute.xlu0 %877
  %879 = vrot.lane.b32.xlu0 %v753, 2
  %v880 = vpop.permute.xlu0 %879
  %881 = vrot.lane.b32.xlu0 %v754, 2
  %v882 = vpop.permute.xlu0 %881
  %883 = vrot.lane.b32.xlu0 %v755, 2
  %v884 = vpop.permute.xlu0 %883
  %885 = vrot.lane.b32.xlu0 %v756, 2
  %v886 = vpop.permute.xlu0 %885
  %887 = vrot.lane.b32.xlu0 %v757, 2
  %v888 = vpop.permute.xlu0 %887
  %889 = vrot.lane.b32.xlu0 %v758, 2
  %v890 = vpop.permute.xlu0 %889
  %891 = vrot.lane.b32.xlu0 %v759, 2
  %v892 = vpop.permute.xlu0 %891
  %893 = vrot.lane.b32.xlu0 %v760, 2
  %v894 = vpop.permute.xlu0 %893
  %vm907 = vcmask 23568
  %908 = vst.msk [vmem:[#allocation2] sm:$0xff] %vm907, %v872
  %909 = vst.msk [vmem:[#allocation2 + $0x8] sm:$0xff] %vm907, %v874
  %910 = vst.msk [vmem:[#allocation2 + $0x10] sm:$0xff] %vm907, %v876
  %911 = vst.msk [vmem:[#allocation2 + $0x18] sm:$0xff] %vm907, %v878
  %912 = vst.msk [vmem:[#allocation2 + $0x20] sm:$0xff] %vm907, %v880
  %913 = vst.msk [vmem:[#allocation2 + $0x28] sm:$0xff] %vm907, %v882
  %914 = vst.msk [vmem:[#allocation2 + $0x30] sm:$0xff] %vm907, %v884
  %915 = vst.msk [vmem:[#allocation2 + $0x38] sm:$0xff] %vm907, %v886
  %916 = vst.msk [vmem:[#allocation2 + $0x40] sm:$0xff] %vm907, %v888
  %917 = vst.msk [vmem:[#allocation2 + $0x48] sm:$0xff] %vm907, %v890
  %918 = vst.msk [vmem:[#allocation2 + $0x50] sm:$0xff] %vm907, %v892
  %919 = vst.msk [vmem:[#allocation2 + $0x58] sm:$0xff] %vm907, %v894
  %932 = vrot.lane.b32.xlu0 %v761, 3
  %v933 = vpop.permute.xlu0 %932
  %934 = vrot.lane.b32.xlu0 %v762, 3
  %v935 = vpop.permute.xlu0 %934
  %936 = vrot.lane.b32.xlu0 %v763, 3
  %v937 = vpop.permute.xlu0 %936
  %938 = vrot.lane.b32.xlu0 %v764, 3
  %v939 = vpop.permute.xlu0 %938
  %940 = vrot.lane.b32.xlu0 %v765, 3
  %v941 = vpop.permute.xlu0 %940
  %942 = vrot.lane.b32.xlu0 %v766, 3
  %v943 = vpop.permute.xlu0 %942
  %944 = vrot.lane.b32.xlu0 %v767, 3
  %v945 = vpop.permute.xlu0 %944
  %946 = vrot.lane.b32.xlu0 %v768, 3
  %v947 = vpop.permute.xlu0 %946
  %948 = vrot.lane.b32.xlu0 %v769, 3
  %v949 = vpop.permute.xlu0 %948
  %950 = vrot.lane.b32.xlu0 %v770, 3
  %v951 = vpop.permute.xlu0 %950
  %952 = vrot.lane.b32.xlu0 %v771, 3
  %v953 = vpop.permute.xlu0 %952
  %954 = vrot.lane.b32.xlu0 %v772, 3
  %v955 = vpop.permute.xlu0 %954
  %vm968 = vcmask 31768
  %969 = vst.msk [vmem:[#allocation2] sm:$0xff] %vm968, %v933
  %970 = vst.msk [vmem:[#allocation2 + $0x8] sm:$0xff] %vm968, %v935
  %971 = vst.msk [vmem:[#allocation2 + $0x10] sm:$0xff] %vm968, %v937
  %972 = vst.msk [vmem:[#allocation2 + $0x18] sm:$0xff] %vm968, %v939
  %973 = vst.msk [vmem:[#allocation2 + $0x20] sm:$0xff] %vm968, %v941
  %974 = vst.msk [vmem:[#allocation2 + $0x28] sm:$0xff] %vm968, %v943
  %975 = vst.msk [vmem:[#allocation2 + $0x30] sm:$0xff] %vm968, %v945
  %976 = vst.msk [vmem:[#allocation2 + $0x38] sm:$0xff] %vm968, %v947
  %977 = vst.msk [vmem:[#allocation2 + $0x40] sm:$0xff] %vm968, %v949
  %978 = vst.msk [vmem:[#allocation2 + $0x48] sm:$0xff] %vm968, %v951
  %979 = vst.msk [vmem:[#allocation2 + $0x50] sm:$0xff] %vm968, %v953
  %980 = vst.msk [vmem:[#allocation2 + $0x58] sm:$0xff] %vm968, %v955
  %993 = vrot.lane.b32.xlu0 %v773, 4
  %v994 = vpop.permute.xlu0 %993
  %995 = vrot.lane.b32.xlu0 %v774, 4
  %v996 = vpop.permute.xlu0 %995
  %997 = vrot.lane.b32.xlu0 %v775, 4
  %v998 = vpop.permute.xlu0 %997
  %999 = vrot.lane.b32.xlu0 %v776, 4
  %v1000 = vpop.permute.xlu0 %999
  %1001 = vrot.lane.b32.xlu0 %v777, 4
  %v1002 = vpop.permute.xlu0 %1001
  %1003 = vrot.lane.b32.xlu0 %v778, 4
  %v1004 = vpop.permute.xlu0 %1003
  %1005 = vrot.lane.b32.xlu0 %v779, 4
  %v1006 = vpop.permute.xlu0 %1005
  %1007 = vrot.lane.b32.xlu0 %v780, 4
  %v1008 = vpop.permute.xlu0 %1007
  %1009 = vrot.lane.b32.xlu0 %v781, 4
  %v1010 = vpop.permute.xlu0 %1009
  %1011 = vrot.lane.b32.xlu0 %v782, 4
  %v1012 = vpop.permute.xlu0 %1011
  %1013 = vrot.lane.b32.xlu0 %v783, 4
  %v1014 = vpop.permute.xlu0 %1013
  %1015 = vrot.lane.b32.xlu0 %v784, 4
  %v1016 = vpop.permute.xlu0 %1015
  %vm1029 = vcmask 39968
  %1030 = vst.msk [vmem:[#allocation2] sm:$0xff] %vm1029, %v994
  %1031 = vst.msk [vmem:[#allocation2 + $0x8] sm:$0xff] %vm1029, %v996
  %1032 = vst.msk [vmem:[#allocation2 + $0x10] sm:$0xff] %vm1029, %v998
  %1033 = vst.msk [vmem:[#allocation2 + $0x18] sm:$0xff] %vm1029, %v1000
  %1034 = vst.msk [vmem:[#allocation2 + $0x20] sm:$0xff] %vm1029, %v1002
  %1035 = vst.msk [vmem:[#allocation2 + $0x28] sm:$0xff] %vm1029, %v1004
  %1036 = vst.msk [vmem:[#allocation2 + $0x30] sm:$0xff] %vm1029, %v1006
  %1037 = vst.msk [vmem:[#allocation2 + $0x38] sm:$0xff] %vm1029, %v1008
  %1038 = vst.msk [vmem:[#allocation2 + $0x40] sm:$0xff] %vm1029, %v1010
  %1039 = vst.msk [vmem:[#allocation2 + $0x48] sm:$0xff] %vm1029, %v1012
  %1040 = vst.msk [vmem:[#allocation2 + $0x50] sm:$0xff] %vm1029, %v1014
  %1041 = vst.msk [vmem:[#allocation2 + $0x58] sm:$0xff] %vm1029, %v1016
  %v1042 = vld [vmem:[#allocation2] sm:$0xff]
  %v1043 = vld [vmem:[#allocation2 + $0x8] sm:$0xff]
  %v1044 = vld [vmem:[#allocation2 + $0x10] sm:$0xff]
  %v1045 = vld [vmem:[#allocation2 + $0x18] sm:$0xff]
  %v1046 = vld [vmem:[#allocation2 + $0x20] sm:$0xff]
  %v1047 = vld [vmem:[#allocation2 + $0x28] sm:$0xff]
  %v1048 = vld [vmem:[#allocation2 + $0x30] sm:$0xff]
  %v1049 = vld [vmem:[#allocation2 + $0x38] sm:$0xff]
  %v1050 = vld [vmem:[#allocation2 + $0x40] sm:$0xff]
  %v1051 = vld [vmem:[#allocation2 + $0x48] sm:$0xff]
  %v1052 = vld [vmem:[#allocation2 + $0x50] sm:$0xff]
  %v1053 = vld [vmem:[#allocation2 + $0x58] sm:$0xff]
  %v1054 = vld [vmem:[%s5] sm:$0xff]
  %v1055 = vld [vmem:[%s5 + $0x8] sm:$0xff]
  %v1056 = vld [vmem:[%s5 + $0x10] sm:$0xff]
  %v1057 = vld [vmem:[%s5 + $0x18] sm:$0xff]
  %v1058 = vld [vmem:[%s5 + $0x20] sm:$0xff]
  %v1059 = vld [vmem:[%s5 + $0x28] sm:$0xff]
  %v1060 = vld [vmem:[%s5 + $0x30] sm:$0xff]
  %v1061 = vld [vmem:[%s5 + $0x38] sm:$0xff]
  %v1062 = vld [vmem:[%s5 + $0x40] sm:$0xff]
  %v1063 = vld [vmem:[%s5 + $0x48] sm:$0xff]
  %v1064 = vld [vmem:[%s5 + $0x50] sm:$0xff]
  %v1065 = vld [vmem:[%s5 + $0x58] sm:$0xff]
  %v1066 = vld [vmem:[%s5 + $0x60] sm:$0xf]
  %v1067 = vld [vmem:[%s3] sm:$0x1f]
  %vm1068 = vcmask 39936
  %v1070 = vsel %vm1068, %v1042, 0
  %v1073 = vsel %vm1068, %v1043, 0
  %v1076 = vsel %vm1068, %v1044, 0
  %v1079 = vsel %vm1068, %v1045, 0
  %v1082 = vsel %vm1068, %v1046, 0
  %v1085 = vsel %vm1068, %v1047, 0
  %v1088 = vsel %vm1068, %v1048, 0
  %v1091 = vsel %vm1068, %v1049, 0
  %v1094 = vsel %vm1068, %v1050, 0
  %v1097 = vsel %vm1068, %v1051, 0
  %v1100 = vsel %vm1068, %v1052, 0
  %v1103 = vsel %vm1068, %v1053, 0
  %vm1105 = vcmask 1044480
  %v1107 = vsel %vm1105, %v1067, 0
  %1109 = vmatprep.subr.mxu0 0.0
  %1110 = vmatpush1.msra.mxu0 %v1107
  %1111 = vmatprep.subr.mxu0 0.0
  %1112 = vmatpush1.msra.mxu0 0.0
  %1113 = vmatprep.subr.mxu0 0.0
  %1114 = vmatpush1.msra.mxu0 0.0
  %1115 = vmatprep.subr.mxu0 0.0
  %1116 = vmatpush1.msra.mxu0 0.0
  %1117 = vmatprep.subr.mxu0 0.0
  %1118 = vmatpush1.msra.mxu0 0.0
  %1119 = vmatprep.subr.mxu0 0.0
  %1120 = vmatpush1.msra.mxu0 0.0
  %1121 = vmatprep.subr.mxu0 0.0
  %1122 = vmatpush1.msra.mxu0 0.0
  %1123 = vmatprep.subr.mxu0 0.0
  %1124 = vmatpush1.msra.mxu0 0.0
  %1125 = vmatprep.subr.mxu0 0.0
  %1126 = vmatpush1.msra.mxu0 0.0
  %1127 = vmatprep.subr.mxu0 0.0
  %1128 = vmatpush1.msra.mxu0 0.0
  %1129 = vmatprep.subr.mxu0 0.0
  %1130 = vmatpush1.msra.mxu0 0.0
  %1131 = vmatprep.subr.mxu0 0.0
  %1132 = vmatpush1.msra.mxu0 0.0
  %1133 = vmatprep.subr.mxu0 0.0
  %1134 = vmatpush1.msra.mxu0 0.0
  %1135 = vmatprep.subr.mxu0 0.0
  %1136 = vmatpush1.msra.mxu0 0.0
  %1137 = vmatprep.subr.mxu0 0.0
  %1138 = vmatpush1.msra.mxu0 0.0
  %1139 = vmatprep.subr.mxu0 0.0
  %1140 = vmatpush1.msra.mxu0 0.0
  %1141 = vmatprep.subr.mxu0 0.0
  %1142 = vmatpush1.msra.mxu0 0.0
  %1143 = vmatprep.subr.mxu0 0.0
  %1144 = vmatpush1.msra.mxu0 0.0
  %1145 = vmatprep.subr.mxu0 0.0
  %1146 = vmatpush1.msra.mxu0 0.0
  %1147 = vmatprep.subr.mxu0 0.0
  %1148 = vmatpush1.msra.mxu0 0.0
  %1149 = vmatprep.subr.mxu0 0.0
  %1150 = vmatpush1.msra.mxu0 0.0
  %1151 = vmatprep.subr.mxu0 0.0
  %1152 = vmatpush1.msra.mxu0 0.0
  %1153 = vmatprep.subr.mxu0 0.0
  %1154 = vmatpush1.msra.mxu0 0.0
  %1155 = vmatprep.subr.mxu0 0.0
  %1156 = vmatpush1.msra.mxu0 0.0
  %1157 = vmatprep.subr.mxu0 0.0
  %1158 = vmatpush1.msra.mxu0 0.0
  %1159 = vmatprep.subr.mxu0 0.0
  %1160 = vmatpush1.msra.mxu0 0.0
  %1161 = vmatprep.subr.mxu0 0.0
  %1162 = vmatpush1.msra.mxu0 0.0
  %1163 = vmatprep.subr.mxu0 0.0
  %1164 = vmatpush1.msra.mxu0 0.0
  %1165 = vmatprep.subr.mxu0 0.0
  %1166 = vmatpush1.msra.mxu0 0.0
  %1167 = vmatprep.subr.mxu0 0.0
  %1168 = vmatpush1.msra.mxu0 0.0
  %1169 = vmatprep.subr.mxu0 0.0
  %1170 = vmatpush1.msra.mxu0 0.0
  %1171 = vmatprep.subr.mxu0 0.0
  %1172 = vmatpush1.msra.mxu0 0.0
  %1173 = vmatprep.mubr.f32.mxu0 0.0
  %1174 = vmatmul.mubr.f32.gmra.mrb[0].mxu0 %v1070
  %v1175 = vpop.f32.mrb[0].mxu0
  %v1176 = vadd.f32 0.0, %v1175
  %v1177 = vpop.f32.mrb[0].mxu0
  %1178 = vmatprep.mubr.f32.mxu0 0.0
  %1179 = vmatmul.mubr.f32.gmra.mrb[0].mxu0 %v1073
  %v1180 = vpop.f32.mrb[0].mxu0
  %v1181 = vadd.f32 0.0, %v1180
  %v1182 = vpop.f32.mrb[0].mxu0
  %1183 = vmatprep.mubr.f32.mxu0 0.0
  %1184 = vmatmul.mubr.f32.gmra.mrb[0].mxu0 %v1076
  %v1185 = vpop.f32.mrb[0].mxu0
  %v1186 = vadd.f32 0.0, %v1185
  %v1187 = vpop.f32.mrb[0].mxu0
  %1188 = vmatprep.mubr.f32.mxu0 0.0
  %1189 = vmatmul.mubr.f32.gmra.mrb[0].mxu0 %v1079
  %v1190 = vpop.f32.mrb[0].mxu0
  %v1191 = vadd.f32 0.0, %v1190
  %v1192 = vpop.f32.mrb[0].mxu0
  %1193 = vmatprep.mubr.f32.mxu0 0.0
  %1194 = vmatmul.mubr.f32.gmra.mrb[0].mxu0 %v1082
  %v1195 = vpop.f32.mrb[0].mxu0
  %v1196 = vadd.f32 0.0, %v1195
  %v1197 = vpop.f32.mrb[0].mxu0
  %1198 = vmatprep.mubr.f32.mxu0 0.0
  %1199 = vmatmul.mubr.f32.gmra.mrb[0].mxu0 %v1085
  %v1200 = vpop.f32.mrb[0].mxu0
  %v1201 = vadd.f32 0.0, %v1200
  %v1202 = vpop.f32.mrb[0].mxu0
  %1203 = vmatprep.mubr.f32.mxu0 0.0
  %1204 = vmatmul.mubr.f32.gmra.mrb[0].mxu0 %v1088
  %v1205 = vpop.f32.mrb[0].mxu0
  %v1206 = vadd.f32 0.0, %v1205
  %v1207 = vpop.f32.mrb[0].mxu0
  %1208 = vmatprep.mubr.f32.mxu0 0.0
  %1209 = vmatmul.mubr.f32.gmra.mrb[0].mxu0 %v1091
  %v1210 = vpop.f32.mrb[0].mxu0
  %v1211 = vadd.f32 0.0, %v1210
  %v1212 = vpop.f32.mrb[0].mxu0
  %1213 = vmatprep.mubr.f32.mxu0 0.0
  %1214 = vmatmul.mubr.f32.gmra.mrb[0].mxu0 %v1094
  %v1215 = vpop.f32.mrb[0].mxu0
  %v1216 = vadd.f32 0.0, %v1215
  %v1217 = vpop.f32.mrb[0].mxu0
  %1218 = vmatprep.mubr.f32.mxu0 0.0
  %1219 = vmatmul.mubr.f32.gmra.mrb[0].mxu0 %v1097
  %v1220 = vpop.f32.mrb[0].mxu0
  %v1221 = vadd.f32 0.0, %v1220
  %v1222 = vpop.f32.mrb[0].mxu0
  %1223 = vmatprep.mubr.f32.mxu0 0.0
  %1224 = vmatmul.mubr.f32.gmra.mrb[0].mxu0 %v1100
  %v1225 = vpop.f32.mrb[0].mxu0
  %v1226 = vadd.f32 0.0, %v1225
  %v1227 = vpop.f32.mrb[0].mxu0
  %1228 = vmatprep.mubr.f32.mxu0 0.0
  %1229 = vmatmul.mubr.f32.gmra.mrb[0].mxu0 %v1103
  %v1230 = vpop.f32.mrb[0].mxu0
  %v1231 = vadd.f32 0.0, %v1230
  %v1232 = vpop.f32.mrb[0].mxu0
  %1233 = vdwg.mxu0
  %v1234 = vld [vmem:[%s4] sm:$0xff]
  %v1235 = vld [vmem:[%s4 + $0x8] sm:$0xff]
  %v1236 = vld [vmem:[%s4 + $0x10] sm:$0xff]
  %v1237 = vld [vmem:[%s4 + $0x18] sm:$0xff]
  %v1238 = vld [vmem:[%s4 + $0x20] sm:$0xff]
  %v1239 = vld [vmem:[%s4 + $0x28] sm:$0xff]
  %v1240 = vld [vmem:[%s4 + $0x30] sm:$0xff]
  %v1241 = vld [vmem:[%s4 + $0x38] sm:$0xff]
  %v1242 = vld [vmem:[%s4 + $0x40] sm:$0xff]
  %v1243 = vld [vmem:[%s4 + $0x48] sm:$0xff]
  %v1244 = vld [vmem:[%s4 + $0x50] sm:$0xff]
  %v1245 = vld [vmem:[%s4 + $0x58] sm:$0xff]
  %v1246 = vld [vmem:[%s4 + $0x60] sm:$0xf]
  %vm1247 = vcmask 785408
  %v1249 = vsel %vm1247, %v1234, 0
  %v1252 = vsel %vm1247, %v1235, 0
  %v1255 = vsel %vm1247, %v1236, 0
  %v1258 = vsel %vm1247, %v1237, 0
  %v1261 = vsel %vm1247, %v1238, 0
  %v1264 = vsel %vm1247, %v1239, 0
  %v1267 = vsel %vm1247, %v1240, 0
  %v1270 = vsel %vm1247, %v1241, 0
  %v1273 = vsel %vm1247, %v1242, 0
  %v1276 = vsel %vm1247, %v1243, 0
  %v1279 = vsel %vm1247, %v1244, 0
  %v1282 = vsel %vm1247, %v1245, 0
  %v1285 = vsel %vm1247, %v1246, 0
  %1287 = vmatprep.subr.mxu0 0.0
  %1288 = vmatpush1.msra.mxu0 %v1176
  %1289 = vmatprep.subr.mxu0 0.0
  %1290 = vmatpush1.msra.mxu0 %v1181
  %1291 = vmatprep.subr.mxu0 0.0
  %1292 = vmatpush1.msra.mxu0 %v1186
  %1293 = vmatprep.subr.mxu0 0.0
  %1294 = vmatpush1.msra.mxu0 %v1191
  %1295 = vmatprep.subr.mxu0 0.0
  %1296 = vmatpush1.msra.mxu0 %v1196
  %1297 = vmatprep.subr.mxu0 0.0
  %1298 = vmatpush1.msra.mxu0 %v1201
  %1299 = vmatprep.subr.mxu0 0.0
  %1300 = vmatpush1.msra.mxu0 %v1206
  %1301 = vmatprep.subr.mxu0 0.0
  %1302 = vmatpush1.msra.mxu0 %v1211
  %1303 = vmatprep.subr.mxu0 0.0
  %1304 = vmatpush1.msra.mxu0 %v1216
  %1305 = vmatprep.subr.mxu0 0.0
  %1306 = vmatpush1.msra.mxu0 %v1221
  %1307 = vmatprep.subr.mxu0 0.0
  %1308 = vmatpush1.msra.mxu0 %v1226
  %1309 = vmatprep.subr.mxu0 0.0
  %1310 = vmatpush1.msra.mxu0 %v1231
  %1311 = vmatprep.subr.mxu0 0.0
  %1312 = vmatpush1.msra.mxu0 0.0
  %1313 = vmatprep.subr.mxu0 0.0
  %1314 = vmatpush1.msra.mxu0 0.0
  %1315 = vmatprep.subr.mxu0 0.0
  %1316 = vmatpush1.msra.mxu0 0.0
  %1317 = vmatprep.subr.mxu0 0.0
  %1318 = vmatpush1.msra.mxu0 0.0
  %1319 = vmatprep.subr.mxu0 0.0
  %1320 = vmatpush1.msra.mxu0 0.0
  %1321 = vmatprep.subr.mxu0 0.0
  %1322 = vmatpush1.msra.mxu0 0.0
  %1323 = vmatprep.subr.mxu0 0.0
  %1324 = vmatpush1.msra.mxu0 0.0
  %1325 = vmatprep.subr.mxu0 0.0
  %1326 = vmatpush1.msra.mxu0 0.0
  %1327 = vmatprep.subr.mxu0 0.0
  %1328 = vmatpush1.msra.mxu0 0.0
  %1329 = vmatprep.subr.mxu0 0.0
  %1330 = vmatpush1.msra.mxu0 0.0
  %1331 = vmatprep.subr.mxu0 0.0
  %1332 = vmatpush1.msra.mxu0 0.0
  %1333 = vmatprep.subr.mxu0 0.0
  %1334 = vmatpush1.msra.mxu0 0.0
  %1335 = vmatprep.subr.mxu0 0.0
  %1336 = vmatpush1.msra.mxu0 0.0
  %1337 = vmatprep.subr.mxu0 0.0
  %1338 = vmatpush1.msra.mxu0 0.0
  %1339 = vmatprep.subr.mxu0 0.0
  %1340 = vmatpush1.msra.mxu0 0.0
  %1341 = vmatprep.subr.mxu0 0.0
  %1342 = vmatpush1.msra.mxu0 0.0
  %1343 = vmatprep.subr.mxu0 0.0
  %1344 = vmatpush1.msra.mxu0 0.0
  %1345 = vmatprep.subr.mxu0 0.0
  %1346 = vmatpush1.msra.mxu0 0.0
  %1347 = vmatprep.subr.mxu0 0.0
  %1348 = vmatpush1.msra.mxu0 0.0
  %1349 = vmatprep.subr.mxu0 0.0
  %1350 = vmatpush1.msra.mxu0 0.0
  %1351 = vmatprep.mubr.f32.mxu0 0.0
  %1352 = vmatmul.mubr.f32.gmra.mrb[0].mxu0 %v1249
  %v1353 = vpop.f32.mrb[0].mxu0
  %v1354 = vadd.f32 0.0, %v1353
  %v1355 = vpop.f32.mrb[0].mxu0
  %1356 = vmatprep.mubr.f32.mxu0 0.0
  %1357 = vmatmul.mubr.f32.gmra.mrb[0].mxu0 %v1252
  %v1358 = vpop.f32.mrb[0].mxu0
  %v1359 = vadd.f32 0.0, %v1358
  %v1360 = vpop.f32.mrb[0].mxu0
  %1361 = vmatprep.mubr.f32.mxu0 0.0
  %1362 = vmatmul.mubr.f32.gmra.mrb[0].mxu0 %v1255
  %v1363 = vpop.f32.mrb[0].mxu0
  %v1364 = vadd.f32 0.0, %v1363
  %v1365 = vpop.f32.mrb[0].mxu0
  %1366 = vmatprep.mubr.f32.mxu0 0.0
  %1367 = vmatmul.mubr.f32.gmra.mrb[0].mxu0 %v1258
  %v1368 = vpop.f32.mrb[0].mxu0
  %v1369 = vadd.f32 0.0, %v1368
  %v1370 = vpop.f32.mrb[0].mxu0
  %1371 = vmatprep.mubr.f32.mxu0 0.0
  %1372 = vmatmul.mubr.f32.gmra.mrb[0].mxu0 %v1261
  %v1373 = vpop.f32.mrb[0].mxu0
  %v1374 = vadd.f32 0.0, %v1373
  %v1375 = vpop.f32.mrb[0].mxu0
  %1376 = vmatprep.mubr.f32.mxu0 0.0
  %1377 = vmatmul.mubr.f32.gmra.mrb[0].mxu0 %v1264
  %v1378 = vpop.f32.mrb[0].mxu0
  %v1379 = vadd.f32 0.0, %v1378
  %v1380 = vpop.f32.mrb[0].mxu0
  %1381 = vmatprep.mubr.f32.mxu0 0.0
  %1382 = vmatmul.mubr.f32.gmra.mrb[0].mxu0 %v1267
  %v1383 = vpop.f32.mrb[0].mxu0
  %v1384 = vadd.f32 0.0, %v1383
  %v1385 = vpop.f32.mrb[0].mxu0
  %1386 = vmatprep.mubr.f32.mxu0 0.0
  %1387 = vmatmul.mubr.f32.gmra.mrb[0].mxu0 %v1270
  %v1388 = vpop.f32.mrb[0].mxu0
  %v1389 = vadd.f32 0.0, %v1388
  %v1390 = vpop.f32.mrb[0].mxu0
  %1391 = vmatprep.mubr.f32.mxu0 0.0
  %1392 = vmatmul.mubr.f32.gmra.mrb[0].mxu0 %v1273
  %v1393 = vpop.f32.mrb[0].mxu0
  %v1394 = vadd.f32 0.0, %v1393
  %v1395 = vpop.f32.mrb[0].mxu0
  %1396 = vmatprep.mubr.f32.mxu0 0.0
  %1397 = vmatmul.mubr.f32.gmra.mrb[0].mxu0 %v1276
  %v1398 = vpop.f32.mrb[0].mxu0
  %v1399 = vadd.f32 0.0, %v1398
  %v1400 = vpop.f32.mrb[0].mxu0
  %1401 = vmatprep.mubr.f32.mxu0 0.0
  %1402 = vmatmul.mubr.f32.gmra.mrb[0].mxu0 %v1279
  %v1403 = vpop.f32.mrb[0].mxu0
  %v1404 = vadd.f32 0.0, %v1403
  %v1405 = vpop.f32.mrb[0].mxu0
  %1406 = vmatprep.mubr.f32.mxu0 0.0
  %1407 = vmatmul.mubr.f32.gmra.mrb[0].mxu0 %v1282
  %v1408 = vpop.f32.mrb[0].mxu0
  %v1409 = vadd.f32 0.0, %v1408
  %v1410 = vpop.f32.mrb[0].mxu0
  %1411 = vmatprep.mubr.f32.mxu0 0.0
  %1412 = vmatmul.mubr.f32.gmra.mrb[0].mxu0 %v1285
  %v1413 = vpop.f32.mrb[0].mxu0
  %v1414 = vadd.f32 0.0, %v1413
  %v1415 = vpop.f32.mrb[0].mxu0
  %1416 = vdwg.mxu0
  %1418 = vset.pattern.permute.xlu0 0
  %1419 = vperm.xlu0 %1418, %v1054
  %v1420 = vpop.permute.xlu0 %1419
  %1423 = vset.pattern.permute.xlu0 0
  %1424 = vperm.xlu0 %1423, %v1055
  %v1425 = vpop.permute.xlu0 %1424
  %1428 = vset.pattern.permute.xlu0 0
  %1429 = vperm.xlu0 %1428, %v1056
  %v1430 = vpop.permute.xlu0 %1429
  %1433 = vset.pattern.permute.xlu0 0
  %1434 = vperm.xlu0 %1433, %v1057
  %v1435 = vpop.permute.xlu0 %1434
  %1438 = vset.pattern.permute.xlu0 0
  %1439 = vperm.xlu0 %1438, %v1058
  %v1440 = vpop.permute.xlu0 %1439
  %1443 = vset.pattern.permute.xlu0 0
  %1444 = vperm.xlu0 %1443, %v1059
  %v1445 = vpop.permute.xlu0 %1444
  %1448 = vset.pattern.permute.xlu0 0
  %1449 = vperm.xlu0 %1448, %v1060
  %v1450 = vpop.permute.xlu0 %1449
  %1453 = vset.pattern.permute.xlu0 0
  %1454 = vperm.xlu0 %1453, %v1061
  %v1455 = vpop.permute.xlu0 %1454
  %1458 = vset.pattern.permute.xlu0 0
  %1459 = vperm.xlu0 %1458, %v1062
  %v1460 = vpop.permute.xlu0 %1459
  %1463 = vset.pattern.permute.xlu0 0
  %1464 = vperm.xlu0 %1463, %v1063
  %v1465 = vpop.permute.xlu0 %1464
  %1468 = vset.pattern.permute.xlu0 0
  %1469 = vperm.xlu0 %1468, %v1064
  %v1470 = vpop.permute.xlu0 %1469
  %1473 = vset.pattern.permute.xlu0 0
  %1474 = vperm.xlu0 %1473, %v1065
  %v1475 = vpop.permute.xlu0 %1474
  %1478 = vset.pattern.permute.xlu0 0
  %1479 = vperm.xlu0 %1478, %v1066
  %v1480 = vpop.permute.xlu0 %1479
  %v1482 = vadd.f32 %v1420, %v1354
  %v1483 = vadd.f32 %v1425, %v1359
  %v1484 = vadd.f32 %v1430, %v1364
  %v1485 = vadd.f32 %v1435, %v1369
  %v1486 = vadd.f32 %v1440, %v1374
  %v1487 = vadd.f32 %v1445, %v1379
  %v1488 = vadd.f32 %v1450, %v1384
  %v1489 = vadd.f32 %v1455, %v1389
  %v1490 = vadd.f32 %v1460, %v1394
  %v1491 = vadd.f32 %v1465, %v1399
  %v1492 = vadd.f32 %v1470, %v1404
  %v1493 = vadd.f32 %v1475, %v1409
  %v1494 = vadd.f32 %v1480, %v1414
  %s1495 = scalar_lea.vmem %s3, 8
  %v1496 = vld [vmem:[%s1495] sm:$0x1f]
  %v1498 = vsel %vm1105, %v1496, 0
  %1500 = vmatprep.subr.mxu0 0.0
  %1501 = vmatpush1.msra.mxu0 %v1498
  %1502 = vmatprep.subr.mxu0 0.0
  %1503 = vmatpush1.msra.mxu0 0.0
  %1504 = vmatprep.subr.mxu0 0.0
  %1505 = vmatpush1.msra.mxu0 0.0
  %1506 = vmatprep.subr.mxu0 0.0
  %1507 = vmatpush1.msra.mxu0 0.0
  %1508 = vmatprep.subr.mxu0 0.0
  %1509 = vmatpush1.msra.mxu0 0.0
  %1510 = vmatprep.subr.mxu0 0.0
  %1511 = vmatpush1.msra.mxu0 0.0
  %1512 = vmatprep.subr.mxu0 0.0
  %1513 = vmatpush1.msra.mxu0 0.0
  %1514 = vmatprep.subr.mxu0 0.0
  %1515 = vmatpush1.msra.mxu0 0.0
  %1516 = vmatprep.subr.mxu0 0.0
  %1517 = vmatpush1.msra.mxu0 0.0
  %1518 = vmatprep.subr.mxu0 0.0
  %1519 = vmatpush1.msra.mxu0 0.0
  %1520 = vmatprep.subr.mxu0 0.0
  %1521 = vmatpush1.msra.mxu0 0.0
  %1522 = vmatprep.subr.mxu0 0.0
  %1523 = vmatpush1.msra.mxu0 0.0
  %1524 = vmatprep.subr.mxu0 0.0
  %1525 = vmatpush1.msra.mxu0 0.0
  %1526 = vmatprep.subr.mxu0 0.0
  %1527 = vmatpush1.msra.mxu0 0.0
  %1528 = vmatprep.subr.mxu0 0.0
  %1529 = vmatpush1.msra.mxu0 0.0
  %1530 = vmatprep.subr.mxu0 0.0
  %1531 = vmatpush1.msra.mxu0 0.0
  %1532 = vmatprep.subr.mxu0 0.0
  %1533 = vmatpush1.msra.mxu0 0.0
  %1534 = vmatprep.subr.mxu0 0.0
  %1535 = vmatpush1.msra.mxu0 0.0
  %1536 = vmatprep.subr.mxu0 0.0
  %1537 = vmatpush1.msra.mxu0 0.0
  %1538 = vmatprep.subr.mxu0 0.0
  %1539 = vmatpush1.msra.mxu0 0.0
  %1540 = vmatprep.subr.mxu0 0.0
  %1541 = vmatpush1.msra.mxu0 0.0
  %1542 = vmatprep.subr.mxu0 0.0
  %1543 = vmatpush1.msra.mxu0 0.0
  %1544 = vmatprep.subr.mxu0 0.0
  %1545 = vmatpush1.msra.mxu0 0.0
  %1546 = vmatprep.subr.mxu0 0.0
  %1547 = vmatpush1.msra.mxu0 0.0
  %1548 = vmatprep.subr.mxu0 0.0
  %1549 = vmatpush1.msra.mxu0 0.0
  %1550 = vmatprep.subr.mxu0 0.0
  %1551 = vmatpush1.msra.mxu0 0.0
  %1552 = vmatprep.subr.mxu0 0.0
  %1553 = vmatpush1.msra.mxu0 0.0
  %1554 = vmatprep.subr.mxu0 0.0
  %1555 = vmatpush1.msra.mxu0 0.0
  %1556 = vmatprep.subr.mxu0 0.0
  %1557 = vmatpush1.msra.mxu0 0.0
  %1558 = vmatprep.subr.mxu0 0.0
  %1559 = vmatpush1.msra.mxu0 0.0
  %1560 = vmatprep.subr.mxu0 0.0
  %1561 = vmatpush1.msra.mxu0 0.0
  %1562 = vmatprep.subr.mxu0 0.0
  %1563 = vmatpush1.msra.mxu0 0.0
  %1564 = vmatprep.mubr.f32.mxu0 0.0
  %1565 = vmatmul.mubr.f32.gmra.mrb[0].mxu0 %v1070
  %v1566 = vpop.f32.mrb[0].mxu0
  %v1567 = vadd.f32 0.0, %v1566
  %v1568 = vpop.f32.mrb[0].mxu0
  %1569 = vmatprep.mubr.f32.mxu0 0.0
  %1570 = vmatmul.mubr.f32.gmra.mrb[0].mxu0 %v1073
  %v1571 = vpop.f32.mrb[0].mxu0
  %v1572 = vadd.f32 0.0, %v1571
  %v1573 = vpop.f32.mrb[0].mxu0
  %1574 = vmatprep.mubr.f32.mxu0 0.0
  %1575 = vmatmul.mubr.f32.gmra.mrb[0].mxu0 %v1076
  %v1576 = vpop.f32.mrb[0].mxu0
  %v1577 = vadd.f32 0.0, %v1576
  %v1578 = vpop.f32.mrb[0].mxu0
  %1579 = vmatprep.mubr.f32.mxu0 0.0
  %1580 = vmatmul.mubr.f32.gmra.mrb[0].mxu0 %v1079
  %v1581 = vpop.f32.mrb[0].mxu0
  %v1582 = vadd.f32 0.0, %v1581
  %v1583 = vpop.f32.mrb[0].mxu0
  %1584 = vmatprep.mubr.f32.mxu0 0.0
  %1585 = vmatmul.mubr.f32.gmra.mrb[0].mxu0 %v1082
  %v1586 = vpop.f32.mrb[0].mxu0
  %v1587 = vadd.f32 0.0, %v1586
  %v1588 = vpop.f32.mrb[0].mxu0
  %1589 = vmatprep.mubr.f32.mxu0 0.0
  %1590 = vmatmul.mubr.f32.gmra.mrb[0].mxu0 %v1085
  %v1591 = vpop.f32.mrb[0].mxu0
  %v1592 = vadd.f32 0.0, %v1591
  %v1593 = vpop.f32.mrb[0].mxu0
  %1594 = vmatprep.mubr.f32.mxu0 0.0
  %1595 = vmatmul.mubr.f32.gmra.mrb[0].mxu0 %v1088
  %v1596 = vpop.f32.mrb[0].mxu0
  %v1597 = vadd.f32 0.0, %v1596
  %v1598 = vpop.f32.mrb[0].mxu0
  %1599 = vmatprep.mubr.f32.mxu0 0.0
  %1600 = vmatmul.mubr.f32.gmra.mrb[0].mxu0 %v1091
  %v1601 = vpop.f32.mrb[0].mxu0
  %v1602 = vadd.f32 0.0, %v1601
  %v1603 = vpop.f32.mrb[0].mxu0
  %1604 = vmatprep.mubr.f32.mxu0 0.0
  %1605 = vmatmul.mubr.f32.gmra.mrb[0].mxu0 %v1094
  %v1606 = vpop.f32.mrb[0].mxu0
  %v1607 = vadd.f32 0.0, %v1606
  %v1608 = vpop.f32.mrb[0].mxu0
  %1609 = vmatprep.mubr.f32.mxu0 0.0
  %1610 = vmatmul.mubr.f32.gmra.mrb[0].mxu0 %v1097
  %v1611 = vpop.f32.mrb[0].mxu0
  %v1612 = vadd.f32 0.0, %v1611
  %v1613 = vpop.f32.mrb[0].mxu0
  %1614 = vmatprep.mubr.f32.mxu0 0.0
  %1615 = vmatmul.mubr.f32.gmra.mrb[0].mxu0 %v1100
  %v1616 = vpop.f32.mrb[0].mxu0
  %v1617 = vadd.f32 0.0, %v1616
  %v1618 = vpop.f32.mrb[0].mxu0
  %1619 = vmatprep.mubr.f32.mxu0 0.0
  %1620 = vmatmul.mubr.f32.gmra.mrb[0].mxu0 %v1103
  %v1621 = vpop.f32.mrb[0].mxu0
  %v1622 = vadd.f32 0.0, %v1621
  %v1623 = vpop.f32.mrb[0].mxu0
  %1624 = vdwg.mxu0
  %s1625 = scalar_lea.vmem %s4, 104
  %v1626 = vld [vmem:[%s1625] sm:$0xff]
  %v1627 = vld [vmem:[%s1625 + $0x8] sm:$0xff]
  %v1628 = vld [vmem:[%s1625 + $0x10] sm:$0xff]
  %v1629 = vld [vmem:[%s1625 + $0x18] sm:$0xff]
  %v1630 = vld [vmem:[%s1625 + $0x20] sm:$0xff]
  %v1631 = vld [vmem:[%s1625 + $0x28] sm:$0xff]
  %v1632 = vld [vmem:[%s1625 + $0x30] sm:$0xff]
  %v1633 = vld [vmem:[%s1625 + $0x38] sm:$0xff]
  %v1634 = vld [vmem:[%s1625 + $0x40] sm:$0xff]
  %v1635 = vld [vmem:[%s1625 + $0x48] sm:$0xff]
  %v1636 = vld [vmem:[%s1625 + $0x50] sm:$0xff]
  %v1637 = vld [vmem:[%s1625 + $0x58] sm:$0xff]
  %v1638 = vld [vmem:[%s1625 + $0x60] sm:$0xf]
  %v1640 = vsel %vm1247, %v1626, 0
  %v1643 = vsel %vm1247, %v1627, 0
  %v1646 = vsel %vm1247, %v1628, 0
  %v1649 = vsel %vm1247, %v1629, 0
  %v1652 = vsel %vm1247, %v1630, 0
  %v1655 = vsel %vm1247, %v1631, 0
  %v1658 = vsel %vm1247, %v1632, 0
  %v1661 = vsel %vm1247, %v1633, 0
  %v1664 = vsel %vm1247, %v1634, 0
  %v1667 = vsel %vm1247, %v1635, 0
  %v1670 = vsel %vm1247, %v1636, 0
  %v1673 = vsel %vm1247, %v1637, 0
  %v1676 = vsel %vm1247, %v1638, 0
  %1678 = vmatprep.subr.mxu0 0.0
  %1679 = vmatpush1.msra.mxu0 %v1567
  %1680 = vmatprep.subr.mxu0 0.0
  %1681 = vmatpush1.msra.mxu0 %v1572
  %1682 = vmatprep.subr.mxu0 0.0
  %1683 = vmatpush1.msra.mxu0 %v1577
  %1684 = vmatprep.subr.mxu0 0.0
  %1685 = vmatpush1.msra.mxu0 %v1582
  %1686 = vmatprep.subr.mxu0 0.0
  %1687 = vmatpush1.msra.mxu0 %v1587
  %1688 = vmatprep.subr.mxu0 0.0
  %1689 = vmatpush1.msra.mxu0 %v1592
  %1690 = vmatprep.subr.mxu0 0.0
  %1691 = vmatpush1.msra.mxu0 %v1597
  %1692 = vmatprep.subr.mxu0 0.0
  %1693 = vmatpush1.msra.mxu0 %v1602
  %1694 = vmatprep.subr.mxu0 0.0
  %1695 = vmatpush1.msra.mxu0 %v1607
  %1696 = vmatprep.subr.mxu0 0.0
  %1697 = vmatpush1.msra.mxu0 %v1612
  %1698 = vmatprep.subr.mxu0 0.0
  %1699 = vmatpush1.msra.mxu0 %v1617
  %1700 = vmatprep.subr.mxu0 0.0
  %1701 = vmatpush1.msra.mxu0 %v1622
  %1702 = vmatprep.subr.mxu0 0.0
  %1703 = vmatpush1.msra.mxu0 0.0
  %1704 = vmatprep.subr.mxu0 0.0
  %1705 = vmatpush1.msra.mxu0 0.0
  %1706 = vmatprep.subr.mxu0 0.0
  %1707 = vmatpush1.msra.mxu0 0.0
  %1708 = vmatprep.subr.mxu0 0.0
  %1709 = vmatpush1.msra.mxu0 0.0
  %1710 = vmatprep.subr.mxu0 0.0
  %1711 = vmatpush1.msra.mxu0 0.0
  %1712 = vmatprep.subr.mxu0 0.0
  %1713 = vmatpush1.msra.mxu0 0.0
  %1714 = vmatprep.subr.mxu0 0.0
  %1715 = vmatpush1.msra.mxu0 0.0
  %1716 = vmatprep.subr.mxu0 0.0
  %1717 = vmatpush1.msra.mxu0 0.0
  %1718 = vmatprep.subr.mxu0 0.0
  %1719 = vmatpush1.msra.mxu0 0.0
  %1720 = vmatprep.subr.mxu0 0.0
  %1721 = vmatpush1.msra.mxu0 0.0
  %1722 = vmatprep.subr.mxu0 0.0
  %1723 = vmatpush1.msra.mxu0 0.0
  %1724 = vmatprep.subr.mxu0 0.0
  %1725 = vmatpush1.msra.mxu0 0.0
  %1726 = vmatprep.subr.mxu0 0.0
  %1727 = vmatpush1.msra.mxu0 0.0
  %1728 = vmatprep.subr.mxu0 0.0
  %1729 = vmatpush1.msra.mxu0 0.0
  %1730 = vmatprep.subr.mxu0 0.0
  %1731 = vmatpush1.msra.mxu0 0.0
  %1732 = vmatprep.subr.mxu0 0.0
  %1733 = vmatpush1.msra.mxu0 0.0
  %1734 = vmatprep.subr.mxu0 0.0
  %1735 = vmatpush1.msra.mxu0 0.0
  %1736 = vmatprep.subr.mxu0 0.0
  %1737 = vmatpush1.msra.mxu0 0.0
  %1738 = vmatprep.subr.mxu0 0.0
  %1739 = vmatpush1.msra.mxu0 0.0
  %1740 = vmatprep.subr.mxu0 0.0
  %1741 = vmatpush1.msra.mxu0 0.0
  %1742 = vmatprep.mubr.f32.mxu0 0.0
  %1743 = vmatmul.mubr.f32.gmra.mrb[0].mxu0 %v1640
  %v1744 = vpop.f32.mrb[0].mxu0
  %v1745 = vadd.f32 0.0, %v1744
  %v1746 = vpop.f32.mrb[0].mxu0
  %1747 = vmatprep.mubr.f32.mxu0 0.0
  %1748 = vmatmul.mubr.f32.gmra.mrb[0].mxu0 %v1643
  %v1749 = vpop.f32.mrb[0].mxu0
  %v1750 = vadd.f32 0.0, %v1749
  %v1751 = vpop.f32.mrb[0].mxu0
  %1752 = vmatprep.mubr.f32.mxu0 0.0
  %1753 = vmatmul.mubr.f32.gmra.mrb[0].mxu0 %v1646
  %v1754 = vpop.f32.mrb[0].mxu0
  %v1755 = vadd.f32 0.0, %v1754
  %v1756 = vpop.f32.mrb[0].mxu0
  %1757 = vmatprep.mubr.f32.mxu0 0.0
  %1758 = vmatmul.mubr.f32.gmra.mrb[0].mxu0 %v1649
  %v1759 = vpop.f32.mrb[0].mxu0
  %v1760 = vadd.f32 0.0, %v1759
  %v1761 = vpop.f32.mrb[0].mxu0
  %1762 = vmatprep.mubr.f32.mxu0 0.0
  %1763 = vmatmul.mubr.f32.gmra.mrb[0].mxu0 %v1652
  %v1764 = vpop.f32.mrb[0].mxu0
  %v1765 = vadd.f32 0.0, %v1764
  %v1766 = vpop.f32.mrb[0].mxu0
  %1767 = vmatprep.mubr.f32.mxu0 0.0
  %1768 = vmatmul.mubr.f32.gmra.mrb[0].mxu0 %v1655
  %v1769 = vpop.f32.mrb[0].mxu0
  %v1770 = vadd.f32 0.0, %v1769
  %v1771 = vpop.f32.mrb[0].mxu0
  %1772 = vmatprep.mubr.f32.mxu0 0.0
  %1773 = vmatmul.mubr.f32.gmra.mrb[0].mxu0 %v1658
  %v1774 = vpop.f32.mrb[0].mxu0
  %v1775 = vadd.f32 0.0, %v1774
  %v1776 = vpop.f32.mrb[0].mxu0
  %1777 = vmatprep.mubr.f32.mxu0 0.0
  %1778 = vmatmul.mubr.f32.gmra.mrb[0].mxu0 %v1661
  %v1779 = vpop.f32.mrb[0].mxu0
  %v1780 = vadd.f32 0.0, %v1779
  %v1781 = vpop.f32.mrb[0].mxu0
  %1782 = vmatprep.mubr.f32.mxu0 0.0
  %1783 = vmatmul.mubr.f32.gmra.mrb[0].mxu0 %v1664
  %v1784 = vpop.f32.mrb[0].mxu0
  %v1785 = vadd.f32 0.0, %v1784
  %v1786 = vpop.f32.mrb[0].mxu0
  %1787 = vmatprep.mubr.f32.mxu0 0.0
  %1788 = vmatmul.mubr.f32.gmra.mrb[0].mxu0 %v1667
  %v1789 = vpop.f32.mrb[0].mxu0
  %v1790 = vadd.f32 0.0, %v1789
  %v1791 = vpop.f32.mrb[0].mxu0
  %1792 = vmatprep.mubr.f32.mxu0 0.0
  %1793 = vmatmul.mubr.f32.gmra.mrb[0].mxu0 %v1670
  %v1794 = vpop.f32.mrb[0].mxu0
  %v1795 = vadd.f32 0.0, %v1794
  %v1796 = vpop.f32.mrb[0].mxu0
  %1797 = vmatprep.mubr.f32.mxu0 0.0
  %1798 = vmatmul.mubr.f32.gmra.mrb[0].mxu0 %v1673
  %v1799 = vpop.f32.mrb[0].mxu0
  %v1800 = vadd.f32 0.0, %v1799
  %v1801 = vpop.f32.mrb[0].mxu0
  %1802 = vmatprep.mubr.f32.mxu0 0.0
  %1803 = vmatmul.mubr.f32.gmra.mrb[0].mxu0 %v1676
  %v1804 = vpop.f32.mrb[0].mxu0
  %v1805 = vadd.f32 0.0, %v1804
  %v1806 = vpop.f32.mrb[0].mxu0
  %1807 = vdwg.mxu0
  %v1808 = vadd.f32 %v1482, %v1745
  %v1809 = vadd.f32 %v1483, %v1750
  %v1810 = vadd.f32 %v1484, %v1755
  %v1811 = vadd.f32 %v1485, %v1760
  %v1812 = vadd.f32 %v1486, %v1765
  %v1813 = vadd.f32 %v1487, %v1770
  %v1814 = vadd.f32 %v1488, %v1775
  %v1815 = vadd.f32 %v1489, %v1780
  %v1816 = vadd.f32 %v1490, %v1785
  %v1817 = vadd.f32 %v1491, %v1790
  %v1818 = vadd.f32 %v1492, %v1795
  %v1819 = vadd.f32 %v1493, %v1800
  %v1820 = vadd.f32 %v1494, %v1805
  %s1821 = scalar_lea.vmem %s3, 16
  %v1822 = vld [vmem:[%s1821] sm:$0x1f]
  %v1824 = vsel %vm1105, %v1822, 0
  %1826 = vmatprep.subr.mxu0 0.0
  %1827 = vmatpush1.msra.mxu0 %v1824
  %1828 = vmatprep.subr.mxu0 0.0
  %1829 = vmatpush1.msra.mxu0 0.0
  %1830 = vmatprep.subr.mxu0 0.0
  %1831 = vmatpush1.msra.mxu0 0.0
  %1832 = vmatprep.subr.mxu0 0.0
  %1833 = vmatpush1.msra.mxu0 0.0
  %1834 = vmatprep.subr.mxu0 0.0
  %1835 = vmatpush1.msra.mxu0 0.0
  %1836 = vmatprep.subr.mxu0 0.0
  %1837 = vmatpush1.msra.mxu0 0.0
  %1838 = vmatprep.subr.mxu0 0.0
  %1839 = vmatpush1.msra.mxu0 0.0
  %1840 = vmatprep.subr.mxu0 0.0
  %1841 = vmatpush1.msra.mxu0 0.0
  %1842 = vmatprep.subr.mxu0 0.0
  %1843 = vmatpush1.msra.mxu0 0.0
  %1844 = vmatprep.subr.mxu0 0.0
  %1845 = vmatpush1.msra.mxu0 0.0
  %1846 = vmatprep.subr.mxu0 0.0
  %1847 = vmatpush1.msra.mxu0 0.0
  %1848 = vmatprep.subr.mxu0 0.0
  %1849 = vmatpush1.msra.mxu0 0.0
  %1850 = vmatprep.subr.mxu0 0.0
  %1851 = vmatpush1.msra.mxu0 0.0
  %1852 = vmatprep.subr.mxu0 0.0
  %1853 = vmatpush1.msra.mxu0 0.0
  %1854 = vmatprep.subr.mxu0 0.0
  %1855 = vmatpush1.msra.mxu0 0.0
  %1856 = vmatprep.subr.mxu0 0.0
  %1857 = vmatpush1.msra.mxu0 0.0
  %1858 = vmatprep.subr.mxu0 0.0
  %1859 = vmatpush1.msra.mxu0 0.0
  %1860 = vmatprep.subr.mxu0 0.0
  %1861 = vmatpush1.msra.mxu0 0.0
  %1862 = vmatprep.subr.mxu0 0.0
  %1863 = vmatpush1.msra.mxu0 0.0
  %1864 = vmatprep.subr.mxu0 0.0
  %1865 = vmatpush1.msra.mxu0 0.0
  %1866 = vmatprep.subr.mxu0 0.0
  %1867 = vmatpush1.msra.mxu0 0.0
  %1868 = vmatprep.subr.mxu0 0.0
  %1869 = vmatpush1.msra.mxu0 0.0
  %1870 = vmatprep.subr.mxu0 0.0
  %1871 = vmatpush1.msra.mxu0 0.0
  %1872 = vmatprep.subr.mxu0 0.0
  %1873 = vmatpush1.msra.mxu0 0.0
  %1874 = vmatprep.subr.mxu0 0.0
  %1875 = vmatpush1.msra.mxu0 0.0
  %1876 = vmatprep.subr.mxu0 0.0
  %1877 = vmatpush1.msra.mxu0 0.0
  %1878 = vmatprep.subr.mxu0 0.0
  %1879 = vmatpush1.msra.mxu0 0.0
  %1880 = vmatprep.subr.mxu0 0.0
  %1881 = vmatpush1.msra.mxu0 0.0
  %1882 = vmatprep.subr.mxu0 0.0
  %1883 = vmatpush1.msra.mxu0 0.0
  %1884 = vmatprep.subr.mxu0 0.0
  %1885 = vmatpush1.msra.mxu0 0.0
  %1886 = vmatprep.subr.mxu0 0.0
  %1887 = vmatpush1.msra.mxu0 0.0
  %1888 = vmatprep.subr.mxu0 0.0
  %1889 = vmatpush1.msra.mxu0 0.0
  %1890 = vmatprep.mubr.f32.mxu0 0.0
  %1891 = vmatmul.mubr.f32.gmra.mrb[0].mxu0 %v1070
  %v1892 = vpop.f32.mrb[0].mxu0
  %v1893 = vadd.f32 0.0, %v1892
  %v1894 = vpop.f32.mrb[0].mxu0
  %1895 = vmatprep.mubr.f32.mxu0 0.0
  %1896 = vmatmul.mubr.f32.gmra.mrb[0].mxu0 %v1073
  %v1897 = vpop.f32.mrb[0].mxu0
  %v1898 = vadd.f32 0.0, %v1897
  %v1899 = vpop.f32.mrb[0].mxu0
  %1900 = vmatprep.mubr.f32.mxu0 0.0
  %1901 = vmatmul.mubr.f32.gmra.mrb[0].mxu0 %v1076
  %v1902 = vpop.f32.mrb[0].mxu0
  %v1903 = vadd.f32 0.0, %v1902
  %v1904 = vpop.f32.mrb[0].mxu0
  %1905 = vmatprep.mubr.f32.mxu0 0.0
  %1906 = vmatmul.mubr.f32.gmra.mrb[0].mxu0 %v1079
  %v1907 = vpop.f32.mrb[0].mxu0
  %v1908 = vadd.f32 0.0, %v1907
  %v1909 = vpop.f32.mrb[0].mxu0
  %1910 = vmatprep.mubr.f32.mxu0 0.0
  %1911 = vmatmul.mubr.f32.gmra.mrb[0].mxu0 %v1082
  %v1912 = vpop.f32.mrb[0].mxu0
  %v1913 = vadd.f32 0.0, %v1912
  %v1914 = vpop.f32.mrb[0].mxu0
  %1915 = vmatprep.mubr.f32.mxu0 0.0
  %1916 = vmatmul.mubr.f32.gmra.mrb[0].mxu0 %v1085
  %v1917 = vpop.f32.mrb[0].mxu0
  %v1918 = vadd.f32 0.0, %v1917
  %v1919 = vpop.f32.mrb[0].mxu0
  %1920 = vmatprep.mubr.f32.mxu0 0.0
  %1921 = vmatmul.mubr.f32.gmra.mrb[0].mxu0 %v1088
  %v1922 = vpop.f32.mrb[0].mxu0
  %v1923 = vadd.f32 0.0, %v1922
  %v1924 = vpop.f32.mrb[0].mxu0
  %1925 = vmatprep.mubr.f32.mxu0 0.0
  %1926 = vmatmul.mubr.f32.gmra.mrb[0].mxu0 %v1091
  %v1927 = vpop.f32.mrb[0].mxu0
  %v1928 = vadd.f32 0.0, %v1927
  %v1929 = vpop.f32.mrb[0].mxu0
  %1930 = vmatprep.mubr.f32.mxu0 0.0
  %1931 = vmatmul.mubr.f32.gmra.mrb[0].mxu0 %v1094
  %v1932 = vpop.f32.mrb[0].mxu0
  %v1933 = vadd.f32 0.0, %v1932
  %v1934 = vpop.f32.mrb[0].mxu0
  %1935 = vmatprep.mubr.f32.mxu0 0.0
  %1936 = vmatmul.mubr.f32.gmra.mrb[0].mxu0 %v1097
  %v1937 = vpop.f32.mrb[0].mxu0
  %v1938 = vadd.f32 0.0, %v1937
  %v1939 = vpop.f32.mrb[0].mxu0
  %1940 = vmatprep.mubr.f32.mxu0 0.0
  %1941 = vmatmul.mubr.f32.gmra.mrb[0].mxu0 %v1100
  %v1942 = vpop.f32.mrb[0].mxu0
  %v1943 = vadd.f32 0.0, %v1942
  %v1944 = vpop.f32.mrb[0].mxu0
  %1945 = vmatprep.mubr.f32.mxu0 0.0
  %1946 = vmatmul.mubr.f32.gmra.mrb[0].mxu0 %v1103
  %v1947 = vpop.f32.mrb[0].mxu0
  %v1948 = vadd.f32 0.0, %v1947
  %v1949 = vpop.f32.mrb[0].mxu0
  %1950 = vdwg.mxu0
  %s1951 = scalar_lea.vmem %s4, 208
  %v1952 = vld [vmem:[%s1951] sm:$0xff]
  %v1953 = vld [vmem:[%s1951 + $0x8] sm:$0xff]
  %v1954 = vld [vmem:[%s1951 + $0x10] sm:$0xff]
  %v1955 = vld [vmem:[%s1951 + $0x18] sm:$0xff]
  %v1956 = vld [vmem:[%s1951 + $0x20] sm:$0xff]
  %v1957 = vld [vmem:[%s1951 + $0x28] sm:$0xff]
  %v1958 = vld [vmem:[%s1951 + $0x30] sm:$0xff]
  %v1959 = vld [vmem:[%s1951 + $0x38] sm:$0xff]
  %v1960 = vld [vmem:[%s1951 + $0x40] sm:$0xff]
  %v1961 = vld [vmem:[%s1951 + $0x48] sm:$0xff]
  %v1962 = vld [vmem:[%s1951 + $0x50] sm:$0xff]
  %v1963 = vld [vmem:[%s1951 + $0x58] sm:$0xff]
  %v1964 = vld [vmem:[%s1951 + $0x60] sm:$0xf]
  %v1966 = vsel %vm1247, %v1952, 0
  %v1969 = vsel %vm1247, %v1953, 0
  %v1972 = vsel %vm1247, %v1954, 0
  %v1975 = vsel %vm1247, %v1955, 0
  %v1978 = vsel %vm1247, %v1956, 0
  %v1981 = vsel %vm1247, %v1957, 0
  %v1984 = vsel %vm1247, %v1958, 0
  %v1987 = vsel %vm1247, %v1959, 0
  %v1990 = vsel %vm1247, %v1960, 0
  %v1993 = vsel %vm1247, %v1961, 0
  %v1996 = vsel %vm1247, %v1962, 0
  %v1999 = vsel %vm1247, %v1963, 0
  %v2002 = vsel %vm1247, %v1964, 0
  %2004 = vmatprep.subr.mxu0 0.0
  %2005 = vmatpush1.msra.mxu0 %v1893
  %2006 = vmatprep.subr.mxu0 0.0
  %2007 = vmatpush1.msra.mxu0 %v1898
  %2008 = vmatprep.subr.mxu0 0.0
  %2009 = vmatpush1.msra.mxu0 %v1903
  %2010 = vmatprep.subr.mxu0 0.0
  %2011 = vmatpush1.msra.mxu0 %v1908
  %2012 = vmatprep.subr.mxu0 0.0
  %2013 = vmatpush1.msra.mxu0 %v1913
  %2014 = vmatprep.subr.mxu0 0.0
  %2015 = vmatpush1.msra.mxu0 %v1918
  %2016 = vmatprep.subr.mxu0 0.0
  %2017 = vmatpush1.msra.mxu0 %v1923
  %2018 = vmatprep.subr.mxu0 0.0
  %2019 = vmatpush1.msra.mxu0 %v1928
  %2020 = vmatprep.subr.mxu0 0.0
  %2021 = vmatpush1.msra.mxu0 %v1933
  %2022 = vmatprep.subr.mxu0 0.0
  %2023 = vmatpush1.msra.mxu0 %v1938
  %2024 = vmatprep.subr.mxu0 0.0
  %2025 = vmatpush1.msra.mxu0 %v1943
  %2026 = vmatprep.subr.mxu0 0.0
  %2027 = vmatpush1.msra.mxu0 %v1948
  %2028 = vmatprep.subr.mxu0 0.0
  %2029 = vmatpush1.msra.mxu0 0.0
  %2030 = vmatprep.subr.mxu0 0.0
  %2031 = vmatpush1.msra.mxu0 0.0
  %2032 = vmatprep.subr.mxu0 0.0
  %2033 = vmatpush1.msra.mxu0 0.0
  %2034 = vmatprep.subr.mxu0 0.0
  %2035 = vmatpush1.msra.mxu0 0.0
  %2036 = vmatprep.subr.mxu0 0.0
  %2037 = vmatpush1.msra.mxu0 0.0
  %2038 = vmatprep.subr.mxu0 0.0
  %2039 = vmatpush1.msra.mxu0 0.0
  %2040 = vmatprep.subr.mxu0 0.0
  %2041 = vmatpush1.msra.mxu0 0.0
  %2042 = vmatprep.subr.mxu0 0.0
  %2043 = vmatpush1.msra.mxu0 0.0
  %2044 = vmatprep.subr.mxu0 0.0
  %2045 = vmatpush1.msra.mxu0 0.0
  %2046 = vmatprep.subr.mxu0 0.0
  %2047 = vmatpush1.msra.mxu0 0.0
  %2048 = vmatprep.subr.mxu0 0.0
  %2049 = vmatpush1.msra.mxu0 0.0
  %2050 = vmatprep.subr.mxu0 0.0
  %2051 = vmatpush1.msra.mxu0 0.0
  %2052 = vmatprep.subr.mxu0 0.0
  %2053 = vmatpush1.msra.mxu0 0.0
  %2054 = vmatprep.subr.mxu0 0.0
  %2055 = vmatpush1.msra.mxu0 0.0
  %2056 = vmatprep.subr.mxu0 0.0
  %2057 = vmatpush1.msra.mxu0 0.0
  %2058 = vmatprep.subr.mxu0 0.0
  %2059 = vmatpush1.msra.mxu0 0.0
  %2060 = vmatprep.subr.mxu0 0.0
  %2061 = vmatpush1.msra.mxu0 0.0
  %2062 = vmatprep.subr.mxu0 0.0
  %2063 = vmatpush1.msra.mxu0 0.0
  %2064 = vmatprep.subr.mxu0 0.0
  %2065 = vmatpush1.msra.mxu0 0.0
  %2066 = vmatprep.subr.mxu0 0.0
  %2067 = vmatpush1.msra.mxu0 0.0
  %2068 = vmatprep.mubr.f32.mxu0 0.0
  %2069 = vmatmul.mubr.f32.gmra.mrb[0].mxu0 %v1966
  %v2070 = vpop.f32.mrb[0].mxu0
  %v2071 = vadd.f32 0.0, %v2070
  %v2072 = vpop.f32.mrb[0].mxu0
  %2073 = vmatprep.mubr.f32.mxu0 0.0
  %2074 = vmatmul.mubr.f32.gmra.mrb[0].mxu0 %v1969
  %v2075 = vpop.f32.mrb[0].mxu0
  %v2076 = vadd.f32 0.0, %v2075
  %v2077 = vpop.f32.mrb[0].mxu0
  %2078 = vmatprep.mubr.f32.mxu0 0.0
  %2079 = vmatmul.mubr.f32.gmra.mrb[0].mxu0 %v1972
  %v2080 = vpop.f32.mrb[0].mxu0
  %v2081 = vadd.f32 0.0, %v2080
  %v2082 = vpop.f32.mrb[0].mxu0
  %2083 = vmatprep.mubr.f32.mxu0 0.0
  %2084 = vmatmul.mubr.f32.gmra.mrb[0].mxu0 %v1975
  %v2085 = vpop.f32.mrb[0].mxu0
  %v2086 = vadd.f32 0.0, %v2085
  %v2087 = vpop.f32.mrb[0].mxu0
  %2088 = vmatprep.mubr.f32.mxu0 0.0
  %2089 = vmatmul.mubr.f32.gmra.mrb[0].mxu0 %v1978
  %v2090 = vpop.f32.mrb[0].mxu0
  %v2091 = vadd.f32 0.0, %v2090
  %v2092 = vpop.f32.mrb[0].mxu0
  %2093 = vmatprep.mubr.f32.mxu0 0.0
  %2094 = vmatmul.mubr.f32.gmra.mrb[0].mxu0 %v1981
  %v2095 = vpop.f32.mrb[0].mxu0
  %v2096 = vadd.f32 0.0, %v2095
  %v2097 = vpop.f32.mrb[0].mxu0
  %2098 = vmatprep.mubr.f32.mxu0 0.0
  %2099 = vmatmul.mubr.f32.gmra.mrb[0].mxu0 %v1984
  %v2100 = vpop.f32.mrb[0].mxu0
  %v2101 = vadd.f32 0.0, %v2100
  %v2102 = vpop.f32.mrb[0].mxu0
  %2103 = vmatprep.mubr.f32.mxu0 0.0
  %2104 = vmatmul.mubr.f32.gmra.mrb[0].mxu0 %v1987
  %v2105 = vpop.f32.mrb[0].mxu0
  %v2106 = vadd.f32 0.0, %v2105
  %v2107 = vpop.f32.mrb[0].mxu0
  %2108 = vmatprep.mubr.f32.mxu0 0.0
  %2109 = vmatmul.mubr.f32.gmra.mrb[0].mxu0 %v1990
  %v2110 = vpop.f32.mrb[0].mxu0
  %v2111 = vadd.f32 0.0, %v2110
  %v2112 = vpop.f32.mrb[0].mxu0
  %2113 = vmatprep.mubr.f32.mxu0 0.0
  %2114 = vmatmul.mubr.f32.gmra.mrb[0].mxu0 %v1993
  %v2115 = vpop.f32.mrb[0].mxu0
  %v2116 = vadd.f32 0.0, %v2115
  %v2117 = vpop.f32.mrb[0].mxu0
  %2118 = vmatprep.mubr.f32.mxu0 0.0
  %2119 = vmatmul.mubr.f32.gmra.mrb[0].mxu0 %v1996
  %v2120 = vpop.f32.mrb[0].mxu0
  %v2121 = vadd.f32 0.0, %v2120
  %v2122 = vpop.f32.mrb[0].mxu0
  %2123 = vmatprep.mubr.f32.mxu0 0.0
  %2124 = vmatmul.mubr.f32.gmra.mrb[0].mxu0 %v1999
  %v2125 = vpop.f32.mrb[0].mxu0
  %v2126 = vadd.f32 0.0, %v2125
  %v2127 = vpop.f32.mrb[0].mxu0
  %2128 = vmatprep.mubr.f32.mxu0 0.0
  %2129 = vmatmul.mubr.f32.gmra.mrb[0].mxu0 %v2002
  %v2130 = vpop.f32.mrb[0].mxu0
  %v2131 = vadd.f32 0.0, %v2130
  %v2132 = vpop.f32.mrb[0].mxu0
  %2133 = vdwg.mxu0
  %v2134 = vadd.f32 %v1808, %v2071
  %v2135 = vadd.f32 %v1809, %v2076
  %v2136 = vadd.f32 %v1810, %v2081
  %v2137 = vadd.f32 %v1811, %v2086
  %v2138 = vadd.f32 %v1812, %v2091
  %v2139 = vadd.f32 %v1813, %v2096
  %v2140 = vadd.f32 %v1814, %v2101
  %v2141 = vadd.f32 %v1815, %v2106
  %v2142 = vadd.f32 %v1816, %v2111
  %v2143 = vadd.f32 %v1817, %v2116
  %v2144 = vadd.f32 %v1818, %v2121
  %v2145 = vadd.f32 %v1819, %v2126
  %v2146 = vadd.f32 %v1820, %v2131
  %v2147 = vmax.f32 %v2134, 0.0
  %v2148 = vmax.f32 %v2135, 0.0
  %v2149 = vmax.f32 %v2136, 0.0
  %v2150 = vmax.f32 %v2137, 0.0
  %v2151 = vmax.f32 %v2138, 0.0
  %v2152 = vmax.f32 %v2139, 0.0
  %v2153 = vmax.f32 %v2140, 0.0
  %v2154 = vmax.f32 %v2141, 0.0
  %v2155 = vmax.f32 %v2142, 0.0
  %v2156 = vmax.f32 %v2143, 0.0
  %v2157 = vmax.f32 %v2144, 0.0
  %v2158 = vmax.f32 %v2145, 0.0
  %v2159 = vmax.f32 %v2146, 0.0
  %v2160 = vld [vmem:[%s8] sm:$0xff]
  %v2161 = vld [vmem:[%s8 + $0x8] sm:$0xff]
  %v2162 = vld [vmem:[%s8 + $0x10] sm:$0xff]
  %v2163 = vld [vmem:[%s8 + $0x18] sm:$0xff]
  %v2164 = vld [vmem:[%s8 + $0x20] sm:$0xff]
  %v2165 = vld [vmem:[%s8 + $0x28] sm:$0xff]
  %v2166 = vld [vmem:[%s8 + $0x30] sm:$0xff]
  %v2167 = vld [vmem:[%s8 + $0x38] sm:$0xff]
  %v2168 = vld [vmem:[%s8 + $0x40] sm:$0xff]
  %v2169 = vld [vmem:[%s8 + $0x48] sm:$0xff]
  %v2170 = vld [vmem:[%s8 + $0x50] sm:$0xff]
  %v2171 = vld [vmem:[%s8 + $0x58] sm:$0xff]
  %v2172 = vld [vmem:[%s8 + $0x60] sm:$0x3f]
  %v2173 = vld [vmem:[%s6] sm:$0xff]
  %v2174 = vld [vmem:[%s6 + $0x8] sm:$0x7]
  %vm2175 = vcmask 89088
  %v2177 = vsel %vm2175, %v2147, 0
  %v2180 = vsel %vm2175, %v2148, 0
  %v2183 = vsel %vm2175, %v2149, 0
  %v2186 = vsel %vm2175, %v2150, 0
  %v2189 = vsel %vm2175, %v2151, 0
  %v2192 = vsel %vm2175, %v2152, 0
  %v2195 = vsel %vm2175, %v2153, 0
  %v2198 = vsel %vm2175, %v2154, 0
  %v2201 = vsel %vm2175, %v2155, 0
  %v2204 = vsel %vm2175, %v2156, 0
  %v2207 = vsel %vm2175, %v2157, 0
  %v2210 = vsel %vm2175, %v2158, 0
  %v2213 = vsel %vm2175, %v2159, 0
  %vm2215 = vcmask 1042432
  %v2217 = vsel %vm2215, %v2174, 0
  %2219 = vmatprep.subr.mxu0 0.0
  %2220 = vmatpush1.msra.mxu0 %v2173
  %2221 = vmatprep.subr.mxu0 0.0
  %2222 = vmatpush1.msra.mxu0 %v2217
  %2223 = vmatprep.subr.mxu0 0.0
  %2224 = vmatpush1.msra.mxu0 0.0
  %2225 = vmatprep.subr.mxu0 0.0
  %2226 = vmatpush1.msra.mxu0 0.0
  %2227 = vmatprep.subr.mxu0 0.0
  %2228 = vmatpush1.msra.mxu0 0.0
  %2229 = vmatprep.subr.mxu0 0.0
  %2230 = vmatpush1.msra.mxu0 0.0
  %2231 = vmatprep.subr.mxu0 0.0
  %2232 = vmatpush1.msra.mxu0 0.0
  %2233 = vmatprep.subr.mxu0 0.0
  %2234 = vmatpush1.msra.mxu0 0.0
  %2235 = vmatprep.subr.mxu0 0.0
  %2236 = vmatpush1.msra.mxu0 0.0
  %2237 = vmatprep.subr.mxu0 0.0
  %2238 = vmatpush1.msra.mxu0 0.0
  %2239 = vmatprep.subr.mxu0 0.0
  %2240 = vmatpush1.msra.mxu0 0.0
  %2241 = vmatprep.subr.mxu0 0.0
  %2242 = vmatpush1.msra.mxu0 0.0
  %2243 = vmatprep.subr.mxu0 0.0
  %2244 = vmatpush1.msra.mxu0 0.0
  %2245 = vmatprep.subr.mxu0 0.0
  %2246 = vmatpush1.msra.mxu0 0.0
  %2247 = vmatprep.subr.mxu0 0.0
  %2248 = vmatpush1.msra.mxu0 0.0
  %2249 = vmatprep.subr.mxu0 0.0
  %2250 = vmatpush1.msra.mxu0 0.0
  %2251 = vmatprep.subr.mxu0 0.0
  %2252 = vmatpush1.msra.mxu0 0.0
  %2253 = vmatprep.subr.mxu0 0.0
  %2254 = vmatpush1.msra.mxu0 0.0
  %2255 = vmatprep.subr.mxu0 0.0
  %2256 = vmatpush1.msra.mxu0 0.0
  %2257 = vmatprep.subr.mxu0 0.0
  %2258 = vmatpush1.msra.mxu0 0.0
  %2259 = vmatprep.subr.mxu0 0.0
  %2260 = vmatpush1.msra.mxu0 0.0
  %2261 = vmatprep.subr.mxu0 0.0
  %2262 = vmatpush1.msra.mxu0 0.0
  %2263 = vmatprep.subr.mxu0 0.0
  %2264 = vmatpush1.msra.mxu0 0.0
  %2265 = vmatprep.subr.mxu0 0.0
  %2266 = vmatpush1.msra.mxu0 0.0
  %2267 = vmatprep.subr.mxu0 0.0
  %2268 = vmatpush1.msra.mxu0 0.0
  %2269 = vmatprep.subr.mxu0 0.0
  %2270 = vmatpush1.msra.mxu0 0.0
  %2271 = vmatprep.subr.mxu0 0.0
  %2272 = vmatpush1.msra.mxu0 0.0
  %2273 = vmatprep.subr.mxu0 0.0
  %2274 = vmatpush1.msra.mxu0 0.0
  %2275 = vmatprep.subr.mxu0 0.0
  %2276 = vmatpush1.msra.mxu0 0.0
  %2277 = vmatprep.subr.mxu0 0.0
  %2278 = vmatpush1.msra.mxu0 0.0
  %2279 = vmatprep.subr.mxu0 0.0
  %2280 = vmatpush1.msra.mxu0 0.0
  %2281 = vmatprep.subr.mxu0 0.0
  %2282 = vmatpush1.msra.mxu0 0.0
  %2283 = vmatprep.mubr.f32.mxu0 0.0
  %2284 = vmatmul.mubr.f32.gmra.mrb[0].mxu0 %v2177
  %v2285 = vpop.f32.mrb[0].mxu0
  %v2286 = vadd.f32 0.0, %v2285
  %v2287 = vpop.f32.mrb[0].mxu0
  %2288 = vmatprep.mubr.f32.mxu0 0.0
  %2289 = vmatmul.mubr.f32.gmra.mrb[0].mxu0 %v2180
  %v2290 = vpop.f32.mrb[0].mxu0
  %v2291 = vadd.f32 0.0, %v2290
  %v2292 = vpop.f32.mrb[0].mxu0
  %2293 = vmatprep.mubr.f32.mxu0 0.0
  %2294 = vmatmul.mubr.f32.gmra.mrb[0].mxu0 %v2183
  %v2295 = vpop.f32.mrb[0].mxu0
  %v2296 = vadd.f32 0.0, %v2295
  %v2297 = vpop.f32.mrb[0].mxu0
  %2298 = vmatprep.mubr.f32.mxu0 0.0
  %2299 = vmatmul.mubr.f32.gmra.mrb[0].mxu0 %v2186
  %v2300 = vpop.f32.mrb[0].mxu0
  %v2301 = vadd.f32 0.0, %v2300
  %v2302 = vpop.f32.mrb[0].mxu0
  %2303 = vmatprep.mubr.f32.mxu0 0.0
  %2304 = vmatmul.mubr.f32.gmra.mrb[0].mxu0 %v2189
  %v2305 = vpop.f32.mrb[0].mxu0
  %v2306 = vadd.f32 0.0, %v2305
  %v2307 = vpop.f32.mrb[0].mxu0
  %2308 = vmatprep.mubr.f32.mxu0 0.0
  %2309 = vmatmul.mubr.f32.gmra.mrb[0].mxu0 %v2192
  %v2310 = vpop.f32.mrb[0].mxu0
  %v2311 = vadd.f32 0.0, %v2310
  %v2312 = vpop.f32.mrb[0].mxu0
  %2313 = vmatprep.mubr.f32.mxu0 0.0
  %2314 = vmatmul.mubr.f32.gmra.mrb[0].mxu0 %v2195
  %v2315 = vpop.f32.mrb[0].mxu0
  %v2316 = vadd.f32 0.0, %v2315
  %v2317 = vpop.f32.mrb[0].mxu0
  %2318 = vmatprep.mubr.f32.mxu0 0.0
  %2319 = vmatmul.mubr.f32.gmra.mrb[0].mxu0 %v2198
  %v2320 = vpop.f32.mrb[0].mxu0
  %v2321 = vadd.f32 0.0, %v2320
  %v2322 = vpop.f32.mrb[0].mxu0
  %2323 = vmatprep.mubr.f32.mxu0 0.0
  %2324 = vmatmul.mubr.f32.gmra.mrb[0].mxu0 %v2201
  %v2325 = vpop.f32.mrb[0].mxu0
  %v2326 = vadd.f32 0.0, %v2325
  %v2327 = vpop.f32.mrb[0].mxu0
  %2328 = vmatprep.mubr.f32.mxu0 0.0
  %2329 = vmatmul.mubr.f32.gmra.mrb[0].mxu0 %v2204
  %v2330 = vpop.f32.mrb[0].mxu0
  %v2331 = vadd.f32 0.0, %v2330
  %v2332 = vpop.f32.mrb[0].mxu0
  %2333 = vmatprep.mubr.f32.mxu0 0.0
  %2334 = vmatmul.mubr.f32.gmra.mrb[0].mxu0 %v2207
  %v2335 = vpop.f32.mrb[0].mxu0
  %v2336 = vadd.f32 0.0, %v2335
  %v2337 = vpop.f32.mrb[0].mxu0
  %2338 = vmatprep.mubr.f32.mxu0 0.0
  %2339 = vmatmul.mubr.f32.gmra.mrb[0].mxu0 %v2210
  %v2340 = vpop.f32.mrb[0].mxu0
  %v2341 = vadd.f32 0.0, %v2340
  %v2342 = vpop.f32.mrb[0].mxu0
  %2343 = vmatprep.mubr.f32.mxu0 0.0
  %2344 = vmatmul.mubr.f32.gmra.mrb[0].mxu0 %v2213
  %v2345 = vpop.f32.mrb[0].mxu0
  %v2346 = vadd.f32 0.0, %v2345
  %v2347 = vpop.f32.mrb[0].mxu0
  %2348 = vdwg.mxu0
  %v2349 = vld [vmem:[%s7] sm:$0xff]
  %v2350 = vld [vmem:[%s7 + $0x8] sm:$0xff]
  %v2351 = vld [vmem:[%s7 + $0x10] sm:$0xff]
  %v2352 = vld [vmem:[%s7 + $0x18] sm:$0xff]
  %v2353 = vld [vmem:[%s7 + $0x20] sm:$0xff]
  %v2354 = vld [vmem:[%s7 + $0x28] sm:$0xff]
  %v2355 = vld [vmem:[%s7 + $0x30] sm:$0xff]
  %v2356 = vld [vmem:[%s7 + $0x38] sm:$0xff]
  %v2357 = vld [vmem:[%s7 + $0x40] sm:$0xff]
  %v2358 = vld [vmem:[%s7 + $0x48] sm:$0xff]
  %v2359 = vld [vmem:[%s7 + $0x50] sm:$0xff]
  %v2360 = vld [vmem:[%s7 + $0x58] sm:$0xff]
  %v2361 = vld [vmem:[%s7 + $0x60] sm:$0x3f]
  %vm2362 = vcmask 818176
  %v2364 = vsel %vm2362, %v2349, 0
  %v2367 = vsel %vm2362, %v2350, 0
  %v2370 = vsel %vm2362, %v2351, 0
  %v2373 = vsel %vm2362, %v2352, 0
  %v2376 = vsel %vm2362, %v2353, 0
  %v2379 = vsel %vm2362, %v2354, 0
  %v2382 = vsel %vm2362, %v2355, 0
  %v2385 = vsel %vm2362, %v2356, 0
  %v2388 = vsel %vm2362, %v2357, 0
  %v2391 = vsel %vm2362, %v2358, 0
  %v2394 = vsel %vm2362, %v2359, 0
  %v2397 = vsel %vm2362, %v2360, 0
  %v2400 = vsel %vm2362, %v2361, 0
  %v2403 = vsel %vm356, %v2346, 0
  %2405 = vmatprep.subr.mxu0 0.0
  %2406 = vmatpush1.msra.mxu0 %v2286
  %2407 = vmatprep.subr.mxu0 0.0
  %2408 = vmatpush1.msra.mxu0 %v2291
  %2409 = vmatprep.subr.mxu0 0.0
  %2410 = vmatpush1.msra.mxu0 %v2296
  %2411 = vmatprep.subr.mxu0 0.0
  %2412 = vmatpush1.msra.mxu0 %v2301
  %2413 = vmatprep.subr.mxu0 0.0
  %2414 = vmatpush1.msra.mxu0 %v2306
  %2415 = vmatprep.subr.mxu0 0.0
  %2416 = vmatpush1.msra.mxu0 %v2311
  %2417 = vmatprep.subr.mxu0 0.0
  %2418 = vmatpush1.msra.mxu0 %v2316
  %2419 = vmatprep.subr.mxu0 0.0
  %2420 = vmatpush1.msra.mxu0 %v2321
  %2421 = vmatprep.subr.mxu0 0.0
  %2422 = vmatpush1.msra.mxu0 %v2326
  %2423 = vmatprep.subr.mxu0 0.0
  %2424 = vmatpush1.msra.mxu0 %v2331
  %2425 = vmatprep.subr.mxu0 0.0
  %2426 = vmatpush1.msra.mxu0 %v2336
  %2427 = vmatprep.subr.mxu0 0.0
  %2428 = vmatpush1.msra.mxu0 %v2341
  %2429 = vmatprep.subr.mxu0 0.0
  %2430 = vmatpush1.msra.mxu0 %v2403
  %2431 = vmatprep.subr.mxu0 0.0
  %2432 = vmatpush1.msra.mxu0 0.0
  %2433 = vmatprep.subr.mxu0 0.0
  %2434 = vmatpush1.msra.mxu0 0.0
  %2435 = vmatprep.subr.mxu0 0.0
  %2436 = vmatpush1.msra.mxu0 0.0
  %2437 = vmatprep.subr.mxu0 0.0
  %2438 = vmatpush1.msra.mxu0 0.0
  %2439 = vmatprep.subr.mxu0 0.0
  %2440 = vmatpush1.msra.mxu0 0.0
  %2441 = vmatprep.subr.mxu0 0.0
  %2442 = vmatpush1.msra.mxu0 0.0
  %2443 = vmatprep.subr.mxu0 0.0
  %2444 = vmatpush1.msra.mxu0 0.0
  %2445 = vmatprep.subr.mxu0 0.0
  %2446 = vmatpush1.msra.mxu0 0.0
  %2447 = vmatprep.subr.mxu0 0.0
  %2448 = vmatpush1.msra.mxu0 0.0
  %2449 = vmatprep.subr.mxu0 0.0
  %2450 = vmatpush1.msra.mxu0 0.0
  %2451 = vmatprep.subr.mxu0 0.0
  %2452 = vmatpush1.msra.mxu0 0.0
  %2453 = vmatprep.subr.mxu0 0.0
  %2454 = vmatpush1.msra.mxu0 0.0
  %2455 = vmatprep.subr.mxu0 0.0
  %2456 = vmatpush1.msra.mxu0 0.0
  %2457 = vmatprep.subr.mxu0 0.0
  %2458 = vmatpush1.msra.mxu0 0.0
  %2459 = vmatprep.subr.mxu0 0.0
  %2460 = vmatpush1.msra.mxu0 0.0
  %2461 = vmatprep.subr.mxu0 0.0
  %2462 = vmatpush1.msra.mxu0 0.0
  %2463 = vmatprep.subr.mxu0 0.0
  %2464 = vmatpush1.msra.mxu0 0.0
  %2465 = vmatprep.subr.mxu0 0.0
  %2466 = vmatpush1.msra.mxu0 0.0
  %2467 = vmatprep.subr.mxu0 0.0
  %2468 = vmatpush1.msra.mxu0 0.0
  %2469 = vmatprep.mubr.f32.mxu0 0.0
  %2470 = vmatmul.mubr.f32.gmra.mrb[0].mxu0 %v2364
  %v2471 = vpop.f32.mrb[0].mxu0
  %v2472 = vadd.f32 0.0, %v2471
  %v2473 = vpop.f32.mrb[0].mxu0
  %2474 = vmatprep.mubr.f32.mxu0 0.0
  %2475 = vmatmul.mubr.f32.gmra.mrb[0].mxu0 %v2367
  %v2476 = vpop.f32.mrb[0].mxu0
  %v2477 = vadd.f32 0.0, %v2476
  %v2478 = vpop.f32.mrb[0].mxu0
  %2479 = vmatprep.mubr.f32.mxu0 0.0
  %2480 = vmatmul.mubr.f32.gmra.mrb[0].mxu0 %v2370
  %v2481 = vpop.f32.mrb[0].mxu0
  %v2482 = vadd.f32 0.0, %v2481
  %v2483 = vpop.f32.mrb[0].mxu0
  %2484 = vmatprep.mubr.f32.mxu0 0.0
  %2485 = vmatmul.mubr.f32.gmra.mrb[0].mxu0 %v2373
  %v2486 = vpop.f32.mrb[0].mxu0
  %v2487 = vadd.f32 0.0, %v2486
  %v2488 = vpop.f32.mrb[0].mxu0
  %2489 = vmatprep.mubr.f32.mxu0 0.0
  %2490 = vmatmul.mubr.f32.gmra.mrb[0].mxu0 %v2376
  %v2491 = vpop.f32.mrb[0].mxu0
  %v2492 = vadd.f32 0.0, %v2491
  %v2493 = vpop.f32.mrb[0].mxu0
  %2494 = vmatprep.mubr.f32.mxu0 0.0
  %2495 = vmatmul.mubr.f32.gmra.mrb[0].mxu0 %v2379
  %v2496 = vpop.f32.mrb[0].mxu0
  %v2497 = vadd.f32 0.0, %v2496
  %v2498 = vpop.f32.mrb[0].mxu0
  %2499 = vmatprep.mubr.f32.mxu0 0.0
  %2500 = vmatmul.mubr.f32.gmra.mrb[0].mxu0 %v2382
  %v2501 = vpop.f32.mrb[0].mxu0
  %v2502 = vadd.f32 0.0, %v2501
  %v2503 = vpop.f32.mrb[0].mxu0
  %2504 = vmatprep.mubr.f32.mxu0 0.0
  %2505 = vmatmul.mubr.f32.gmra.mrb[0].mxu0 %v2385
  %v2506 = vpop.f32.mrb[0].mxu0
  %v2507 = vadd.f32 0.0, %v2506
  %v2508 = vpop.f32.mrb[0].mxu0
  %2509 = vmatprep.mubr.f32.mxu0 0.0
  %2510 = vmatmul.mubr.f32.gmra.mrb[0].mxu0 %v2388
  %v2511 = vpop.f32.mrb[0].mxu0
  %v2512 = vadd.f32 0.0, %v2511
  %v2513 = vpop.f32.mrb[0].mxu0
  %2514 = vmatprep.mubr.f32.mxu0 0.0
  %2515 = vmatmul.mubr.f32.gmra.mrb[0].mxu0 %v2391
  %v2516 = vpop.f32.mrb[0].mxu0
  %v2517 = vadd.f32 0.0, %v2516
  %v2518 = vpop.f32.mrb[0].mxu0
  %2519 = vmatprep.mubr.f32.mxu0 0.0
  %2520 = vmatmul.mubr.f32.gmra.mrb[0].mxu0 %v2394
  %v2521 = vpop.f32.mrb[0].mxu0
  %v2522 = vadd.f32 0.0, %v2521
  %v2523 = vpop.f32.mrb[0].mxu0
  %2524 = vmatprep.mubr.f32.mxu0 0.0
  %2525 = vmatmul.mubr.f32.gmra.mrb[0].mxu0 %v2397
  %v2526 = vpop.f32.mrb[0].mxu0
  %v2527 = vadd.f32 0.0, %v2526
  %v2528 = vpop.f32.mrb[0].mxu0
  %2529 = vmatprep.mubr.f32.mxu0 0.0
  %2530 = vmatmul.mubr.f32.gmra.mrb[0].mxu0 %v2400
  %v2531 = vpop.f32.mrb[0].mxu0
  %v2532 = vadd.f32 0.0, %v2531
  %v2533 = vpop.f32.mrb[0].mxu0
  %2534 = vdwg.mxu0
  %2536 = vset.pattern.permute.xlu0 0
  %2537 = vperm.xlu0 %2536, %v2160
  %v2538 = vpop.permute.xlu0 %2537
  %2541 = vset.pattern.permute.xlu0 0
  %2542 = vperm.xlu0 %2541, %v2161
  %v2543 = vpop.permute.xlu0 %2542
  %2546 = vset.pattern.permute.xlu0 0
  %2547 = vperm.xlu0 %2546, %v2162
  %v2548 = vpop.permute.xlu0 %2547
  %2551 = vset.pattern.permute.xlu0 0
  %2552 = vperm.xlu0 %2551, %v2163
  %v2553 = vpop.permute.xlu0 %2552
  %2556 = vset.pattern.permute.xlu0 0
  %2557 = vperm.xlu0 %2556, %v2164
  %v2558 = vpop.permute.xlu0 %2557
  %2561 = vset.pattern.permute.xlu0 0
  %2562 = vperm.xlu0 %2561, %v2165
  %v2563 = vpop.permute.xlu0 %2562
  %2566 = vset.pattern.permute.xlu0 0
  %2567 = vperm.xlu0 %2566, %v2166
  %v2568 = vpop.permute.xlu0 %2567
  %2571 = vset.pattern.permute.xlu0 0
  %2572 = vperm.xlu0 %2571, %v2167
  %v2573 = vpop.permute.xlu0 %2572
  %2576 = vset.pattern.permute.xlu0 0
  %2577 = vperm.xlu0 %2576, %v2168
  %v2578 = vpop.permute.xlu0 %2577
  %2581 = vset.pattern.permute.xlu0 0
  %2582 = vperm.xlu0 %2581, %v2169
  %v2583 = vpop.permute.xlu0 %2582
  %2586 = vset.pattern.permute.xlu0 0
  %2587 = vperm.xlu0 %2586, %v2170
  %v2588 = vpop.permute.xlu0 %2587
  %2591 = vset.pattern.permute.xlu0 0
  %2592 = vperm.xlu0 %2591, %v2171
  %v2593 = vpop.permute.xlu0 %2592
  %2596 = vset.pattern.permute.xlu0 0
  %2597 = vperm.xlu0 %2596, %v2172
  %v2598 = vpop.permute.xlu0 %2597
  %v2600 = vadd.f32 %v2538, %v2472
  %v2601 = vadd.f32 %v2543, %v2477
  %v2602 = vadd.f32 %v2548, %v2482
  %v2603 = vadd.f32 %v2553, %v2487
  %v2604 = vadd.f32 %v2558, %v2492
  %v2605 = vadd.f32 %v2563, %v2497
  %v2606 = vadd.f32 %v2568, %v2502
  %v2607 = vadd.f32 %v2573, %v2507
  %v2608 = vadd.f32 %v2578, %v2512
  %v2609 = vadd.f32 %v2583, %v2517
  %v2610 = vadd.f32 %v2588, %v2522
  %v2611 = vadd.f32 %v2593, %v2527
  %v2612 = vadd.f32 %v2598, %v2532
  %s2613 = scalar_lea.vmem %s6, 16
  %v2614 = vld [vmem:[%s2613] sm:$0xff]
  %v2615 = vld [vmem:[%s2613 + $0x8] sm:$0x7]
  %v2617 = vsel %vm2215, %v2615, 0
  %2619 = vmatprep.subr.mxu0 0.0
  %2620 = vmatpush1.msra.mxu0 %v2614
  %2621 = vmatprep.subr.mxu0 0.0
  %2622 = vmatpush1.msra.mxu0 %v2617
  %2623 = vmatprep.subr.mxu0 0.0
  %2624 = vmatpush1.msra.mxu0 0.0
  %2625 = vmatprep.subr.mxu0 0.0
  %2626 = vmatpush1.msra.mxu0 0.0
  %2627 = vmatprep.subr.mxu0 0.0
  %2628 = vmatpush1.msra.mxu0 0.0
  %2629 = vmatprep.subr.mxu0 0.0
  %2630 = vmatpush1.msra.mxu0 0.0
  %2631 = vmatprep.subr.mxu0 0.0
  %2632 = vmatpush1.msra.mxu0 0.0
  %2633 = vmatprep.subr.mxu0 0.0
  %2634 = vmatpush1.msra.mxu0 0.0
  %2635 = vmatprep.subr.mxu0 0.0
  %2636 = vmatpush1.msra.mxu0 0.0
  %2637 = vmatprep.subr.mxu0 0.0
  %2638 = vmatpush1.msra.mxu0 0.0
  %2639 = vmatprep.subr.mxu0 0.0
  %2640 = vmatpush1.msra.mxu0 0.0
  %2641 = vmatprep.subr.mxu0 0.0
  %2642 = vmatpush1.msra.mxu0 0.0
  %2643 = vmatprep.subr.mxu0 0.0
  %2644 = vmatpush1.msra.mxu0 0.0
  %2645 = vmatprep.subr.mxu0 0.0
  %2646 = vmatpush1.msra.mxu0 0.0
  %2647 = vmatprep.subr.mxu0 0.0
  %2648 = vmatpush1.msra.mxu0 0.0
  %2649 = vmatprep.subr.mxu0 0.0
  %2650 = vmatpush1.msra.mxu0 0.0
  %2651 = vmatprep.subr.mxu0 0.0
  %2652 = vmatpush1.msra.mxu0 0.0
  %2653 = vmatprep.subr.mxu0 0.0
  %2654 = vmatpush1.msra.mxu0 0.0
  %2655 = vmatprep.subr.mxu0 0.0
  %2656 = vmatpush1.msra.mxu0 0.0
  %2657 = vmatprep.subr.mxu0 0.0
  %2658 = vmatpush1.msra.mxu0 0.0
  %2659 = vmatprep.subr.mxu0 0.0
  %2660 = vmatpush1.msra.mxu0 0.0
  %2661 = vmatprep.subr.mxu0 0.0
  %2662 = vmatpush1.msra.mxu0 0.0
  %2663 = vmatprep.subr.mxu0 0.0
  %2664 = vmatpush1.msra.mxu0 0.0
  %2665 = vmatprep.subr.mxu0 0.0
  %2666 = vmatpush1.msra.mxu0 0.0
  %2667 = vmatprep.subr.mxu0 0.0
  %2668 = vmatpush1.msra.mxu0 0.0
  %2669 = vmatprep.subr.mxu0 0.0
  %2670 = vmatpush1.msra.mxu0 0.0
  %2671 = vmatprep.subr.mxu0 0.0
  %2672 = vmatpush1.msra.mxu0 0.0
  %2673 = vmatprep.subr.mxu0 0.0
  %2674 = vmatpush1.msra.mxu0 0.0
  %2675 = vmatprep.subr.mxu0 0.0
  %2676 = vmatpush1.msra.mxu0 0.0
  %2677 = vmatprep.subr.mxu0 0.0
  %2678 = vmatpush1.msra.mxu0 0.0
  %2679 = vmatprep.subr.mxu0 0.0
  %2680 = vmatpush1.msra.mxu0 0.0
  %2681 = vmatprep.subr.mxu0 0.0
  %2682 = vmatpush1.msra.mxu0 0.0
  %2683 = vmatprep.mubr.f32.mxu0 0.0
  %2684 = vmatmul.mubr.f32.gmra.mrb[0].mxu0 %v2177
  %v2685 = vpop.f32.mrb[0].mxu0
  %v2686 = vadd.f32 0.0, %v2685
  %v2687 = vpop.f32.mrb[0].mxu0
  %2688 = vmatprep.mubr.f32.mxu0 0.0
  %2689 = vmatmul.mubr.f32.gmra.mrb[0].mxu0 %v2180
  %v2690 = vpop.f32.mrb[0].mxu0
  %v2691 = vadd.f32 0.0, %v2690
  %v2692 = vpop.f32.mrb[0].mxu0
  %2693 = vmatprep.mubr.f32.mxu0 0.0
  %2694 = vmatmul.mubr.f32.gmra.mrb[0].mxu0 %v2183
  %v2695 = vpop.f32.mrb[0].mxu0
  %v2696 = vadd.f32 0.0, %v2695
  %v2697 = vpop.f32.mrb[0].mxu0
  %2698 = vmatprep.mubr.f32.mxu0 0.0
  %2699 = vmatmul.mubr.f32.gmra.mrb[0].mxu0 %v2186
  %v2700 = vpop.f32.mrb[0].mxu0
  %v2701 = vadd.f32 0.0, %v2700
  %v2702 = vpop.f32.mrb[0].mxu0
  %2703 = vmatprep.mubr.f32.mxu0 0.0
  %2704 = vmatmul.mubr.f32.gmra.mrb[0].mxu0 %v2189
  %v2705 = vpop.f32.mrb[0].mxu0
  %v2706 = vadd.f32 0.0, %v2705
  %v2707 = vpop.f32.mrb[0].mxu0
  %2708 = vmatprep.mubr.f32.mxu0 0.0
  %2709 = vmatmul.mubr.f32.gmra.mrb[0].mxu0 %v2192
  %v2710 = vpop.f32.mrb[0].mxu0
  %v2711 = vadd.f32 0.0, %v2710
  %v2712 = vpop.f32.mrb[0].mxu0
  %2713 = vmatprep.mubr.f32.mxu0 0.0
  %2714 = vmatmul.mubr.f32.gmra.mrb[0].mxu0 %v2195
  %v2715 = vpop.f32.mrb[0].mxu0
  %v2716 = vadd.f32 0.0, %v2715
  %v2717 = vpop.f32.mrb[0].mxu0
  %2718 = vmatprep.mubr.f32.mxu0 0.0
  %2719 = vmatmul.mubr.f32.gmra.mrb[0].mxu0 %v2198
  %v2720 = vpop.f32.mrb[0].mxu0
  %v2721 = vadd.f32 0.0, %v2720
  %v2722 = vpop.f32.mrb[0].mxu0
  %2723 = vmatprep.mubr.f32.mxu0 0.0
  %2724 = vmatmul.mubr.f32.gmra.mrb[0].mxu0 %v2201
  %v2725 = vpop.f32.mrb[0].mxu0
  %v2726 = vadd.f32 0.0, %v2725
  %v2727 = vpop.f32.mrb[0].mxu0
  %2728 = vmatprep.mubr.f32.mxu0 0.0
  %2729 = vmatmul.mubr.f32.gmra.mrb[0].mxu0 %v2204
  %v2730 = vpop.f32.mrb[0].mxu0
  %v2731 = vadd.f32 0.0, %v2730
  %v2732 = vpop.f32.mrb[0].mxu0
  %2733 = vmatprep.mubr.f32.mxu0 0.0
  %2734 = vmatmul.mubr.f32.gmra.mrb[0].mxu0 %v2207
  %v2735 = vpop.f32.mrb[0].mxu0
  %v2736 = vadd.f32 0.0, %v2735
  %v2737 = vpop.f32.mrb[0].mxu0
  %2738 = vmatprep.mubr.f32.mxu0 0.0
  %2739 = vmatmul.mubr.f32.gmra.mrb[0].mxu0 %v2210
  %v2740 = vpop.f32.mrb[0].mxu0
  %v2741 = vadd.f32 0.0, %v2740
  %v2742 = vpop.f32.mrb[0].mxu0
  %2743 = vmatprep.mubr.f32.mxu0 0.0
  %2744 = vmatmul.mubr.f32.gmra.mrb[0].mxu0 %v2213
  %v2745 = vpop.f32.mrb[0].mxu0
  %v2746 = vadd.f32 0.0, %v2745
  %v2747 = vpop.f32.mrb[0].mxu0
  %2748 = vdwg.mxu0
  %s2749 = scalar_lea.vmem %s7, 104
  %v2750 = vld [vmem:[%s2749] sm:$0xff]
  %v2751 = vld [vmem:[%s2749 + $0x8] sm:$0xff]
  %v2752 = vld [vmem:[%s2749 + $0x10] sm:$0xff]
  %v2753 = vld [vmem:[%s2749 + $0x18] sm:$0xff]
  %v2754 = vld [vmem:[%s2749 + $0x20] sm:$0xff]
  %v2755 = vld [vmem:[%s2749 + $0x28] sm:$0xff]
  %v2756 = vld [vmem:[%s2749 + $0x30] sm:$0xff]
  %v2757 = vld [vmem:[%s2749 + $0x38] sm:$0xff]
  %v2758 = vld [vmem:[%s2749 + $0x40] sm:$0xff]
  %v2759 = vld [vmem:[%s2749 + $0x48] sm:$0xff]
  %v2760 = vld [vmem:[%s2749 + $0x50] sm:$0xff]
  %v2761 = vld [vmem:[%s2749 + $0x58] sm:$0xff]
  %v2762 = vld [vmem:[%s2749 + $0x60] sm:$0x3f]
  %v2764 = vsel %vm2362, %v2750, 0
  %v2767 = vsel %vm2362, %v2751, 0
  %v2770 = vsel %vm2362, %v2752, 0
  %v2773 = vsel %vm2362, %v2753, 0
  %v2776 = vsel %vm2362, %v2754, 0
  %v2779 = vsel %vm2362, %v2755, 0
  %v2782 = vsel %vm2362, %v2756, 0
  %v2785 = vsel %vm2362, %v2757, 0
  %v2788 = vsel %vm2362, %v2758, 0
  %v2791 = vsel %vm2362, %v2759, 0
  %v2794 = vsel %vm2362, %v2760, 0
  %v2797 = vsel %vm2362, %v2761, 0
  %v2800 = vsel %vm2362, %v2762, 0
  %v2803 = vsel %vm356, %v2746, 0
  %2805 = vmatprep.subr.mxu0 0.0
  %2806 = vmatpush1.msra.mxu0 %v2686
  %2807 = vmatprep.subr.mxu0 0.0
  %2808 = vmatpush1.msra.mxu0 %v2691
  %2809 = vmatprep.subr.mxu0 0.0
  %2810 = vmatpush1.msra.mxu0 %v2696
  %2811 = vmatprep.subr.mxu0 0.0
  %2812 = vmatpush1.msra.mxu0 %v2701
  %2813 = vmatprep.subr.mxu0 0.0
  %2814 = vmatpush1.msra.mxu0 %v2706
  %2815 = vmatprep.subr.mxu0 0.0
  %2816 = vmatpush1.msra.mxu0 %v2711
  %2817 = vmatprep.subr.mxu0 0.0
  %2818 = vmatpush1.msra.mxu0 %v2716
  %2819 = vmatprep.subr.mxu0 0.0
  %2820 = vmatpush1.msra.mxu0 %v2721
  %2821 = vmatprep.subr.mxu0 0.0
  %2822 = vmatpush1.msra.mxu0 %v2726
  %2823 = vmatprep.subr.mxu0 0.0
  %2824 = vmatpush1.msra.mxu0 %v2731
  %2825 = vmatprep.subr.mxu0 0.0
  %2826 = vmatpush1.msra.mxu0 %v2736
  %2827 = vmatprep.subr.mxu0 0.0
  %2828 = vmatpush1.msra.mxu0 %v2741
  %2829 = vmatprep.subr.mxu0 0.0
  %2830 = vmatpush1.msra.mxu0 %v2803
  %2831 = vmatprep.subr.mxu0 0.0
  %2832 = vmatpush1.msra.mxu0 0.0
  %2833 = vmatprep.subr.mxu0 0.0
  %2834 = vmatpush1.msra.mxu0 0.0
  %2835 = vmatprep.subr.mxu0 0.0
  %2836 = vmatpush1.msra.mxu0 0.0
  %2837 = vmatprep.subr.mxu0 0.0
  %2838 = vmatpush1.msra.mxu0 0.0
  %2839 = vmatprep.subr.mxu0 0.0
  %2840 = vmatpush1.msra.mxu0 0.0
  %2841 = vmatprep.subr.mxu0 0.0
  %2842 = vmatpush1.msra.mxu0 0.0
  %2843 = vmatprep.subr.mxu0 0.0
  %2844 = vmatpush1.msra.mxu0 0.0
  %2845 = vmatprep.subr.mxu0 0.0
  %2846 = vmatpush1.msra.mxu0 0.0
  %2847 = vmatprep.subr.mxu0 0.0
  %2848 = vmatpush1.msra.mxu0 0.0
  %2849 = vmatprep.subr.mxu0 0.0
  %2850 = vmatpush1.msra.mxu0 0.0
  %2851 = vmatprep.subr.mxu0 0.0
  %2852 = vmatpush1.msra.mxu0 0.0
  %2853 = vmatprep.subr.mxu0 0.0
  %2854 = vmatpush1.msra.mxu0 0.0
  %2855 = vmatprep.subr.mxu0 0.0
  %2856 = vmatpush1.msra.mxu0 0.0
  %2857 = vmatprep.subr.mxu0 0.0
  %2858 = vmatpush1.msra.mxu0 0.0
  %2859 = vmatprep.subr.mxu0 0.0
  %2860 = vmatpush1.msra.mxu0 0.0
  %2861 = vmatprep.subr.mxu0 0.0
  %2862 = vmatpush1.msra.mxu0 0.0
  %2863 = vmatprep.subr.mxu0 0.0
  %2864 = vmatpush1.msra.mxu0 0.0
  %2865 = vmatprep.subr.mxu0 0.0
  %2866 = vmatpush1.msra.mxu0 0.0
  %2867 = vmatprep.subr.mxu0 0.0
  %2868 = vmatpush1.msra.mxu0 0.0
  %2869 = vmatprep.mubr.f32.mxu0 0.0
  %2870 = vmatmul.mubr.f32.gmra.mrb[0].mxu0 %v2764
  %v2871 = vpop.f32.mrb[0].mxu0
  %v2872 = vadd.f32 0.0, %v2871
  %v2873 = vpop.f32.mrb[0].mxu0
  %2874 = vmatprep.mubr.f32.mxu0 0.0
  %2875 = vmatmul.mubr.f32.gmra.mrb[0].mxu0 %v2767
  %v2876 = vpop.f32.mrb[0].mxu0
  %v2877 = vadd.f32 0.0, %v2876
  %v2878 = vpop.f32.mrb[0].mxu0
  %2879 = vmatprep.mubr.f32.mxu0 0.0
  %2880 = vmatmul.mubr.f32.gmra.mrb[0].mxu0 %v2770
  %v2881 = vpop.f32.mrb[0].mxu0
  %v2882 = vadd.f32 0.0, %v2881
  %v2883 = vpop.f32.mrb[0].mxu0
  %2884 = vmatprep.mubr.f32.mxu0 0.0
  %2885 = vmatmul.mubr.f32.gmra.mrb[0].mxu0 %v2773
  %v2886 = vpop.f32.mrb[0].mxu0
  %v2887 = vadd.f32 0.0, %v2886
  %v2888 = vpop.f32.mrb[0].mxu0
  %2889 = vmatprep.mubr.f32.mxu0 0.0
  %2890 = vmatmul.mubr.f32.gmra.mrb[0].mxu0 %v2776
  %v2891 = vpop.f32.mrb[0].mxu0
  %v2892 = vadd.f32 0.0, %v2891
  %v2893 = vpop.f32.mrb[0].mxu0
  %2894 = vmatprep.mubr.f32.mxu0 0.0
  %2895 = vmatmul.mubr.f32.gmra.mrb[0].mxu0 %v2779
  %v2896 = vpop.f32.mrb[0].mxu0
  %v2897 = vadd.f32 0.0, %v2896
  %v2898 = vpop.f32.mrb[0].mxu0
  %2899 = vmatprep.mubr.f32.mxu0 0.0
  %2900 = vmatmul.mubr.f32.gmra.mrb[0].mxu0 %v2782
  %v2901 = vpop.f32.mrb[0].mxu0
  %v2902 = vadd.f32 0.0, %v2901
  %v2903 = vpop.f32.mrb[0].mxu0
  %2904 = vmatprep.mubr.f32.mxu0 0.0
  %2905 = vmatmul.mubr.f32.gmra.mrb[0].mxu0 %v2785
  %v2906 = vpop.f32.mrb[0].mxu0
  %v2907 = vadd.f32 0.0, %v2906
  %v2908 = vpop.f32.mrb[0].mxu0
  %2909 = vmatprep.mubr.f32.mxu0 0.0
  %2910 = vmatmul.mubr.f32.gmra.mrb[0].mxu0 %v2788
  %v2911 = vpop.f32.mrb[0].mxu0
  %v2912 = vadd.f32 0.0, %v2911
  %v2913 = vpop.f32.mrb[0].mxu0
  %2914 = vmatprep.mubr.f32.mxu0 0.0
  %2915 = vmatmul.mubr.f32.gmra.mrb[0].mxu0 %v2791
  %v2916 = vpop.f32.mrb[0].mxu0
  %v2917 = vadd.f32 0.0, %v2916
  %v2918 = vpop.f32.mrb[0].mxu0
  %2919 = vmatprep.mubr.f32.mxu0 0.0
  %2920 = vmatmul.mubr.f32.gmra.mrb[0].mxu0 %v2794
  %v2921 = vpop.f32.mrb[0].mxu0
  %v2922 = vadd.f32 0.0, %v2921
  %v2923 = vpop.f32.mrb[0].mxu0
  %2924 = vmatprep.mubr.f32.mxu0 0.0
  %2925 = vmatmul.mubr.f32.gmra.mrb[0].mxu0 %v2797
  %v2926 = vpop.f32.mrb[0].mxu0
  %v2927 = vadd.f32 0.0, %v2926
  %v2928 = vpop.f32.mrb[0].mxu0
  %2929 = vmatprep.mubr.f32.mxu0 0.0
  %2930 = vmatmul.mubr.f32.gmra.mrb[0].mxu0 %v2800
  %v2931 = vpop.f32.mrb[0].mxu0
  %v2932 = vadd.f32 0.0, %v2931
  %v2933 = vpop.f32.mrb[0].mxu0
  %2934 = vdwg.mxu0
  %v2935 = vadd.f32 %v2600, %v2872
  %v2936 = vadd.f32 %v2601, %v2877
  %v2937 = vadd.f32 %v2602, %v2882
  %v2938 = vadd.f32 %v2603, %v2887
  %v2939 = vadd.f32 %v2604, %v2892
  %v2940 = vadd.f32 %v2605, %v2897
  %v2941 = vadd.f32 %v2606, %v2902
  %v2942 = vadd.f32 %v2607, %v2907
  %v2943 = vadd.f32 %v2608, %v2912
  %v2944 = vadd.f32 %v2609, %v2917
  %v2945 = vadd.f32 %v2610, %v2922
  %v2946 = vadd.f32 %v2611, %v2927
  %v2947 = vadd.f32 %v2612, %v2932
  %s2948 = scalar_lea.vmem %s6, 32
  %v2949 = vld [vmem:[%s2948] sm:$0xff]
  %v2950 = vld [vmem:[%s2948 + $0x8] sm:$0x7]
  %v2952 = vsel %vm2215, %v2950, 0
  %2954 = vmatprep.subr.mxu0 0.0
  %2955 = vmatpush1.msra.mxu0 %v2949
  %2956 = vmatprep.subr.mxu0 0.0
  %2957 = vmatpush1.msra.mxu0 %v2952
  %2958 = vmatprep.subr.mxu0 0.0
  %2959 = vmatpush1.msra.mxu0 0.0
  %2960 = vmatprep.subr.mxu0 0.0
  %2961 = vmatpush1.msra.mxu0 0.0
  %2962 = vmatprep.subr.mxu0 0.0
  %2963 = vmatpush1.msra.mxu0 0.0
  %2964 = vmatprep.subr.mxu0 0.0
  %2965 = vmatpush1.msra.mxu0 0.0
  %2966 = vmatprep.subr.mxu0 0.0
  %2967 = vmatpush1.msra.mxu0 0.0
  %2968 = vmatprep.subr.mxu0 0.0
  %2969 = vmatpush1.msra.mxu0 0.0
  %2970 = vmatprep.subr.mxu0 0.0
  %2971 = vmatpush1.msra.mxu0 0.0
  %2972 = vmatprep.subr.mxu0 0.0
  %2973 = vmatpush1.msra.mxu0 0.0
  %2974 = vmatprep.subr.mxu0 0.0
  %2975 = vmatpush1.msra.mxu0 0.0
  %2976 = vmatprep.subr.mxu0 0.0
  %2977 = vmatpush1.msra.mxu0 0.0
  %2978 = vmatprep.subr.mxu0 0.0
  %2979 = vmatpush1.msra.mxu0 0.0
  %2980 = vmatprep.subr.mxu0 0.0
  %2981 = vmatpush1.msra.mxu0 0.0
  %2982 = vmatprep.subr.mxu0 0.0
  %2983 = vmatpush1.msra.mxu0 0.0
  %2984 = vmatprep.subr.mxu0 0.0
  %2985 = vmatpush1.msra.mxu0 0.0
  %2986 = vmatprep.subr.mxu0 0.0
  %2987 = vmatpush1.msra.mxu0 0.0
  %2988 = vmatprep.subr.mxu0 0.0
  %2989 = vmatpush1.msra.mxu0 0.0
  %2990 = vmatprep.subr.mxu0 0.0
  %2991 = vmatpush1.msra.mxu0 0.0
  %2992 = vmatprep.subr.mxu0 0.0
  %2993 = vmatpush1.msra.mxu0 0.0
  %2994 = vmatprep.subr.mxu0 0.0
  %2995 = vmatpush1.msra.mxu0 0.0
  %2996 = vmatprep.subr.mxu0 0.0
  %2997 = vmatpush1.msra.mxu0 0.0
  %2998 = vmatprep.subr.mxu0 0.0
  %2999 = vmatpush1.msra.mxu0 0.0
  %3000 = vmatprep.subr.mxu0 0.0
  %3001 = vmatpush1.msra.mxu0 0.0
  %3002 = vmatprep.subr.mxu0 0.0
  %3003 = vmatpush1.msra.mxu0 0.0
  %3004 = vmatprep.subr.mxu0 0.0
  %3005 = vmatpush1.msra.mxu0 0.0
  %3006 = vmatprep.subr.mxu0 0.0
  %3007 = vmatpush1.msra.mxu0 0.0
  %3008 = vmatprep.subr.mxu0 0.0
  %3009 = vmatpush1.msra.mxu0 0.0
  %3010 = vmatprep.subr.mxu0 0.0
  %3011 = vmatpush1.msra.mxu0 0.0
  %3012 = vmatprep.subr.mxu0 0.0
  %3013 = vmatpush1.msra.mxu0 0.0
  %3014 = vmatprep.subr.mxu0 0.0
  %3015 = vmatpush1.msra.mxu0 0.0
  %3016 = vmatprep.subr.mxu0 0.0
  %3017 = vmatpush1.msra.mxu0 0.0
  %3018 = vmatprep.mubr.f32.mxu0 0.0
  %3019 = vmatmul.mubr.f32.gmra.mrb[0].mxu0 %v2177
  %v3020 = vpop.f32.mrb[0].mxu0
  %v3021 = vadd.f32 0.0, %v3020
  %v3022 = vpop.f32.mrb[0].mxu0
  %3023 = vmatprep.mubr.f32.mxu0 0.0
  %3024 = vmatmul.mubr.f32.gmra.mrb[0].mxu0 %v2180
  %v3025 = vpop.f32.mrb[0].mxu0
  %v3026 = vadd.f32 0.0, %v3025
  %v3027 = vpop.f32.mrb[0].mxu0
  %3028 = vmatprep.mubr.f32.mxu0 0.0
  %3029 = vmatmul.mubr.f32.gmra.mrb[0].mxu0 %v2183
  %v3030 = vpop.f32.mrb[0].mxu0
  %v3031 = vadd.f32 0.0, %v3030
  %v3032 = vpop.f32.mrb[0].mxu0
  %3033 = vmatprep.mubr.f32.mxu0 0.0
  %3034 = vmatmul.mubr.f32.gmra.mrb[0].mxu0 %v2186
  %v3035 = vpop.f32.mrb[0].mxu0
  %v3036 = vadd.f32 0.0, %v3035
  %v3037 = vpop.f32.mrb[0].mxu0
  %3038 = vmatprep.mubr.f32.mxu0 0.0
  %3039 = vmatmul.mubr.f32.gmra.mrb[0].mxu0 %v2189
  %v3040 = vpop.f32.mrb[0].mxu0
  %v3041 = vadd.f32 0.0, %v3040
  %v3042 = vpop.f32.mrb[0].mxu0
  %3043 = vmatprep.mubr.f32.mxu0 0.0
  %3044 = vmatmul.mubr.f32.gmra.mrb[0].mxu0 %v2192
  %v3045 = vpop.f32.mrb[0].mxu0
  %v3046 = vadd.f32 0.0, %v3045
  %v3047 = vpop.f32.mrb[0].mxu0
  %3048 = vmatprep.mubr.f32.mxu0 0.0
  %3049 = vmatmul.mubr.f32.gmra.mrb[0].mxu0 %v2195
  %v3050 = vpop.f32.mrb[0].mxu0
  %v3051 = vadd.f32 0.0, %v3050
  %v3052 = vpop.f32.mrb[0].mxu0
  %3053 = vmatprep.mubr.f32.mxu0 0.0
  %3054 = vmatmul.mubr.f32.gmra.mrb[0].mxu0 %v2198
  %v3055 = vpop.f32.mrb[0].mxu0
  %v3056 = vadd.f32 0.0, %v3055
  %v3057 = vpop.f32.mrb[0].mxu0
  %3058 = vmatprep.mubr.f32.mxu0 0.0
  %3059 = vmatmul.mubr.f32.gmra.mrb[0].mxu0 %v2201
  %v3060 = vpop.f32.mrb[0].mxu0
  %v3061 = vadd.f32 0.0, %v3060
  %v3062 = vpop.f32.mrb[0].mxu0
  %3063 = vmatprep.mubr.f32.mxu0 0.0
  %3064 = vmatmul.mubr.f32.gmra.mrb[0].mxu0 %v2204
  %v3065 = vpop.f32.mrb[0].mxu0
  %v3066 = vadd.f32 0.0, %v3065
  %v3067 = vpop.f32.mrb[0].mxu0
  %3068 = vmatprep.mubr.f32.mxu0 0.0
  %3069 = vmatmul.mubr.f32.gmra.mrb[0].mxu0 %v2207
  %v3070 = vpop.f32.mrb[0].mxu0
  %v3071 = vadd.f32 0.0, %v3070
  %v3072 = vpop.f32.mrb[0].mxu0
  %3073 = vmatprep.mubr.f32.mxu0 0.0
  %3074 = vmatmul.mubr.f32.gmra.mrb[0].mxu0 %v2210
  %v3075 = vpop.f32.mrb[0].mxu0
  %v3076 = vadd.f32 0.0, %v3075
  %v3077 = vpop.f32.mrb[0].mxu0
  %3078 = vmatprep.mubr.f32.mxu0 0.0
  %3079 = vmatmul.mubr.f32.gmra.mrb[0].mxu0 %v2213
  %v3080 = vpop.f32.mrb[0].mxu0
  %v3081 = vadd.f32 0.0, %v3080
  %v3082 = vpop.f32.mrb[0].mxu0
  %3083 = vdwg.mxu0
  %s3084 = scalar_lea.vmem %s7, 208
  %v3085 = vld [vmem:[%s3084] sm:$0xff]
  %v3086 = vld [vmem:[%s3084 + $0x8] sm:$0xff]
  %v3087 = vld [vmem:[%s3084 + $0x10] sm:$0xff]
  %v3088 = vld [vmem:[%s3084 + $0x18] sm:$0xff]
  %v3089 = vld [vmem:[%s3084 + $0x20] sm:$0xff]
  %v3090 = vld [vmem:[%s3084 + $0x28] sm:$0xff]
  %v3091 = vld [vmem:[%s3084 + $0x30] sm:$0xff]
  %v3092 = vld [vmem:[%s3084 + $0x38] sm:$0xff]
  %v3093 = vld [vmem:[%s3084 + $0x40] sm:$0xff]
  %v3094 = vld [vmem:[%s3084 + $0x48] sm:$0xff]
  %v3095 = vld [vmem:[%s3084 + $0x50] sm:$0xff]
  %v3096 = vld [vmem:[%s3084 + $0x58] sm:$0xff]
  %v3097 = vld [vmem:[%s3084 + $0x60] sm:$0x3f]
  %v3099 = vsel %vm2362, %v3085, 0
  %v3102 = vsel %vm2362, %v3086, 0
  %v3105 = vsel %vm2362, %v3087, 0
  %v3108 = vsel %vm2362, %v3088, 0
  %v3111 = vsel %vm2362, %v3089, 0
  %v3114 = vsel %vm2362, %v3090, 0
  %v3117 = vsel %vm2362, %v3091, 0
  %v3120 = vsel %vm2362, %v3092, 0
  %v3123 = vsel %vm2362, %v3093, 0
  %v3126 = vsel %vm2362, %v3094, 0
  %v3129 = vsel %vm2362, %v3095, 0
  %v3132 = vsel %vm2362, %v3096, 0
  %v3135 = vsel %vm2362, %v3097, 0
  %v3138 = vsel %vm356, %v3081, 0
  %3140 = vmatprep.subr.mxu0 0.0
  %3141 = vmatpush1.msra.mxu0 %v3021
  %3142 = vmatprep.subr.mxu0 0.0
  %3143 = vmatpush1.msra.mxu0 %v3026
  %3144 = vmatprep.subr.mxu0 0.0
  %3145 = vmatpush1.msra.mxu0 %v3031
  %3146 = vmatprep.subr.mxu0 0.0
  %3147 = vmatpush1.msra.mxu0 %v3036
  %3148 = vmatprep.subr.mxu0 0.0
  %3149 = vmatpush1.msra.mxu0 %v3041
  %3150 = vmatprep.subr.mxu0 0.0
  %3151 = vmatpush1.msra.mxu0 %v3046
  %3152 = vmatprep.subr.mxu0 0.0
  %3153 = vmatpush1.msra.mxu0 %v3051
  %3154 = vmatprep.subr.mxu0 0.0
  %3155 = vmatpush1.msra.mxu0 %v3056
  %3156 = vmatprep.subr.mxu0 0.0
  %3157 = vmatpush1.msra.mxu0 %v3061
  %3158 = vmatprep.subr.mxu0 0.0
  %3159 = vmatpush1.msra.mxu0 %v3066
  %3160 = vmatprep.subr.mxu0 0.0
  %3161 = vmatpush1.msra.mxu0 %v3071
  %3162 = vmatprep.subr.mxu0 0.0
  %3163 = vmatpush1.msra.mxu0 %v3076
  %3164 = vmatprep.subr.mxu0 0.0
  %3165 = vmatpush1.msra.mxu0 %v3138
  %3166 = vmatprep.subr.mxu0 0.0
  %3167 = vmatpush1.msra.mxu0 0.0
  %3168 = vmatprep.subr.mxu0 0.0
  %3169 = vmatpush1.msra.mxu0 0.0
  %3170 = vmatprep.subr.mxu0 0.0
  %3171 = vmatpush1.msra.mxu0 0.0
  %3172 = vmatprep.subr.mxu0 0.0
  %3173 = vmatpush1.msra.mxu0 0.0
  %3174 = vmatprep.subr.mxu0 0.0
  %3175 = vmatpush1.msra.mxu0 0.0
  %3176 = vmatprep.subr.mxu0 0.0
  %3177 = vmatpush1.msra.mxu0 0.0
  %3178 = vmatprep.subr.mxu0 0.0
  %3179 = vmatpush1.msra.mxu0 0.0
  %3180 = vmatprep.subr.mxu0 0.0
  %3181 = vmatpush1.msra.mxu0 0.0
  %3182 = vmatprep.subr.mxu0 0.0
  %3183 = vmatpush1.msra.mxu0 0.0
  %3184 = vmatprep.subr.mxu0 0.0
  %3185 = vmatpush1.msra.mxu0 0.0
  %3186 = vmatprep.subr.mxu0 0.0
  %3187 = vmatpush1.msra.mxu0 0.0
  %3188 = vmatprep.subr.mxu0 0.0
  %3189 = vmatpush1.msra.mxu0 0.0
  %3190 = vmatprep.subr.mxu0 0.0
  %3191 = vmatpush1.msra.mxu0 0.0
  %3192 = vmatprep.subr.mxu0 0.0
  %3193 = vmatpush1.msra.mxu0 0.0
  %3194 = vmatprep.subr.mxu0 0.0
  %3195 = vmatpush1.msra.mxu0 0.0
  %3196 = vmatprep.subr.mxu0 0.0
  %3197 = vmatpush1.msra.mxu0 0.0
  %3198 = vmatprep.subr.mxu0 0.0
  %3199 = vmatpush1.msra.mxu0 0.0
  %3200 = vmatprep.subr.mxu0 0.0
  %3201 = vmatpush1.msra.mxu0 0.0
  %3202 = vmatprep.subr.mxu0 0.0
  %3203 = vmatpush1.msra.mxu0 0.0
  %3204 = vmatprep.mubr.f32.mxu0 0.0
  %3205 = vmatmul.mubr.f32.gmra.mrb[0].mxu0 %v3099
  %v3206 = vpop.f32.mrb[0].mxu0
  %v3207 = vadd.f32 0.0, %v3206
  %v3208 = vpop.f32.mrb[0].mxu0
  %3209 = vmatprep.mubr.f32.mxu0 0.0
  %3210 = vmatmul.mubr.f32.gmra.mrb[0].mxu0 %v3102
  %v3211 = vpop.f32.mrb[0].mxu0
  %v3212 = vadd.f32 0.0, %v3211
  %v3213 = vpop.f32.mrb[0].mxu0
  %3214 = vmatprep.mubr.f32.mxu0 0.0
  %3215 = vmatmul.mubr.f32.gmra.mrb[0].mxu0 %v3105
  %v3216 = vpop.f32.mrb[0].mxu0
  %v3217 = vadd.f32 0.0, %v3216
  %v3218 = vpop.f32.mrb[0].mxu0
  %3219 = vmatprep.mubr.f32.mxu0 0.0
  %3220 = vmatmul.mubr.f32.gmra.mrb[0].mxu0 %v3108
  %v3221 = vpop.f32.mrb[0].mxu0
  %v3222 = vadd.f32 0.0, %v3221
  %v3223 = vpop.f32.mrb[0].mxu0
  %3224 = vmatprep.mubr.f32.mxu0 0.0
  %3225 = vmatmul.mubr.f32.gmra.mrb[0].mxu0 %v3111
  %v3226 = vpop.f32.mrb[0].mxu0
  %v3227 = vadd.f32 0.0, %v3226
  %v3228 = vpop.f32.mrb[0].mxu0
  %3229 = vmatprep.mubr.f32.mxu0 0.0
  %3230 = vmatmul.mubr.f32.gmra.mrb[0].mxu0 %v3114
  %v3231 = vpop.f32.mrb[0].mxu0
  %v3232 = vadd.f32 0.0, %v3231
  %v3233 = vpop.f32.mrb[0].mxu0
  %3234 = vmatprep.mubr.f32.mxu0 0.0
  %3235 = vmatmul.mubr.f32.gmra.mrb[0].mxu0 %v3117
  %v3236 = vpop.f32.mrb[0].mxu0
  %v3237 = vadd.f32 0.0, %v3236
  %v3238 = vpop.f32.mrb[0].mxu0
  %3239 = vmatprep.mubr.f32.mxu0 0.0
  %3240 = vmatmul.mubr.f32.gmra.mrb[0].mxu0 %v3120
  %v3241 = vpop.f32.mrb[0].mxu0
  %v3242 = vadd.f32 0.0, %v3241
  %v3243 = vpop.f32.mrb[0].mxu0
  %3244 = vmatprep.mubr.f32.mxu0 0.0
  %3245 = vmatmul.mubr.f32.gmra.mrb[0].mxu0 %v3123
  %v3246 = vpop.f32.mrb[0].mxu0
  %v3247 = vadd.f32 0.0, %v3246
  %v3248 = vpop.f32.mrb[0].mxu0
  %3249 = vmatprep.mubr.f32.mxu0 0.0
  %3250 = vmatmul.mubr.f32.gmra.mrb[0].mxu0 %v3126
  %v3251 = vpop.f32.mrb[0].mxu0
  %v3252 = vadd.f32 0.0, %v3251
  %v3253 = vpop.f32.mrb[0].mxu0
  %3254 = vmatprep.mubr.f32.mxu0 0.0
  %3255 = vmatmul.mubr.f32.gmra.mrb[0].mxu0 %v3129
  %v3256 = vpop.f32.mrb[0].mxu0
  %v3257 = vadd.f32 0.0, %v3256
  %v3258 = vpop.f32.mrb[0].mxu0
  %3259 = vmatprep.mubr.f32.mxu0 0.0
  %3260 = vmatmul.mubr.f32.gmra.mrb[0].mxu0 %v3132
  %v3261 = vpop.f32.mrb[0].mxu0
  %v3262 = vadd.f32 0.0, %v3261
  %v3263 = vpop.f32.mrb[0].mxu0
  %3264 = vmatprep.mubr.f32.mxu0 0.0
  %3265 = vmatmul.mubr.f32.gmra.mrb[0].mxu0 %v3135
  %v3266 = vpop.f32.mrb[0].mxu0
  %v3267 = vadd.f32 0.0, %v3266
  %v3268 = vpop.f32.mrb[0].mxu0
  %3269 = vdwg.mxu0
  %v3270 = vadd.f32 %v2935, %v3207
  %v3271 = vadd.f32 %v2936, %v3212
  %v3272 = vadd.f32 %v2937, %v3217
  %v3273 = vadd.f32 %v2938, %v3222
  %v3274 = vadd.f32 %v2939, %v3227
  %v3275 = vadd.f32 %v2940, %v3232
  %v3276 = vadd.f32 %v2941, %v3237
  %v3277 = vadd.f32 %v2942, %v3242
  %v3278 = vadd.f32 %v2943, %v3247
  %v3279 = vadd.f32 %v2944, %v3252
  %v3280 = vadd.f32 %v2945, %v3257
  %v3281 = vadd.f32 %v2946, %v3262
  %v3282 = vadd.f32 %v2947, %v3267
  %v3283 = vmax.f32 %v3270, 0.0
  %v3284 = vmax.f32 %v3271, 0.0
  %v3285 = vmax.f32 %v3272, 0.0
  %v3286 = vmax.f32 %v3273, 0.0
  %v3287 = vmax.f32 %v3274, 0.0
  %v3288 = vmax.f32 %v3275, 0.0
  %v3289 = vmax.f32 %v3276, 0.0
  %v3290 = vmax.f32 %v3277, 0.0
  %v3291 = vmax.f32 %v3278, 0.0
  %v3292 = vmax.f32 %v3279, 0.0
  %v3293 = vmax.f32 %v3280, 0.0
  %v3294 = vmax.f32 %v3281, 0.0
  %v3295 = vmax.f32 %v3282, 0.0
  %v3296 = vld [vmem:[%s11] sm:$0xff]
  %v3297 = vld [vmem:[%s11 + $0x8] sm:$0xff]
  %v3298 = vld [vmem:[%s11 + $0x10] sm:$0xff]
  %v3299 = vld [vmem:[%s11 + $0x18] sm:$0xff]
  %v3300 = vld [vmem:[%s11 + $0x20] sm:$0xff]
  %v3301 = vld [vmem:[%s11 + $0x28] sm:$0xff]
  %v3302 = vld [vmem:[%s11 + $0x30] sm:$0xff]
  %v3303 = vld [vmem:[%s11 + $0x38] sm:$0xff]
  %v3304 = vld [vmem:[%s11 + $0x40] sm:$0xff]
  %v3305 = vld [vmem:[%s11 + $0x48] sm:$0xff]
  %v3306 = vld [vmem:[%s11 + $0x50] sm:$0xff]
  %v3307 = vld [vmem:[%s11 + $0x58] sm:$0xff]
  %v3308 = vld [vmem:[%s11 + $0x60] sm:$0xf]
  %v3309 = vld [vmem:[%s9] sm:$0xff]
  %v3310 = vld [vmem:[%s9 + $0x8] sm:$0xff]
  %v3311 = vld [vmem:[%s9 + $0x10] sm:$0x7f]
  %vm3312 = vcmask 187392
  %v3314 = vsel %vm3312, %v3283, 0
  %v3317 = vsel %vm3312, %v3284, 0
  %v3320 = vsel %vm3312, %v3285, 0
  %v3323 = vsel %vm3312, %v3286, 0
  %v3326 = vsel %vm3312, %v3287, 0
  %v3329 = vsel %vm3312, %v3288, 0
  %v3332 = vsel %vm3312, %v3289, 0
  %v3335 = vsel %vm3312, %v3290, 0
  %v3338 = vsel %vm3312, %v3291, 0
  %v3341 = vsel %vm3312, %v3292, 0
  %v3344 = vsel %vm3312, %v3293, 0
  %v3347 = vsel %vm3312, %v3294, 0
  %v3350 = vsel %vm3312, %v3295, 0
  %vm3352 = vcmask 1046528
  %v3354 = vsel %vm3352, %v3311, 0
  %3356 = vmatprep.subr.mxu0 0.0
  %3357 = vmatpush1.msra.mxu0 %v3309
  %3358 = vmatprep.subr.mxu0 0.0
  %3359 = vmatpush1.msra.mxu0 %v3310
  %3360 = vmatprep.subr.mxu0 0.0
  %3361 = vmatpush1.msra.mxu0 %v3354
  %3362 = vmatprep.subr.mxu0 0.0
  %3363 = vmatpush1.msra.mxu0 0.0
  %3364 = vmatprep.subr.mxu0 0.0
  %3365 = vmatpush1.msra.mxu0 0.0
  %3366 = vmatprep.subr.mxu0 0.0
  %3367 = vmatpush1.msra.mxu0 0.0
  %3368 = vmatprep.subr.mxu0 0.0
  %3369 = vmatpush1.msra.mxu0 0.0
  %3370 = vmatprep.subr.mxu0 0.0
  %3371 = vmatpush1.msra.mxu0 0.0
  %3372 = vmatprep.subr.mxu0 0.0
  %3373 = vmatpush1.msra.mxu0 0.0
  %3374 = vmatprep.subr.mxu0 0.0
  %3375 = vmatpush1.msra.mxu0 0.0
  %3376 = vmatprep.subr.mxu0 0.0
  %3377 = vmatpush1.msra.mxu0 0.0
  %3378 = vmatprep.subr.mxu0 0.0
  %3379 = vmatpush1.msra.mxu0 0.0
  %3380 = vmatprep.subr.mxu0 0.0
  %3381 = vmatpush1.msra.mxu0 0.0
  %3382 = vmatprep.subr.mxu0 0.0
  %3383 = vmatpush1.msra.mxu0 0.0
  %3384 = vmatprep.subr.mxu0 0.0
  %3385 = vmatpush1.msra.mxu0 0.0
  %3386 = vmatprep.subr.mxu0 0.0
  %3387 = vmatpush1.msra.mxu0 0.0
  %3388 = vmatprep.subr.mxu0 0.0
  %3389 = vmatpush1.msra.mxu0 0.0
  %3390 = vmatprep.subr.mxu0 0.0
  %3391 = vmatpush1.msra.mxu0 0.0
  %3392 = vmatprep.subr.mxu0 0.0
  %3393 = vmatpush1.msra.mxu0 0.0
  %3394 = vmatprep.subr.mxu0 0.0
  %3395 = vmatpush1.msra.mxu0 0.0
  %3396 = vmatprep.subr.mxu0 0.0
  %3397 = vmatpush1.msra.mxu0 0.0
  %3398 = vmatprep.subr.mxu0 0.0
  %3399 = vmatpush1.msra.mxu0 0.0
  %3400 = vmatprep.subr.mxu0 0.0
  %3401 = vmatpush1.msra.mxu0 0.0
  %3402 = vmatprep.subr.mxu0 0.0
  %3403 = vmatpush1.msra.mxu0 0.0
  %3404 = vmatprep.subr.mxu0 0.0
  %3405 = vmatpush1.msra.mxu0 0.0
  %3406 = vmatprep.subr.mxu0 0.0
  %3407 = vmatpush1.msra.mxu0 0.0
  %3408 = vmatprep.subr.mxu0 0.0
  %3409 = vmatpush1.msra.mxu0 0.0
  %3410 = vmatprep.subr.mxu0 0.0
  %3411 = vmatpush1.msra.mxu0 0.0
  %3412 = vmatprep.subr.mxu0 0.0
  %3413 = vmatpush1.msra.mxu0 0.0
  %3414 = vmatprep.subr.mxu0 0.0
  %3415 = vmatpush1.msra.mxu0 0.0
  %3416 = vmatprep.subr.mxu0 0.0
  %3417 = vmatpush1.msra.mxu0 0.0
  %3418 = vmatprep.subr.mxu0 0.0
  %3419 = vmatpush1.msra.mxu0 0.0
  %3420 = vmatprep.mubr.f32.mxu0 0.0
  %3421 = vmatmul.mubr.f32.gmra.mrb[0].mxu0 %v3314
  %v3422 = vpop.f32.mrb[0].mxu0
  %v3423 = vadd.f32 0.0, %v3422
  %v3424 = vpop.f32.mrb[0].mxu0
  %3425 = vmatprep.mubr.f32.mxu0 0.0
  %3426 = vmatmul.mubr.f32.gmra.mrb[0].mxu0 %v3317
  %v3427 = vpop.f32.mrb[0].mxu0
  %v3428 = vadd.f32 0.0, %v3427
  %v3429 = vpop.f32.mrb[0].mxu0
  %3430 = vmatprep.mubr.f32.mxu0 0.0
  %3431 = vmatmul.mubr.f32.gmra.mrb[0].mxu0 %v3320
  %v3432 = vpop.f32.mrb[0].mxu0
  %v3433 = vadd.f32 0.0, %v3432
  %v3434 = vpop.f32.mrb[0].mxu0
  %3435 = vmatprep.mubr.f32.mxu0 0.0
  %3436 = vmatmul.mubr.f32.gmra.mrb[0].mxu0 %v3323
  %v3437 = vpop.f32.mrb[0].mxu0
  %v3438 = vadd.f32 0.0, %v3437
  %v3439 = vpop.f32.mrb[0].mxu0
  %3440 = vmatprep.mubr.f32.mxu0 0.0
  %3441 = vmatmul.mubr.f32.gmra.mrb[0].mxu0 %v3326
  %v3442 = vpop.f32.mrb[0].mxu0
  %v3443 = vadd.f32 0.0, %v3442
  %v3444 = vpop.f32.mrb[0].mxu0
  %3445 = vmatprep.mubr.f32.mxu0 0.0
  %3446 = vmatmul.mubr.f32.gmra.mrb[0].mxu0 %v3329
  %v3447 = vpop.f32.mrb[0].mxu0
  %v3448 = vadd.f32 0.0, %v3447
  %v3449 = vpop.f32.mrb[0].mxu0
  %3450 = vmatprep.mubr.f32.mxu0 0.0
  %3451 = vmatmul.mubr.f32.gmra.mrb[0].mxu0 %v3332
  %v3452 = vpop.f32.mrb[0].mxu0
  %v3453 = vadd.f32 0.0, %v3452
  %v3454 = vpop.f32.mrb[0].mxu0
  %3455 = vmatprep.mubr.f32.mxu0 0.0
  %3456 = vmatmul.mubr.f32.gmra.mrb[0].mxu0 %v3335
  %v3457 = vpop.f32.mrb[0].mxu0
  %v3458 = vadd.f32 0.0, %v3457
  %v3459 = vpop.f32.mrb[0].mxu0
  %3460 = vmatprep.mubr.f32.mxu0 0.0
  %3461 = vmatmul.mubr.f32.gmra.mrb[0].mxu0 %v3338
  %v3462 = vpop.f32.mrb[0].mxu0
  %v3463 = vadd.f32 0.0, %v3462
  %v3464 = vpop.f32.mrb[0].mxu0
  %3465 = vmatprep.mubr.f32.mxu0 0.0
  %3466 = vmatmul.mubr.f32.gmra.mrb[0].mxu0 %v3341
  %v3467 = vpop.f32.mrb[0].mxu0
  %v3468 = vadd.f32 0.0, %v3467
  %v3469 = vpop.f32.mrb[0].mxu0
  %3470 = vmatprep.mubr.f32.mxu0 0.0
  %3471 = vmatmul.mubr.f32.gmra.mrb[0].mxu0 %v3344
  %v3472 = vpop.f32.mrb[0].mxu0
  %v3473 = vadd.f32 0.0, %v3472
  %v3474 = vpop.f32.mrb[0].mxu0
  %3475 = vmatprep.mubr.f32.mxu0 0.0
  %3476 = vmatmul.mubr.f32.gmra.mrb[0].mxu0 %v3347
  %v3477 = vpop.f32.mrb[0].mxu0
  %v3478 = vadd.f32 0.0, %v3477
  %v3479 = vpop.f32.mrb[0].mxu0
  %3480 = vmatprep.mubr.f32.mxu0 0.0
  %3481 = vmatmul.mubr.f32.gmra.mrb[0].mxu0 %v3350
  %v3482 = vpop.f32.mrb[0].mxu0
  %v3483 = vadd.f32 0.0, %v3482
  %v3484 = vpop.f32.mrb[0].mxu0
  %3485 = vdwg.mxu0
  %v3486 = vld [vmem:[%s10] sm:$0xff]
  %v3487 = vld [vmem:[%s10 + $0x8] sm:$0xff]
  %v3488 = vld [vmem:[%s10 + $0x10] sm:$0xff]
  %v3489 = vld [vmem:[%s10 + $0x18] sm:$0xff]
  %v3490 = vld [vmem:[%s10 + $0x20] sm:$0xff]
  %v3491 = vld [vmem:[%s10 + $0x28] sm:$0xff]
  %v3492 = vld [vmem:[%s10 + $0x30] sm:$0xff]
  %v3493 = vld [vmem:[%s10 + $0x38] sm:$0xff]
  %v3494 = vld [vmem:[%s10 + $0x40] sm:$0xff]
  %v3495 = vld [vmem:[%s10 + $0x48] sm:$0xff]
  %v3496 = vld [vmem:[%s10 + $0x50] sm:$0xff]
  %v3497 = vld [vmem:[%s10 + $0x58] sm:$0xff]
  %v3498 = vld [vmem:[%s10 + $0x60] sm:$0xf]
  %vm3499 = vcmask 834560
  %v3501 = vsel %vm3499, %v3486, 0
  %v3504 = vsel %vm3499, %v3487, 0
  %v3507 = vsel %vm3499, %v3488, 0
  %v3510 = vsel %vm3499, %v3489, 0
  %v3513 = vsel %vm3499, %v3490, 0
  %v3516 = vsel %vm3499, %v3491, 0
  %v3519 = vsel %vm3499, %v3492, 0
  %v3522 = vsel %vm3499, %v3493, 0
  %v3525 = vsel %vm3499, %v3494, 0
  %v3528 = vsel %vm3499, %v3495, 0
  %v3531 = vsel %vm3499, %v3496, 0
  %v3534 = vsel %vm3499, %v3497, 0
  %v3537 = vsel %vm3499, %v3498, 0
  %vm3539 = vcmask 1045504
  %v3541 = vsel %vm3539, %v3483, 0
  %3543 = vmatprep.subr.mxu0 0.0
  %3544 = vmatpush1.msra.mxu0 %v3423
  %3545 = vmatprep.subr.mxu0 0.0
  %3546 = vmatpush1.msra.mxu0 %v3428
  %3547 = vmatprep.subr.mxu0 0.0
  %3548 = vmatpush1.msra.mxu0 %v3433
  %3549 = vmatprep.subr.mxu0 0.0
  %3550 = vmatpush1.msra.mxu0 %v3438
  %3551 = vmatprep.subr.mxu0 0.0
  %3552 = vmatpush1.msra.mxu0 %v3443
  %3553 = vmatprep.subr.mxu0 0.0
  %3554 = vmatpush1.msra.mxu0 %v3448
  %3555 = vmatprep.subr.mxu0 0.0
  %3556 = vmatpush1.msra.mxu0 %v3453
  %3557 = vmatprep.subr.mxu0 0.0
  %3558 = vmatpush1.msra.mxu0 %v3458
  %3559 = vmatprep.subr.mxu0 0.0
  %3560 = vmatpush1.msra.mxu0 %v3463
  %3561 = vmatprep.subr.mxu0 0.0
  %3562 = vmatpush1.msra.mxu0 %v3468
  %3563 = vmatprep.subr.mxu0 0.0
  %3564 = vmatpush1.msra.mxu0 %v3473
  %3565 = vmatprep.subr.mxu0 0.0
  %3566 = vmatpush1.msra.mxu0 %v3478
  %3567 = vmatprep.subr.mxu0 0.0
  %3568 = vmatpush1.msra.mxu0 %v3541
  %3569 = vmatprep.subr.mxu0 0.0
  %3570 = vmatpush1.msra.mxu0 0.0
  %3571 = vmatprep.subr.mxu0 0.0
  %3572 = vmatpush1.msra.mxu0 0.0
  %3573 = vmatprep.subr.mxu0 0.0
  %3574 = vmatpush1.msra.mxu0 0.0
  %3575 = vmatprep.subr.mxu0 0.0
  %3576 = vmatpush1.msra.mxu0 0.0
  %3577 = vmatprep.subr.mxu0 0.0
  %3578 = vmatpush1.msra.mxu0 0.0
  %3579 = vmatprep.subr.mxu0 0.0
  %3580 = vmatpush1.msra.mxu0 0.0
  %3581 = vmatprep.subr.mxu0 0.0
  %3582 = vmatpush1.msra.mxu0 0.0
  %3583 = vmatprep.subr.mxu0 0.0
  %3584 = vmatpush1.msra.mxu0 0.0
  %3585 = vmatprep.subr.mxu0 0.0
  %3586 = vmatpush1.msra.mxu0 0.0
  %3587 = vmatprep.subr.mxu0 0.0
  %3588 = vmatpush1.msra.mxu0 0.0
  %3589 = vmatprep.subr.mxu0 0.0
  %3590 = vmatpush1.msra.mxu0 0.0
  %3591 = vmatprep.subr.mxu0 0.0
  %3592 = vmatpush1.msra.mxu0 0.0
  %3593 = vmatprep.subr.mxu0 0.0
  %3594 = vmatpush1.msra.mxu0 0.0
  %3595 = vmatprep.subr.mxu0 0.0
  %3596 = vmatpush1.msra.mxu0 0.0
  %3597 = vmatprep.subr.mxu0 0.0
  %3598 = vmatpush1.msra.mxu0 0.0
  %3599 = vmatprep.subr.mxu0 0.0
  %3600 = vmatpush1.msra.mxu0 0.0
  %3601 = vmatprep.subr.mxu0 0.0
  %3602 = vmatpush1.msra.mxu0 0.0
  %3603 = vmatprep.subr.mxu0 0.0
  %3604 = vmatpush1.msra.mxu0 0.0
  %3605 = vmatprep.subr.mxu0 0.0
  %3606 = vmatpush1.msra.mxu0 0.0
  %3607 = vmatprep.mubr.f32.mxu0 0.0
  %3608 = vmatmul.mubr.f32.gmra.mrb[0].mxu0 %v3501
  %v3609 = vpop.f32.mrb[0].mxu0
  %v3610 = vadd.f32 0.0, %v3609
  %v3611 = vpop.f32.mrb[0].mxu0
  %3612 = vmatprep.mubr.f32.mxu0 0.0
  %3613 = vmatmul.mubr.f32.gmra.mrb[0].mxu0 %v3504
  %v3614 = vpop.f32.mrb[0].mxu0
  %v3615 = vadd.f32 0.0, %v3614
  %v3616 = vpop.f32.mrb[0].mxu0
  %3617 = vmatprep.mubr.f32.mxu0 0.0
  %3618 = vmatmul.mubr.f32.gmra.mrb[0].mxu0 %v3507
  %v3619 = vpop.f32.mrb[0].mxu0
  %v3620 = vadd.f32 0.0, %v3619
  %v3621 = vpop.f32.mrb[0].mxu0
  %3622 = vmatprep.mubr.f32.mxu0 0.0
  %3623 = vmatmul.mubr.f32.gmra.mrb[0].mxu0 %v3510
  %v3624 = vpop.f32.mrb[0].mxu0
  %v3625 = vadd.f32 0.0, %v3624
  %v3626 = vpop.f32.mrb[0].mxu0
  %3627 = vmatprep.mubr.f32.mxu0 0.0
  %3628 = vmatmul.mubr.f32.gmra.mrb[0].mxu0 %v3513
  %v3629 = vpop.f32.mrb[0].mxu0
  %v3630 = vadd.f32 0.0, %v3629
  %v3631 = vpop.f32.mrb[0].mxu0
  %3632 = vmatprep.mubr.f32.mxu0 0.0
  %3633 = vmatmul.mubr.f32.gmra.mrb[0].mxu0 %v3516
  %v3634 = vpop.f32.mrb[0].mxu0
  %v3635 = vadd.f32 0.0, %v3634
  %v3636 = vpop.f32.mrb[0].mxu0
  %3637 = vmatprep.mubr.f32.mxu0 0.0
  %3638 = vmatmul.mubr.f32.gmra.mrb[0].mxu0 %v3519
  %v3639 = vpop.f32.mrb[0].mxu0
  %v3640 = vadd.f32 0.0, %v3639
  %v3641 = vpop.f32.mrb[0].mxu0
  %3642 = vmatprep.mubr.f32.mxu0 0.0
  %3643 = vmatmul.mubr.f32.gmra.mrb[0].mxu0 %v3522
  %v3644 = vpop.f32.mrb[0].mxu0
  %v3645 = vadd.f32 0.0, %v3644
  %v3646 = vpop.f32.mrb[0].mxu0
  %3647 = vmatprep.mubr.f32.mxu0 0.0
  %3648 = vmatmul.mubr.f32.gmra.mrb[0].mxu0 %v3525
  %v3649 = vpop.f32.mrb[0].mxu0
  %v3650 = vadd.f32 0.0, %v3649
  %v3651 = vpop.f32.mrb[0].mxu0
  %3652 = vmatprep.mubr.f32.mxu0 0.0
  %3653 = vmatmul.mubr.f32.gmra.mrb[0].mxu0 %v3528
  %v3654 = vpop.f32.mrb[0].mxu0
  %v3655 = vadd.f32 0.0, %v3654
  %v3656 = vpop.f32.mrb[0].mxu0
  %3657 = vmatprep.mubr.f32.mxu0 0.0
  %3658 = vmatmul.mubr.f32.gmra.mrb[0].mxu0 %v3531
  %v3659 = vpop.f32.mrb[0].mxu0
  %v3660 = vadd.f32 0.0, %v3659
  %v3661 = vpop.f32.mrb[0].mxu0
  %3662 = vmatprep.mubr.f32.mxu0 0.0
  %3663 = vmatmul.mubr.f32.gmra.mrb[0].mxu0 %v3534
  %v3664 = vpop.f32.mrb[0].mxu0
  %v3665 = vadd.f32 0.0, %v3664
  %v3666 = vpop.f32.mrb[0].mxu0
  %3667 = vmatprep.mubr.f32.mxu0 0.0
  %3668 = vmatmul.mubr.f32.gmra.mrb[0].mxu0 %v3537
  %v3669 = vpop.f32.mrb[0].mxu0
  %v3670 = vadd.f32 0.0, %v3669
  %v3671 = vpop.f32.mrb[0].mxu0
  %3672 = vdwg.mxu0
  %3674 = vset.pattern.permute.xlu0 0
  %3675 = vperm.xlu0 %3674, %v3296
  %v3676 = vpop.permute.xlu0 %3675
  %3679 = vset.pattern.permute.xlu0 0
  %3680 = vperm.xlu0 %3679, %v3297
  %v3681 = vpop.permute.xlu0 %3680
  %3684 = vset.pattern.permute.xlu0 0
  %3685 = vperm.xlu0 %3684, %v3298
  %v3686 = vpop.permute.xlu0 %3685
  %3689 = vset.pattern.permute.xlu0 0
  %3690 = vperm.xlu0 %3689, %v3299
  %v3691 = vpop.permute.xlu0 %3690
  %3694 = vset.pattern.permute.xlu0 0
  %3695 = vperm.xlu0 %3694, %v3300
  %v3696 = vpop.permute.xlu0 %3695
  %3699 = vset.pattern.permute.xlu0 0
  %3700 = vperm.xlu0 %3699, %v3301
  %v3701 = vpop.permute.xlu0 %3700
  %3704 = vset.pattern.permute.xlu0 0
  %3705 = vperm.xlu0 %3704, %v3302
  %v3706 = vpop.permute.xlu0 %3705
  %3709 = vset.pattern.permute.xlu0 0
  %3710 = vperm.xlu0 %3709, %v3303
  %v3711 = vpop.permute.xlu0 %3710
  %3714 = vset.pattern.permute.xlu0 0
  %3715 = vperm.xlu0 %3714, %v3304
  %v3716 = vpop.permute.xlu0 %3715
  %3719 = vset.pattern.permute.xlu0 0
  %3720 = vperm.xlu0 %3719, %v3305
  %v3721 = vpop.permute.xlu0 %3720
  %3724 = vset.pattern.permute.xlu0 0
  %3725 = vperm.xlu0 %3724, %v3306
  %v3726 = vpop.permute.xlu0 %3725
  %3729 = vset.pattern.permute.xlu0 0
  %3730 = vperm.xlu0 %3729, %v3307
  %v3731 = vpop.permute.xlu0 %3730
  %3734 = vset.pattern.permute.xlu0 0
  %3735 = vperm.xlu0 %3734, %v3308
  %v3736 = vpop.permute.xlu0 %3735
  %v3738 = vadd.f32 %v3676, %v3610
  %v3739 = vadd.f32 %v3681, %v3615
  %v3740 = vadd.f32 %v3686, %v3620
  %v3741 = vadd.f32 %v3691, %v3625
  %v3742 = vadd.f32 %v3696, %v3630
  %v3743 = vadd.f32 %v3701, %v3635
  %v3744 = vadd.f32 %v3706, %v3640
  %v3745 = vadd.f32 %v3711, %v3645
  %v3746 = vadd.f32 %v3716, %v3650
  %v3747 = vadd.f32 %v3721, %v3655
  %v3748 = vadd.f32 %v3726, %v3660
  %v3749 = vadd.f32 %v3731, %v3665
  %v3750 = vadd.f32 %v3736, %v3670
  %s3751 = scalar_lea.vmem %s9, 24
  %v3752 = vld [vmem:[%s3751] sm:$0xff]
  %v3753 = vld [vmem:[%s3751 + $0x8] sm:$0xff]
  %v3754 = vld [vmem:[%s3751 + $0x10] sm:$0x7f]
  %v3756 = vsel %vm3352, %v3754, 0
  %3758 = vmatprep.subr.mxu0 0.0
  %3759 = vmatpush1.msra.mxu0 %v3752
  %3760 = vmatprep.subr.mxu0 0.0
  %3761 = vmatpush1.msra.mxu0 %v3753
  %3762 = vmatprep.subr.mxu0 0.0
  %3763 = vmatpush1.msra.mxu0 %v3756
  %3764 = vmatprep.subr.mxu0 0.0
  %3765 = vmatpush1.msra.mxu0 0.0
  %3766 = vmatprep.subr.mxu0 0.0
  %3767 = vmatpush1.msra.mxu0 0.0
  %3768 = vmatprep.subr.mxu0 0.0
  %3769 = vmatpush1.msra.mxu0 0.0
  %3770 = vmatprep.subr.mxu0 0.0
  %3771 = vmatpush1.msra.mxu0 0.0
  %3772 = vmatprep.subr.mxu0 0.0
  %3773 = vmatpush1.msra.mxu0 0.0
  %3774 = vmatprep.subr.mxu0 0.0
  %3775 = vmatpush1.msra.mxu0 0.0
  %3776 = vmatprep.subr.mxu0 0.0
  %3777 = vmatpush1.msra.mxu0 0.0
  %3778 = vmatprep.subr.mxu0 0.0
  %3779 = vmatpush1.msra.mxu0 0.0
  %3780 = vmatprep.subr.mxu0 0.0
  %3781 = vmatpush1.msra.mxu0 0.0
  %3782 = vmatprep.subr.mxu0 0.0
  %3783 = vmatpush1.msra.mxu0 0.0
  %3784 = vmatprep.subr.mxu0 0.0
  %3785 = vmatpush1.msra.mxu0 0.0
  %3786 = vmatprep.subr.mxu0 0.0
  %3787 = vmatpush1.msra.mxu0 0.0
  %3788 = vmatprep.subr.mxu0 0.0
  %3789 = vmatpush1.msra.mxu0 0.0
  %3790 = vmatprep.subr.mxu0 0.0
  %3791 = vmatpush1.msra.mxu0 0.0
  %3792 = vmatprep.subr.mxu0 0.0
  %3793 = vmatpush1.msra.mxu0 0.0
  %3794 = vmatprep.subr.mxu0 0.0
  %3795 = vmatpush1.msra.mxu0 0.0
  %3796 = vmatprep.subr.mxu0 0.0
  %3797 = vmatpush1.msra.mxu0 0.0
  %3798 = vmatprep.subr.mxu0 0.0
  %3799 = vmatpush1.msra.mxu0 0.0
  %3800 = vmatprep.subr.mxu0 0.0
  %3801 = vmatpush1.msra.mxu0 0.0
  %3802 = vmatprep.subr.mxu0 0.0
  %3803 = vmatpush1.msra.mxu0 0.0
  %3804 = vmatprep.subr.mxu0 0.0
  %3805 = vmatpush1.msra.mxu0 0.0
  %3806 = vmatprep.subr.mxu0 0.0
  %3807 = vmatpush1.msra.mxu0 0.0
  %3808 = vmatprep.subr.mxu0 0.0
  %3809 = vmatpush1.msra.mxu0 0.0
  %3810 = vmatprep.subr.mxu0 0.0
  %3811 = vmatpush1.msra.mxu0 0.0
  %3812 = vmatprep.subr.mxu0 0.0
  %3813 = vmatpush1.msra.mxu0 0.0
  %3814 = vmatprep.subr.mxu0 0.0
  %3815 = vmatpush1.msra.mxu0 0.0
  %3816 = vmatprep.subr.mxu0 0.0
  %3817 = vmatpush1.msra.mxu0 0.0
  %3818 = vmatprep.subr.mxu0 0.0
  %3819 = vmatpush1.msra.mxu0 0.0
  %3820 = vmatprep.subr.mxu0 0.0
  %3821 = vmatpush1.msra.mxu0 0.0
  %3822 = vmatprep.mubr.f32.mxu0 0.0
  %3823 = vmatmul.mubr.f32.gmra.mrb[0].mxu0 %v3314
  %v3824 = vpop.f32.mrb[0].mxu0
  %v3825 = vadd.f32 0.0, %v3824
  %v3826 = vpop.f32.mrb[0].mxu0
  %3827 = vmatprep.mubr.f32.mxu0 0.0
  %3828 = vmatmul.mubr.f32.gmra.mrb[0].mxu0 %v3317
  %v3829 = vpop.f32.mrb[0].mxu0
  %v3830 = vadd.f32 0.0, %v3829
  %v3831 = vpop.f32.mrb[0].mxu0
  %3832 = vmatprep.mubr.f32.mxu0 0.0
  %3833 = vmatmul.mubr.f32.gmra.mrb[0].mxu0 %v3320
  %v3834 = vpop.f32.mrb[0].mxu0
  %v3835 = vadd.f32 0.0, %v3834
  %v3836 = vpop.f32.mrb[0].mxu0
  %3837 = vmatprep.mubr.f32.mxu0 0.0
  %3838 = vmatmul.mubr.f32.gmra.mrb[0].mxu0 %v3323
  %v3839 = vpop.f32.mrb[0].mxu0
  %v3840 = vadd.f32 0.0, %v3839
  %v3841 = vpop.f32.mrb[0].mxu0
  %3842 = vmatprep.mubr.f32.mxu0 0.0
  %3843 = vmatmul.mubr.f32.gmra.mrb[0].mxu0 %v3326
  %v3844 = vpop.f32.mrb[0].mxu0
  %v3845 = vadd.f32 0.0, %v3844
  %v3846 = vpop.f32.mrb[0].mxu0
  %3847 = vmatprep.mubr.f32.mxu0 0.0
  %3848 = vmatmul.mubr.f32.gmra.mrb[0].mxu0 %v3329
  %v3849 = vpop.f32.mrb[0].mxu0
  %v3850 = vadd.f32 0.0, %v3849
  %v3851 = vpop.f32.mrb[0].mxu0
  %3852 = vmatprep.mubr.f32.mxu0 0.0
  %3853 = vmatmul.mubr.f32.gmra.mrb[0].mxu0 %v3332
  %v3854 = vpop.f32.mrb[0].mxu0
  %v3855 = vadd.f32 0.0, %v3854
  %v3856 = vpop.f32.mrb[0].mxu0
  %3857 = vmatprep.mubr.f32.mxu0 0.0
  %3858 = vmatmul.mubr.f32.gmra.mrb[0].mxu0 %v3335
  %v3859 = vpop.f32.mrb[0].mxu0
  %v3860 = vadd.f32 0.0, %v3859
  %v3861 = vpop.f32.mrb[0].mxu0
  %3862 = vmatprep.mubr.f32.mxu0 0.0
  %3863 = vmatmul.mubr.f32.gmra.mrb[0].mxu0 %v3338
  %v3864 = vpop.f32.mrb[0].mxu0
  %v3865 = vadd.f32 0.0, %v3864
  %v3866 = vpop.f32.mrb[0].mxu0
  %3867 = vmatprep.mubr.f32.mxu0 0.0
  %3868 = vmatmul.mubr.f32.gmra.mrb[0].mxu0 %v3341
  %v3869 = vpop.f32.mrb[0].mxu0
  %v3870 = vadd.f32 0.0, %v3869
  %v3871 = vpop.f32.mrb[0].mxu0
  %3872 = vmatprep.mubr.f32.mxu0 0.0
  %3873 = vmatmul.mubr.f32.gmra.mrb[0].mxu0 %v3344
  %v3874 = vpop.f32.mrb[0].mxu0
  %v3875 = vadd.f32 0.0, %v3874
  %v3876 = vpop.f32.mrb[0].mxu0
  %3877 = vmatprep.mubr.f32.mxu0 0.0
  %3878 = vmatmul.mubr.f32.gmra.mrb[0].mxu0 %v3347
  %v3879 = vpop.f32.mrb[0].mxu0
  %v3880 = vadd.f32 0.0, %v3879
  %v3881 = vpop.f32.mrb[0].mxu0
  %3882 = vmatprep.mubr.f32.mxu0 0.0
  %3883 = vmatmul.mubr.f32.gmra.mrb[0].mxu0 %v3350
  %v3884 = vpop.f32.mrb[0].mxu0
  %v3885 = vadd.f32 0.0, %v3884
  %v3886 = vpop.f32.mrb[0].mxu0
  %3887 = vdwg.mxu0
  %s3888 = scalar_lea.vmem %s10, 104
  %v3889 = vld [vmem:[%s3888] sm:$0xff]
  %v3890 = vld [vmem:[%s3888 + $0x8] sm:$0xff]
  %v3891 = vld [vmem:[%s3888 + $0x10] sm:$0xff]
  %v3892 = vld [vmem:[%s3888 + $0x18] sm:$0xff]
  %v3893 = vld [vmem:[%s3888 + $0x20] sm:$0xff]
  %v3894 = vld [vmem:[%s3888 + $0x28] sm:$0xff]
  %v3895 = vld [vmem:[%s3888 + $0x30] sm:$0xff]
  %v3896 = vld [vmem:[%s3888 + $0x38] sm:$0xff]
  %v3897 = vld [vmem:[%s3888 + $0x40] sm:$0xff]
  %v3898 = vld [vmem:[%s3888 + $0x48] sm:$0xff]
  %v3899 = vld [vmem:[%s3888 + $0x50] sm:$0xff]
  %v3900 = vld [vmem:[%s3888 + $0x58] sm:$0xff]
  %v3901 = vld [vmem:[%s3888 + $0x60] sm:$0xf]
  %v3903 = vsel %vm3499, %v3889, 0
  %v3906 = vsel %vm3499, %v3890, 0
  %v3909 = vsel %vm3499, %v3891, 0
  %v3912 = vsel %vm3499, %v3892, 0
  %v3915 = vsel %vm3499, %v3893, 0
  %v3918 = vsel %vm3499, %v3894, 0
  %v3921 = vsel %vm3499, %v3895, 0
  %v3924 = vsel %vm3499, %v3896, 0
  %v3927 = vsel %vm3499, %v3897, 0
  %v3930 = vsel %vm3499, %v3898, 0
  %v3933 = vsel %vm3499, %v3899, 0
  %v3936 = vsel %vm3499, %v3900, 0
  %v3939 = vsel %vm3499, %v3901, 0
  %v3942 = vsel %vm3539, %v3885, 0
  %3944 = vmatprep.subr.mxu0 0.0
  %3945 = vmatpush1.msra.mxu0 %v3825
  %3946 = vmatprep.subr.mxu0 0.0
  %3947 = vmatpush1.msra.mxu0 %v3830
  %3948 = vmatprep.subr.mxu0 0.0
  %3949 = vmatpush1.msra.mxu0 %v3835
  %3950 = vmatprep.subr.mxu0 0.0
  %3951 = vmatpush1.msra.mxu0 %v3840
  %3952 = vmatprep.subr.mxu0 0.0
  %3953 = vmatpush1.msra.mxu0 %v3845
  %3954 = vmatprep.subr.mxu0 0.0
  %3955 = vmatpush1.msra.mxu0 %v3850
  %3956 = vmatprep.subr.mxu0 0.0
  %3957 = vmatpush1.msra.mxu0 %v3855
  %3958 = vmatprep.subr.mxu0 0.0
  %3959 = vmatpush1.msra.mxu0 %v3860
  %3960 = vmatprep.subr.mxu0 0.0
  %3961 = vmatpush1.msra.mxu0 %v3865
  %3962 = vmatprep.subr.mxu0 0.0
  %3963 = vmatpush1.msra.mxu0 %v3870
  %3964 = vmatprep.subr.mxu0 0.0
  %3965 = vmatpush1.msra.mxu0 %v3875
  %3966 = vmatprep.subr.mxu0 0.0
  %3967 = vmatpush1.msra.mxu0 %v3880
  %3968 = vmatprep.subr.mxu0 0.0
  %3969 = vmatpush1.msra.mxu0 %v3942
  %3970 = vmatprep.subr.mxu0 0.0
  %3971 = vmatpush1.msra.mxu0 0.0
  %3972 = vmatprep.subr.mxu0 0.0
  %3973 = vmatpush1.msra.mxu0 0.0
  %3974 = vmatprep.subr.mxu0 0.0
  %3975 = vmatpush1.msra.mxu0 0.0
  %3976 = vmatprep.subr.mxu0 0.0
  %3977 = vmatpush1.msra.mxu0 0.0
  %3978 = vmatprep.subr.mxu0 0.0
  %3979 = vmatpush1.msra.mxu0 0.0
  %3980 = vmatprep.subr.mxu0 0.0
  %3981 = vmatpush1.msra.mxu0 0.0
  %3982 = vmatprep.subr.mxu0 0.0
  %3983 = vmatpush1.msra.mxu0 0.0
  %3984 = vmatprep.subr.mxu0 0.0
  %3985 = vmatpush1.msra.mxu0 0.0
  %3986 = vmatprep.subr.mxu0 0.0
  %3987 = vmatpush1.msra.mxu0 0.0
  %3988 = vmatprep.subr.mxu0 0.0
  %3989 = vmatpush1.msra.mxu0 0.0
  %3990 = vmatprep.subr.mxu0 0.0
  %3991 = vmatpush1.msra.mxu0 0.0
  %3992 = vmatprep.subr.mxu0 0.0
  %3993 = vmatpush1.msra.mxu0 0.0
  %3994 = vmatprep.subr.mxu0 0.0
  %3995 = vmatpush1.msra.mxu0 0.0
  %3996 = vmatprep.subr.mxu0 0.0
  %3997 = vmatpush1.msra.mxu0 0.0
  %3998 = vmatprep.subr.mxu0 0.0
  %3999 = vmatpush1.msra.mxu0 0.0
  %4000 = vmatprep.subr.mxu0 0.0
  %4001 = vmatpush1.msra.mxu0 0.0
  %4002 = vmatprep.subr.mxu0 0.0
  %4003 = vmatpush1.msra.mxu0 0.0
  %4004 = vmatprep.subr.mxu0 0.0
  %4005 = vmatpush1.msra.mxu0 0.0
  %4006 = vmatprep.subr.mxu0 0.0
  %4007 = vmatpush1.msra.mxu0 0.0
  %4008 = vmatprep.mubr.f32.mxu0 0.0
  %4009 = vmatmul.mubr.f32.gmra.mrb[0].mxu0 %v3903
  %v4010 = vpop.f32.mrb[0].mxu0
  %v4011 = vadd.f32 0.0, %v4010
  %v4012 = vpop.f32.mrb[0].mxu0
  %4013 = vmatprep.mubr.f32.mxu0 0.0
  %4014 = vmatmul.mubr.f32.gmra.mrb[0].mxu0 %v3906
  %v4015 = vpop.f32.mrb[0].mxu0
  %v4016 = vadd.f32 0.0, %v4015
  %v4017 = vpop.f32.mrb[0].mxu0
  %4018 = vmatprep.mubr.f32.mxu0 0.0
  %4019 = vmatmul.mubr.f32.gmra.mrb[0].mxu0 %v3909
  %v4020 = vpop.f32.mrb[0].mxu0
  %v4021 = vadd.f32 0.0, %v4020
  %v4022 = vpop.f32.mrb[0].mxu0
  %4023 = vmatprep.mubr.f32.mxu0 0.0
  %4024 = vmatmul.mubr.f32.gmra.mrb[0].mxu0 %v3912
  %v4025 = vpop.f32.mrb[0].mxu0
  %v4026 = vadd.f32 0.0, %v4025
  %v4027 = vpop.f32.mrb[0].mxu0
  %4028 = vmatprep.mubr.f32.mxu0 0.0
  %4029 = vmatmul.mubr.f32.gmra.mrb[0].mxu0 %v3915
  %v4030 = vpop.f32.mrb[0].mxu0
  %v4031 = vadd.f32 0.0, %v4030
  %v4032 = vpop.f32.mrb[0].mxu0
  %4033 = vmatprep.mubr.f32.mxu0 0.0
  %4034 = vmatmul.mubr.f32.gmra.mrb[0].mxu0 %v3918
  %v4035 = vpop.f32.mrb[0].mxu0
  %v4036 = vadd.f32 0.0, %v4035
  %v4037 = vpop.f32.mrb[0].mxu0
  %4038 = vmatprep.mubr.f32.mxu0 0.0
  %4039 = vmatmul.mubr.f32.gmra.mrb[0].mxu0 %v3921
  %v4040 = vpop.f32.mrb[0].mxu0
  %v4041 = vadd.f32 0.0, %v4040
  %v4042 = vpop.f32.mrb[0].mxu0
  %4043 = vmatprep.mubr.f32.mxu0 0.0
  %4044 = vmatmul.mubr.f32.gmra.mrb[0].mxu0 %v3924
  %v4045 = vpop.f32.mrb[0].mxu0
  %v4046 = vadd.f32 0.0, %v4045
  %v4047 = vpop.f32.mrb[0].mxu0
  %4048 = vmatprep.mubr.f32.mxu0 0.0
  %4049 = vmatmul.mubr.f32.gmra.mrb[0].mxu0 %v3927
  %v4050 = vpop.f32.mrb[0].mxu0
  %v4051 = vadd.f32 0.0, %v4050
  %v4052 = vpop.f32.mrb[0].mxu0
  %4053 = vmatprep.mubr.f32.mxu0 0.0
  %4054 = vmatmul.mubr.f32.gmra.mrb[0].mxu0 %v3930
  %v4055 = vpop.f32.mrb[0].mxu0
  %v4056 = vadd.f32 0.0, %v4055
  %v4057 = vpop.f32.mrb[0].mxu0
  %4058 = vmatprep.mubr.f32.mxu0 0.0
  %4059 = vmatmul.mubr.f32.gmra.mrb[0].mxu0 %v3933
  %v4060 = vpop.f32.mrb[0].mxu0
  %v4061 = vadd.f32 0.0, %v4060
  %v4062 = vpop.f32.mrb[0].mxu0
  %4063 = vmatprep.mubr.f32.mxu0 0.0
  %4064 = vmatmul.mubr.f32.gmra.mrb[0].mxu0 %v3936
  %v4065 = vpop.f32.mrb[0].mxu0
  %v4066 = vadd.f32 0.0, %v4065
  %v4067 = vpop.f32.mrb[0].mxu0
  %4068 = vmatprep.mubr.f32.mxu0 0.0
  %4069 = vmatmul.mubr.f32.gmra.mrb[0].mxu0 %v3939
  %v4070 = vpop.f32.mrb[0].mxu0
  %v4071 = vadd.f32 0.0, %v4070
  %v4072 = vpop.f32.mrb[0].mxu0
  %4073 = vdwg.mxu0
  %v4074 = vadd.f32 %v3738, %v4011
  %v4075 = vadd.f32 %v3739, %v4016
  %v4076 = vadd.f32 %v3740, %v4021
  %v4077 = vadd.f32 %v3741, %v4026
  %v4078 = vadd.f32 %v3742, %v4031
  %v4079 = vadd.f32 %v3743, %v4036
  %v4080 = vadd.f32 %v3744, %v4041
  %v4081 = vadd.f32 %v3745, %v4046
  %v4082 = vadd.f32 %v3746, %v4051
  %v4083 = vadd.f32 %v3747, %v4056
  %v4084 = vadd.f32 %v3748, %v4061
  %v4085 = vadd.f32 %v3749, %v4066
  %v4086 = vadd.f32 %v3750, %v4071
  %s4087 = scalar_lea.vmem %s9, 48
  %v4088 = vld [vmem:[%s4087] sm:$0xff]
  %v4089 = vld [vmem:[%s4087 + $0x8] sm:$0xff]
  %v4090 = vld [vmem:[%s4087 + $0x10] sm:$0x7f]
  %v4092 = vsel %vm3352, %v4090, 0
  %4094 = vmatprep.subr.mxu0 0.0
  %4095 = vmatpush1.msra.mxu0 %v4088
  %4096 = vmatprep.subr.mxu0 0.0
  %4097 = vmatpush1.msra.mxu0 %v4089
  %4098 = vmatprep.subr.mxu0 0.0
  %4099 = vmatpush1.msra.mxu0 %v4092
  %4100 = vmatprep.subr.mxu0 0.0
  %4101 = vmatpush1.msra.mxu0 0.0
  %4102 = vmatprep.subr.mxu0 0.0
  %4103 = vmatpush1.msra.mxu0 0.0
  %4104 = vmatprep.subr.mxu0 0.0
  %4105 = vmatpush1.msra.mxu0 0.0
  %4106 = vmatprep.subr.mxu0 0.0
  %4107 = vmatpush1.msra.mxu0 0.0
  %4108 = vmatprep.subr.mxu0 0.0
  %4109 = vmatpush1.msra.mxu0 0.0
  %4110 = vmatprep.subr.mxu0 0.0
  %4111 = vmatpush1.msra.mxu0 0.0
  %4112 = vmatprep.subr.mxu0 0.0
  %4113 = vmatpush1.msra.mxu0 0.0
  %4114 = vmatprep.subr.mxu0 0.0
  %4115 = vmatpush1.msra.mxu0 0.0
  %4116 = vmatprep.subr.mxu0 0.0
  %4117 = vmatpush1.msra.mxu0 0.0
  %4118 = vmatprep.subr.mxu0 0.0
  %4119 = vmatpush1.msra.mxu0 0.0
  %4120 = vmatprep.subr.mxu0 0.0
  %4121 = vmatpush1.msra.mxu0 0.0
  %4122 = vmatprep.subr.mxu0 0.0
  %4123 = vmatpush1.msra.mxu0 0.0
  %4124 = vmatprep.subr.mxu0 0.0
  %4125 = vmatpush1.msra.mxu0 0.0
  %4126 = vmatprep.subr.mxu0 0.0
  %4127 = vmatpush1.msra.mxu0 0.0
  %4128 = vmatprep.subr.mxu0 0.0
  %4129 = vmatpush1.msra.mxu0 0.0
  %4130 = vmatprep.subr.mxu0 0.0
  %4131 = vmatpush1.msra.mxu0 0.0
  %4132 = vmatprep.subr.mxu0 0.0
  %4133 = vmatpush1.msra.mxu0 0.0
  %4134 = vmatprep.subr.mxu0 0.0
  %4135 = vmatpush1.msra.mxu0 0.0
  %4136 = vmatprep.subr.mxu0 0.0
  %4137 = vmatpush1.msra.mxu0 0.0
  %4138 = vmatprep.subr.mxu0 0.0
  %4139 = vmatpush1.msra.mxu0 0.0
  %4140 = vmatprep.subr.mxu0 0.0
  %4141 = vmatpush1.msra.mxu0 0.0
  %4142 = vmatprep.subr.mxu0 0.0
  %4143 = vmatpush1.msra.mxu0 0.0
  %4144 = vmatprep.subr.mxu0 0.0
  %4145 = vmatpush1.msra.mxu0 0.0
  %4146 = vmatprep.subr.mxu0 0.0
  %4147 = vmatpush1.msra.mxu0 0.0
  %4148 = vmatprep.subr.mxu0 0.0
  %4149 = vmatpush1.msra.mxu0 0.0
  %4150 = vmatprep.subr.mxu0 0.0
  %4151 = vmatpush1.msra.mxu0 0.0
  %4152 = vmatprep.subr.mxu0 0.0
  %4153 = vmatpush1.msra.mxu0 0.0
  %4154 = vmatprep.subr.mxu0 0.0
  %4155 = vmatpush1.msra.mxu0 0.0
  %4156 = vmatprep.subr.mxu0 0.0
  %4157 = vmatpush1.msra.mxu0 0.0
  %4158 = vmatprep.mubr.f32.mxu0 0.0
  %4159 = vmatmul.mubr.f32.gmra.mrb[0].mxu0 %v3314
  %v4160 = vpop.f32.mrb[0].mxu0
  %v4161 = vadd.f32 0.0, %v4160
  %v4162 = vpop.f32.mrb[0].mxu0
  %4163 = vmatprep.mubr.f32.mxu0 0.0
  %4164 = vmatmul.mubr.f32.gmra.mrb[0].mxu0 %v3317
  %v4165 = vpop.f32.mrb[0].mxu0
  %v4166 = vadd.f32 0.0, %v4165
  %v4167 = vpop.f32.mrb[0].mxu0
  %4168 = vmatprep.mubr.f32.mxu0 0.0
  %4169 = vmatmul.mubr.f32.gmra.mrb[0].mxu0 %v3320
  %v4170 = vpop.f32.mrb[0].mxu0
  %v4171 = vadd.f32 0.0, %v4170
  %v4172 = vpop.f32.mrb[0].mxu0
  %4173 = vmatprep.mubr.f32.mxu0 0.0
  %4174 = vmatmul.mubr.f32.gmra.mrb[0].mxu0 %v3323
  %v4175 = vpop.f32.mrb[0].mxu0
  %v4176 = vadd.f32 0.0, %v4175
  %v4177 = vpop.f32.mrb[0].mxu0
  %4178 = vmatprep.mubr.f32.mxu0 0.0
  %4179 = vmatmul.mubr.f32.gmra.mrb[0].mxu0 %v3326
  %v4180 = vpop.f32.mrb[0].mxu0
  %v4181 = vadd.f32 0.0, %v4180
  %v4182 = vpop.f32.mrb[0].mxu0
  %4183 = vmatprep.mubr.f32.mxu0 0.0
  %4184 = vmatmul.mubr.f32.gmra.mrb[0].mxu0 %v3329
  %v4185 = vpop.f32.mrb[0].mxu0
  %v4186 = vadd.f32 0.0, %v4185
  %v4187 = vpop.f32.mrb[0].mxu0
  %4188 = vmatprep.mubr.f32.mxu0 0.0
  %4189 = vmatmul.mubr.f32.gmra.mrb[0].mxu0 %v3332
  %v4190 = vpop.f32.mrb[0].mxu0
  %v4191 = vadd.f32 0.0, %v4190
  %v4192 = vpop.f32.mrb[0].mxu0
  %4193 = vmatprep.mubr.f32.mxu0 0.0
  %4194 = vmatmul.mubr.f32.gmra.mrb[0].mxu0 %v3335
  %v4195 = vpop.f32.mrb[0].mxu0
  %v4196 = vadd.f32 0.0, %v4195
  %v4197 = vpop.f32.mrb[0].mxu0
  %4198 = vmatprep.mubr.f32.mxu0 0.0
  %4199 = vmatmul.mubr.f32.gmra.mrb[0].mxu0 %v3338
  %v4200 = vpop.f32.mrb[0].mxu0
  %v4201 = vadd.f32 0.0, %v4200
  %v4202 = vpop.f32.mrb[0].mxu0
  %4203 = vmatprep.mubr.f32.mxu0 0.0
  %4204 = vmatmul.mubr.f32.gmra.mrb[0].mxu0 %v3341
  %v4205 = vpop.f32.mrb[0].mxu0
  %v4206 = vadd.f32 0.0, %v4205
  %v4207 = vpop.f32.mrb[0].mxu0
  %4208 = vmatprep.mubr.f32.mxu0 0.0
  %4209 = vmatmul.mubr.f32.gmra.mrb[0].mxu0 %v3344
  %v4210 = vpop.f32.mrb[0].mxu0
  %v4211 = vadd.f32 0.0, %v4210
  %v4212 = vpop.f32.mrb[0].mxu0
  %4213 = vmatprep.mubr.f32.mxu0 0.0
  %4214 = vmatmul.mubr.f32.gmra.mrb[0].mxu0 %v3347
  %v4215 = vpop.f32.mrb[0].mxu0
  %v4216 = vadd.f32 0.0, %v4215
  %v4217 = vpop.f32.mrb[0].mxu0
  %4218 = vmatprep.mubr.f32.mxu0 0.0
  %4219 = vmatmul.mubr.f32.gmra.mrb[0].mxu0 %v3350
  %v4220 = vpop.f32.mrb[0].mxu0
  %v4221 = vadd.f32 0.0, %v4220
  %v4222 = vpop.f32.mrb[0].mxu0
  %4223 = vdwg.mxu0
  %s4224 = scalar_lea.vmem %s10, 208
  %v4225 = vld [vmem:[%s4224] sm:$0xff]
  %v4226 = vld [vmem:[%s4224 + $0x8] sm:$0xff]
  %v4227 = vld [vmem:[%s4224 + $0x10] sm:$0xff]
  %v4228 = vld [vmem:[%s4224 + $0x18] sm:$0xff]
  %v4229 = vld [vmem:[%s4224 + $0x20] sm:$0xff]
  %v4230 = vld [vmem:[%s4224 + $0x28] sm:$0xff]
  %v4231 = vld [vmem:[%s4224 + $0x30] sm:$0xff]
  %v4232 = vld [vmem:[%s4224 + $0x38] sm:$0xff]
  %v4233 = vld [vmem:[%s4224 + $0x40] sm:$0xff]
  %v4234 = vld [vmem:[%s4224 + $0x48] sm:$0xff]
  %v4235 = vld [vmem:[%s4224 + $0x50] sm:$0xff]
  %v4236 = vld [vmem:[%s4224 + $0x58] sm:$0xff]
  %v4237 = vld [vmem:[%s4224 + $0x60] sm:$0xf]
  %v4239 = vsel %vm3499, %v4225, 0
  %v4242 = vsel %vm3499, %v4226, 0
  %v4245 = vsel %vm3499, %v4227, 0
  %v4248 = vsel %vm3499, %v4228, 0
  %v4251 = vsel %vm3499, %v4229, 0
  %v4254 = vsel %vm3499, %v4230, 0
  %v4257 = vsel %vm3499, %v4231, 0
  %v4260 = vsel %vm3499, %v4232, 0
  %v4263 = vsel %vm3499, %v4233, 0
  %v4266 = vsel %vm3499, %v4234, 0
  %v4269 = vsel %vm3499, %v4235, 0
  %v4272 = vsel %vm3499, %v4236, 0
  %v4275 = vsel %vm3499, %v4237, 0
  %v4278 = vsel %vm3539, %v4221, 0
  %4280 = vmatprep.subr.mxu0 0.0
  %4281 = vmatpush1.msra.mxu0 %v4161
  %4282 = vmatprep.subr.mxu0 0.0
  %4283 = vmatpush1.msra.mxu0 %v4166
  %4284 = vmatprep.subr.mxu0 0.0
  %4285 = vmatpush1.msra.mxu0 %v4171
  %4286 = vmatprep.subr.mxu0 0.0
  %4287 = vmatpush1.msra.mxu0 %v4176
  %4288 = vmatprep.subr.mxu0 0.0
  %4289 = vmatpush1.msra.mxu0 %v4181
  %4290 = vmatprep.subr.mxu0 0.0
  %4291 = vmatpush1.msra.mxu0 %v4186
  %4292 = vmatprep.subr.mxu0 0.0
  %4293 = vmatpush1.msra.mxu0 %v4191
  %4294 = vmatprep.subr.mxu0 0.0
  %4295 = vmatpush1.msra.mxu0 %v4196
  %4296 = vmatprep.subr.mxu0 0.0
  %4297 = vmatpush1.msra.mxu0 %v4201
  %4298 = vmatprep.subr.mxu0 0.0
  %4299 = vmatpush1.msra.mxu0 %v4206
  %4300 = vmatprep.subr.mxu0 0.0
  %4301 = vmatpush1.msra.mxu0 %v4211
  %4302 = vmatprep.subr.mxu0 0.0
  %4303 = vmatpush1.msra.mxu0 %v4216
  %4304 = vmatprep.subr.mxu0 0.0
  %4305 = vmatpush1.msra.mxu0 %v4278
  %4306 = vmatprep.subr.mxu0 0.0
  %4307 = vmatpush1.msra.mxu0 0.0
  %4308 = vmatprep.subr.mxu0 0.0
  %4309 = vmatpush1.msra.mxu0 0.0
  %4310 = vmatprep.subr.mxu0 0.0
  %4311 = vmatpush1.msra.mxu0 0.0
  %4312 = vmatprep.subr.mxu0 0.0
  %4313 = vmatpush1.msra.mxu0 0.0
  %4314 = vmatprep.subr.mxu0 0.0
  %4315 = vmatpush1.msra.mxu0 0.0
  %4316 = vmatprep.subr.mxu0 0.0
  %4317 = vmatpush1.msra.mxu0 0.0
  %4318 = vmatprep.subr.mxu0 0.0
  %4319 = vmatpush1.msra.mxu0 0.0
  %4320 = vmatprep.subr.mxu0 0.0
  %4321 = vmatpush1.msra.mxu0 0.0
  %4322 = vmatprep.subr.mxu0 0.0
  %4323 = vmatpush1.msra.mxu0 0.0
  %4324 = vmatprep.subr.mxu0 0.0
  %4325 = vmatpush1.msra.mxu0 0.0
  %4326 = vmatprep.subr.mxu0 0.0
  %4327 = vmatpush1.msra.mxu0 0.0
  %4328 = vmatprep.subr.mxu0 0.0
  %4329 = vmatpush1.msra.mxu0 0.0
  %4330 = vmatprep.subr.mxu0 0.0
  %4331 = vmatpush1.msra.mxu0 0.0
  %4332 = vmatprep.subr.mxu0 0.0
  %4333 = vmatpush1.msra.mxu0 0.0
  %4334 = vmatprep.subr.mxu0 0.0
  %4335 = vmatpush1.msra.mxu0 0.0
  %4336 = vmatprep.subr.mxu0 0.0
  %4337 = vmatpush1.msra.mxu0 0.0
  %4338 = vmatprep.subr.mxu0 0.0
  %4339 = vmatpush1.msra.mxu0 0.0
  %4340 = vmatprep.subr.mxu0 0.0
  %4341 = vmatpush1.msra.mxu0 0.0
  %4342 = vmatprep.subr.mxu0 0.0
  %4343 = vmatpush1.msra.mxu0 0.0
  %4344 = vmatprep.mubr.f32.mxu0 0.0
  %4345 = vmatmul.mubr.f32.gmra.mrb[0].mxu0 %v4239
  %v4346 = vpop.f32.mrb[0].mxu0
  %v4347 = vadd.f32 0.0, %v4346
  %v4348 = vpop.f32.mrb[0].mxu0
  %4349 = vmatprep.mubr.f32.mxu0 0.0
  %4350 = vmatmul.mubr.f32.gmra.mrb[0].mxu0 %v4242
  %v4351 = vpop.f32.mrb[0].mxu0
  %v4352 = vadd.f32 0.0, %v4351
  %v4353 = vpop.f32.mrb[0].mxu0
  %4354 = vmatprep.mubr.f32.mxu0 0.0
  %4355 = vmatmul.mubr.f32.gmra.mrb[0].mxu0 %v4245
  %v4356 = vpop.f32.mrb[0].mxu0
  %v4357 = vadd.f32 0.0, %v4356
  %v4358 = vpop.f32.mrb[0].mxu0
  %4359 = vmatprep.mubr.f32.mxu0 0.0
  %4360 = vmatmul.mubr.f32.gmra.mrb[0].mxu0 %v4248
  %v4361 = vpop.f32.mrb[0].mxu0
  %v4362 = vadd.f32 0.0, %v4361
  %v4363 = vpop.f32.mrb[0].mxu0
  %4364 = vmatprep.mubr.f32.mxu0 0.0
  %4365 = vmatmul.mubr.f32.gmra.mrb[0].mxu0 %v4251
  %v4366 = vpop.f32.mrb[0].mxu0
  %v4367 = vadd.f32 0.0, %v4366
  %v4368 = vpop.f32.mrb[0].mxu0
  %4369 = vmatprep.mubr.f32.mxu0 0.0
  %4370 = vmatmul.mubr.f32.gmra.mrb[0].mxu0 %v4254
  %v4371 = vpop.f32.mrb[0].mxu0
  %v4372 = vadd.f32 0.0, %v4371
  %v4373 = vpop.f32.mrb[0].mxu0
  %4374 = vmatprep.mubr.f32.mxu0 0.0
  %4375 = vmatmul.mubr.f32.gmra.mrb[0].mxu0 %v4257
  %v4376 = vpop.f32.mrb[0].mxu0
  %v4377 = vadd.f32 0.0, %v4376
  %v4378 = vpop.f32.mrb[0].mxu0
  %4379 = vmatprep.mubr.f32.mxu0 0.0
  %4380 = vmatmul.mubr.f32.gmra.mrb[0].mxu0 %v4260
  %v4381 = vpop.f32.mrb[0].mxu0
  %v4382 = vadd.f32 0.0, %v4381
  %v4383 = vpop.f32.mrb[0].mxu0
  %4384 = vmatprep.mubr.f32.mxu0 0.0
  %4385 = vmatmul.mubr.f32.gmra.mrb[0].mxu0 %v4263
  %v4386 = vpop.f32.mrb[0].mxu0
  %v4387 = vadd.f32 0.0, %v4386
  %v4388 = vpop.f32.mrb[0].mxu0
  %4389 = vmatprep.mubr.f32.mxu0 0.0
  %4390 = vmatmul.mubr.f32.gmra.mrb[0].mxu0 %v4266
  %v4391 = vpop.f32.mrb[0].mxu0
  %v4392 = vadd.f32 0.0, %v4391
  %v4393 = vpop.f32.mrb[0].mxu0
  %4394 = vmatprep.mubr.f32.mxu0 0.0
  %4395 = vmatmul.mubr.f32.gmra.mrb[0].mxu0 %v4269
  %v4396 = vpop.f32.mrb[0].mxu0
  %v4397 = vadd.f32 0.0, %v4396
  %v4398 = vpop.f32.mrb[0].mxu0
  %4399 = vmatprep.mubr.f32.mxu0 0.0
  %4400 = vmatmul.mubr.f32.gmra.mrb[0].mxu0 %v4272
  %v4401 = vpop.f32.mrb[0].mxu0
  %v4402 = vadd.f32 0.0, %v4401
  %v4403 = vpop.f32.mrb[0].mxu0
  %4404 = vmatprep.mubr.f32.mxu0 0.0
  %4405 = vmatmul.mubr.f32.gmra.mrb[0].mxu0 %v4275
  %v4406 = vpop.f32.mrb[0].mxu0
  %v4407 = vadd.f32 0.0, %v4406
  %v4408 = vpop.f32.mrb[0].mxu0
  %4409 = vdwg.mxu0
  %v4410 = vadd.f32 %v4074, %v4347
  %v4411 = vadd.f32 %v4075, %v4352
  %v4412 = vadd.f32 %v4076, %v4357
  %v4413 = vadd.f32 %v4077, %v4362
  %v4414 = vadd.f32 %v4078, %v4367
  %v4415 = vadd.f32 %v4079, %v4372
  %v4416 = vadd.f32 %v4080, %v4377
  %v4417 = vadd.f32 %v4081, %v4382
  %v4418 = vadd.f32 %v4082, %v4387
  %v4419 = vadd.f32 %v4083, %v4392
  %v4420 = vadd.f32 %v4084, %v4397
  %v4421 = vadd.f32 %v4085, %v4402
  %v4422 = vadd.f32 %v4086, %v4407
  %vm4423 = vcmask 326656
  %4424 = vst.msk [vmem:[%s12] sm:$0xff] %vm4423, %v4410
  %4425 = vst.msk [vmem:[%s12 + $0x8] sm:$0xff] %vm4423, %v4411
  %4426 = vst.msk [vmem:[%s12 + $0x10] sm:$0xff] %vm4423, %v4412
  %4427 = vst.msk [vmem:[%s12 + $0x18] sm:$0xff] %vm4423, %v4413
  %4428 = vst.msk [vmem:[%s12 + $0x20] sm:$0xff] %vm4423, %v4414
  %4429 = vst.msk [vmem:[%s12 + $0x28] sm:$0xff] %vm4423, %v4415
  %4430 = vst.msk [vmem:[%s12 + $0x30] sm:$0xff] %vm4423, %v4416
  %4431 = vst.msk [vmem:[%s12 + $0x38] sm:$0xff] %vm4423, %v4417
  %4432 = vst.msk [vmem:[%s12 + $0x40] sm:$0xff] %vm4423, %v4418
  %4433 = vst.msk [vmem:[%s12 + $0x48] sm:$0xff] %vm4423, %v4419
  %4434 = vst.msk [vmem:[%s12 + $0x50] sm:$0xff] %vm4423, %v4420
  %4435 = vst.msk [vmem:[%s12 + $0x58] sm:$0xff] %vm4423, %v4421
  %vm4436 = vcmask 322560
  %4437 = vst.msk [vmem:[%s12 + $0x60] sm:$0xf] %vm4436, %v4422
  // Predicated region
  $region50: #{fc_deconv_small_forward.1} parent=0 // pred_check
    _
  $region51: #{fc_deconv_small_forward.1} parent=0 // pred_check_branch
    %4439 = sbr.rel (0) target = $region53
  $region52: #{fc_deconv_small_forward.1} parent=0 // pred_region
    _
  $region53: #{fc_deconv_small_forward.1} parent=0 // pred_fallthru
    _
  // Predicated region
  $region54: #{fc_deconv_small_forward.1} parent=0 // pred_check
    _
  $region55: #{fc_deconv_small_forward.1} parent=0 // pred_check_branch
    %4441 = sbr.rel (0) target = $region57
  $region56: #{fc_deconv_small_forward.1} parent=0 // pred_region
    _
  $region57: #{fc_deconv_small_forward.1} parent=0 // pred_fallthru
    _

</llo_original>
